<compile_context>
chip_gen: v7x
topology: tpu7x:2x2x1
jax: 0.10.0
libtpu: 0.0.40
codegen_flags: <defaults>
</compile_context>

<pallas_src>
import functools
import math

import jax
import jax.numpy as jnp
from jax.experimental import pallas as pl
from jax.experimental.pallas import tpu as pltpu


def _layer_norm(x, eps=1e-5):
    # F.layer_norm(x, [H]) with no affine params
    mean = jnp.mean(x, axis=-1, keepdims=True)
    xc = x - mean
    var = jnp.mean(xc * xc, axis=-1, keepdims=True)
    return xc * jax.lax.rsqrt(var + eps)


def _dense2(x2d, w, b):
    # x2d: (M, in), w: (out, in), b: (1, out)  ->  (M, out)
    y = jax.lax.dot_general(x2d, w, (((1,), (1,)), ((), ())),
                            preferred_element_type=jnp.float32)
    return y + b


def _kgnn_kernel(B, N, D, H, L, NH, P,
                 cf_ref, adj_ref, hp_ref,
                 wce_ref, bce_ref,
                 win_ref, bin_ref, wf_ref, bf_ref,
                 wheads_ref, bheads_ref,
                 wpool_ref, bpool_ref,
                 packed_out):
    HD = H // NH
    scale = 1.0 / math.sqrt(HD)

    cf = cf_ref[...]          # (B, N, D)
    adj = adj_ref[...]        # (B, N, N)
    hp = hp_ref[...]          # (H, NH) head-pooling matrix: hp[d, h] = 1 iff d//HD == h

    # concept embedding: Linear(D -> H)
    node = _dense2(cf.reshape(B * N, D), wce_ref[...], bce_ref[...]).reshape(B, N, H)

    for l in range(L):
        w_in = win_ref[l]     # (3H, H)  MHA in_proj
        b_in = bin_ref[l]     # (1, 3H)
        w_f = wf_ref[l]       # (H, H)   fused out_proj + conv
        b_f = bf_ref[l]       # (1, H)

        flat = node.reshape(B * N, H)
        qkv = _dense2(flat, w_in, b_in)                        # (B*N, 3H)
        q = (qkv[:, 0:H] * scale).reshape(B, N, H)
        k = qkv[:, H:2 * H].reshape(B, N, H)
        v = qkv[:, 2 * H:3 * H].reshape(B, N, H)

        # ---- MHA over the B ("sequence") axis, vectorized over (N, heads) ----
        outs = []
        for a in range(B):                                     # query position
            prod = q[a][None, :, :] * k                        # (B, N, H)
            s = jax.lax.dot_general(prod.reshape(B * N, H), hp,
                                    (((1,), (0,)), ((), ())),
                                    preferred_element_type=jnp.float32)   # (B*N, NH)
            s = s.reshape(B, N, NH)                            # per-head scores vs all keys
            m = jnp.max(s, axis=0, keepdims=True)
            e = jnp.exp(s - m)
            denom = jnp.sum(e, axis=0, keepdims=True)
            p = e / denom                                      # softmax over keys (B axis)
            pw = jax.lax.dot_general(p.reshape(B * N, NH), hp,
                                     (((1,), (1,)), ((), ())),
                                     preferred_element_type=jnp.float32)  # (B*N, H)
            o_a = jnp.sum(pw.reshape(B, N, H) * v, axis=0)     # (N, H)
            outs.append(o_a[None])
        attn = jnp.concatenate(outs, axis=0)                   # (B, N, H) pre-out_proj

        # ---- fused out_proj+conv, batched adjacency aggregation, residual+LN ----
        conv = _dense2(attn.reshape(B * N, H), w_f, b_f).reshape(B, N, H)
        agg = jnp.einsum('bnm,bmh->bnh', adj, conv,
                         preferred_element_type=jnp.float32)   # (B, N, H)
        node = _layer_norm(node + agg)

    # ---- fused output heads: one (B*N, H) x (H, 8) matmul ----
    # rows of w_heads: 0 = classifier, 1..5 = difficulty, 6 = prereq W1, 7 = prereq W2
    wh = wheads_ref[...]                                       # (8, H)
    heads = _dense2(node.reshape(B * N, H), wh, bheads_ref[...])
    heads3 = heads.reshape(B, N, 8)
    md = heads3[:, :, 0:6]                                     # mastery (1) + difficulty (5)
    a3 = heads3[:, :, 6:7]                                     # node . W1 + b_pre  (B, N, 1)

    # prerequisite scores for all (i, j): a_i + c_j (b_pre already folded into a)
    w2 = wh[7:8, :]                                            # (1, H) = prereq W2
    w2b = jnp.broadcast_to(w2.reshape(1, 1, H), (B, 1, H))
    c3 = jnp.einsum('bxh,bnh->bxn', w2b, node,
                    preferred_element_type=jnp.float32)        # (B, 1, N)
    prereq = a3 + c3                                           # (B, N, N)

    # graph pooling: Linear(H -> H) on the mean over concepts
    gmean = jnp.mean(node, axis=1)                             # (B, H)
    graph = _dense2(gmean, wpool_ref[...], bpool_ref[...])     # (B, H)
    graph_b = jnp.broadcast_to(graph[:, None, :], (B, N, H))

    # ---- single lane-dense (B, N, P) store ----
    pieces = [node, md, prereq, graph_b]
    pad = P - (2 * H + 6 + N)
    if pad > 0:
        pieces.append(jnp.zeros((B, N, pad), jnp.float32))
    packed_out[...] = jnp.concatenate(pieces, axis=-1)


def init_params(key, D, H, L):
    ks = jax.random.split(key, 16)

    def u(k, shape, fan_in):
        bound = 1.0 / math.sqrt(fan_in)
        return jax.random.uniform(k, shape, jnp.float32, -bound, bound)

    return {
        'w_ce':   u(ks[0],  (H, D), D),          # concept_embedding
        'b_ce':   u(ks[1],  (1, H), D),
        'w_in':   u(ks[2],  (L, 3 * H, H), H),   # MHA in_proj (per layer)
        'b_in':   u(ks[3],  (L, 1, 3 * H), H),
        'w_out':  u(ks[4],  (L, H, H), H),       # MHA out_proj (per layer)
        'b_out':  u(ks[5],  (L, 1, H), H),
        'w_conv': u(ks[6],  (L, H, H), H),       # conv_layers (per layer)
        'b_conv': u(ks[7],  (L, 1, H), H),
        'w_cls':  u(ks[8],  (1, H), H),          # concept_classifier
        'b_cls':  u(ks[9],  (1, 1), H),
        'w_diff': u(ks[10], (5, H), H),          # difficulty_predictor
        'b_diff': u(ks[11], (1, 5), H),
        'w_pre':  u(ks[12], (1, 2 * H), 2 * H),  # prerequisite_predictor
        'b_pre':  u(ks[13], (1, 1), 2 * H),
        'w_pool': u(ks[14], (H, H), H),          # graph_pooling
        'b_pool': u(ks[15], (1, H), H),
    }
    # NOTE: prerequisite_embedding and edge_embeddings exist in __init__ but are
    # never used in forward(), so they are intentionally omitted.


def knowledge_graph_gnn(concept_features, adjacency_matrix, edge_types, concept_mask, params):
    # edge_types / concept_mask are accepted for signature parity but -- exactly
    # like the PyTorch forward() -- never used.
    del edge_types, concept_mask
    B, N, D = concept_features.shape
    H = params['w_ce'].shape[0]
    L = params['w_in'].shape[0]
    NH = 8                     # hardcoded num_heads in the module
    HD = H // NH
    P = max(128, ((2 * H + 6 + N + 127) // 128) * 128)   # lane-dense packed width

    # ---- parameter fusion (plain JAX glue, outside the kernel) ----
    # conv(out_proj(x)) = x @ (W_c W_o)^T + (b_o W_c^T + b_c)
    w_f = jnp.einsum('lij,ljk->lik', params['w_conv'], params['w_out'])
    b_f = jnp.einsum('lbh,loh->lbo', params['b_out'], params['w_conv']) + params['b_conv']
    # stack small heads into one (8, H) matmul; fold b_pre into the W1 column bias
    w_heads = jnp.concatenate([params['w_cls'], params['w_diff'],
                               params['w_pre'][:, :H], params['w_pre'][:, H:]], axis=0)
    b_heads = jnp.concatenate([params['b_cls'], params['b_diff'],
                               params['b_pre'], jnp.zeros((1, 1), jnp.float32)], axis=1)
    # head-pooling matrix: hp[d, h] = 1 iff lane d belongs to head h
    hp = jnp.repeat(jnp.eye(NH, dtype=jnp.float32), HD, axis=0)          # (H, NH)

    kernel = functools.partial(_kgnn_kernel, B, N, D, H, L, NH, P)
    vmem = pl.BlockSpec(memory_space=pltpu.MemorySpace.VMEM)
    inputs = (
        concept_features.astype(jnp.float32),
        adjacency_matrix.astype(jnp.float32),
        hp,
        params['w_ce'], params['b_ce'],
        params['w_in'], params['b_in'],
        w_f, b_f,
        w_heads, b_heads,
        params['w_pool'], params['b_pool'],
    )
    packed = pl.pallas_call(
        kernel,
        out_shape=jax.ShapeDtypeStruct((B, N, P), jnp.float32),
        in_specs=[vmem] * len(inputs),
        out_specs=vmem,
    )(*inputs)

    # ---- unpack the lane-dense slab ----
    node = packed[:, :, 0:H]
    mastery = packed[:, :, H:H + 1]
    diff = packed[:, :, H + 1:H + 6]
    prereq_full = packed[:, :, H + 6:H + 6 + N]                # (B, N, N)
    graph = packed[:, 0, H + 6 + N:H + 6 + N + H]              # (B, H)

    # off-diagonal (i, j) pairs in i-major order via pure reshape/slice (no gather)
    offdiag = (prereq_full.reshape(B, N * N)[:, 1:]
               .reshape(B, N - 1, N + 1)[:, :, :N]
               .reshape(B, N * (N - 1), 1))

    return {
        'node_embeddings': node,
        'concept_mastery': mastery,
        'difficulty_predictions': diff,
        'prerequisite_predictions': offdiag,
        'graph_representation': graph,
    }


def _reference_forward(cf, adj, params, NH=8):
    """Pure-JAX mirror of the PyTorch forward (unfused), for validation."""
    B, N, D = cf.shape
    H = params['w_ce'].shape[0]
    L = params['w_in'].shape[0]
    HD = H // NH
    node = cf @ params['w_ce'].T + params['b_ce']
    for l in range(L):
        qkv = node @ params['w_in'][l].T + params['b_in'][l]
        q, k, v = qkv[..., :H], qkv[..., H:2 * H], qkv[..., 2 * H:]
        qh = q.reshape(B, N, NH, HD)
        kh = k.reshape(B, N, NH, HD)
        vh = v.reshape(B, N, NH, HD)
        s = jnp.einsum('anhd,bnhd->nhab', qh, kh) / math.sqrt(HD)
        p = jax.nn.softmax(s, axis=-1)
        o = jnp.einsum('nhab,bnhd->anhd', p, vh).reshape(B, N, H)
        attn = o @ params['w_out'][l].T + params['b_out'][l]
        conv = attn @ params['w_conv'][l].T + params['b_conv'][l]
        agg = jnp.einsum('bnm,bmh->bnh', adj, conv)
        x = node + agg
        mean = x.mean(-1, keepdims=True)
        var = ((x - mean) ** 2).mean(-1, keepdims=True)
        node = (x - mean) / jnp.sqrt(var + 1e-5)
    mastery = node @ params['w_cls'].T + params['b_cls']
    diff = node @ params['w_diff'].T + params['b_diff']
    w1, w2 = params['w_pre'][:, :H], params['w_pre'][:, H:]
    pre_full = (jnp.einsum('bnh,oh->bno', node, w1)
                + jnp.swapaxes(jnp.einsum('bnh,oh->bno', node, w2), 1, 2)
                + params['b_pre'][0, 0])
    rows = [pre_full[:, i, j] for i in range(N) for j in range(N) if i != j]
    prereq = jnp.stack(rows, axis=1)[..., None]
    graph = node.mean(1) @ params['w_pool'].T + params['b_pool']
    return {'node_embeddings': node, 'concept_mastery': mastery,
            'difficulty_predictions': diff, 'prerequisite_predictions': prereq,
            'graph_representation': graph}


if __name__ == "__main__":
    B, N, D, H, L = 2, 8, 32, 32, 3   # concept_dim=32, hidden_dim=32 (divisible by 8 heads)

    key = jax.random.PRNGKey(0)
    k1, k2, k3 = jax.random.split(key, 3)
    concept_features = jax.random.normal(k1, (B, N, D), jnp.float32)
    adjacency = (jax.random.uniform(k2, (B, N, N)) > 0.5).astype(jnp.float32)
    edge_types = jnp.zeros((B, N, N), jnp.int32)
    concept_mask = jnp.ones((B, N), jnp.bool_)

    params = init_params(k3, D, H, L)

    fwd = jax.jit(knowledge_graph_gnn)
    out = fwd(concept_features, adjacency, edge_types, concept_mask, params)
    jax.block_until_ready(out)

    assert out['node_embeddings'].shape == (B, N, H)
    assert out['concept_mastery'].shape == (B, N, 1)
    assert out['difficulty_predictions'].shape == (B, N, 5)
    assert out['prerequisite_predictions'].shape == (B, N * (N - 1), 1)
    assert out['graph_representation'].shape == (B, H)

    ref = _reference_forward(concept_features, adjacency, params)
    for name in ref:
        assert jnp.allclose(out[name], ref[name], atol=2e-3, rtol=2e-3), name

    print("KERNEL_OK")
</pallas_src>

<mosaic_0001>
module attributes {stable_mosaic.version = 11 : i64} {
  func.func @_kgnn_kernel(%arg0: memref<2x8x32xf32, #tpu.memory_space<vmem>>, %arg1: memref<2x8x8xf32, #tpu.memory_space<vmem>>, %arg2: memref<32x8xf32, #tpu.memory_space<vmem>>, %arg3: memref<32x32xf32, #tpu.memory_space<vmem>>, %arg4: memref<1x32xf32, #tpu.memory_space<vmem>>, %arg5: memref<3x96x32xf32, #tpu.memory_space<vmem>>, %arg6: memref<3x1x96xf32, #tpu.memory_space<vmem>>, %arg7: memref<3x32x32xf32, #tpu.memory_space<vmem>>, %arg8: memref<3x1x32xf32, #tpu.memory_space<vmem>>, %arg9: memref<8x32xf32, #tpu.memory_space<vmem>>, %arg10: memref<1x8xf32, #tpu.memory_space<vmem>>, %arg11: memref<32x32xf32, #tpu.memory_space<vmem>>, %arg12: memref<1x32xf32, #tpu.memory_space<vmem>>, %arg13: memref<2x8x128xf32, #tpu.memory_space<vmem>>) attributes {dimension_semantics = [], scalar_prefetch = 0 : i64, scratch_operands = 0 : i64, tpu.core_type = #tpu.core_type<tc>} {
    %c0 = arith.constant 0 : index
    %c0_0 = arith.constant 0 : index
    %c0_1 = arith.constant 0 : index
    %0 = vector.load %arg0[%c0, %c0_0, %c0_1] : memref<2x8x32xf32, #tpu.memory_space<vmem>>, vector<2x8x32xf32>
    %c0_2 = arith.constant 0 : index
    %c0_3 = arith.constant 0 : index
    %c0_4 = arith.constant 0 : index
    %1 = vector.load %arg1[%c0_2, %c0_3, %c0_4] : memref<2x8x8xf32, #tpu.memory_space<vmem>>, vector<2x8x8xf32>
    %c0_5 = arith.constant 0 : index
    %c0_6 = arith.constant 0 : index
    %2 = vector.load %arg2[%c0_5, %c0_6] : memref<32x8xf32, #tpu.memory_space<vmem>>, vector<32x8xf32>
    %3 = vector.shape_cast %0 : vector<2x8x32xf32> to vector<16x32xf32>
    %c0_7 = arith.constant 0 : index
    %c0_8 = arith.constant 0 : index
    %4 = vector.load %arg3[%c0_7, %c0_8] : memref<32x32xf32, #tpu.memory_space<vmem>>, vector<32x32xf32>
    %c0_9 = arith.constant 0 : index
    %c0_10 = arith.constant 0 : index
    %5 = vector.load %arg4[%c0_9, %c0_10] : memref<1x32xf32, #tpu.memory_space<vmem>>, vector<1x32xf32>
    %cst = arith.constant dense<0.000000e+00> : vector<16x32xf32>
    %6 = tpu.matmul %3, %4, %cst {dimension_numbers = #tpu.dot_dimension_numbers<[1], [1], [0], [0], [0, 0, 1, 0], [], []>} : vector<16x32xf32>, vector<32x32xf32>, vector<16x32xf32> -> vector<16x32xf32>
    %7 = vector.broadcast %5 : vector<1x32xf32> to vector<16x32xf32>
    %8 = arith.addf %6, %7 : vector<16x32xf32>
    %9 = vector.shape_cast %8 : vector<16x32xf32> to vector<2x8x32xf32>
    %c0_11 = arith.constant 0 : index
    %c0_12 = arith.constant 0 : index
    %c0_13 = arith.constant 0 : index
    %10 = vector.load %arg5[%c0_11, %c0_12, %c0_13] : memref<3x96x32xf32, #tpu.memory_space<vmem>>, vector<1x96x32xf32>
    %11 = vector.shape_cast %10 : vector<1x96x32xf32> to vector<96x32xf32>
    %c0_14 = arith.constant 0 : index
    %c0_15 = arith.constant 0 : index
    %c0_16 = arith.constant 0 : index
    %12 = vector.load %arg6[%c0_14, %c0_15, %c0_16] : memref<3x1x96xf32, #tpu.memory_space<vmem>>, vector<1x1x96xf32>
    %13 = vector.shape_cast %12 : vector<1x1x96xf32> to vector<1x96xf32>
    %c0_17 = arith.constant 0 : index
    %c0_18 = arith.constant 0 : index
    %c0_19 = arith.constant 0 : index
    %14 = vector.load %arg7[%c0_17, %c0_18, %c0_19] : memref<3x32x32xf32, #tpu.memory_space<vmem>>, vector<1x32x32xf32>
    %15 = vector.shape_cast %14 : vector<1x32x32xf32> to vector<32x32xf32>
    %c0_20 = arith.constant 0 : index
    %c0_21 = arith.constant 0 : index
    %c0_22 = arith.constant 0 : index
    %16 = vector.load %arg8[%c0_20, %c0_21, %c0_22] : memref<3x1x32xf32, #tpu.memory_space<vmem>>, vector<1x1x32xf32>
    %17 = vector.shape_cast %16 : vector<1x1x32xf32> to vector<1x32xf32>
    %18 = vector.shape_cast %9 : vector<2x8x32xf32> to vector<16x32xf32>
    %cst_23 = arith.constant dense<0.000000e+00> : vector<16x96xf32>
    %19 = tpu.matmul %18, %11, %cst_23 {dimension_numbers = #tpu.dot_dimension_numbers<[1], [1], [0], [0], [0, 0, 1, 0], [], []>} : vector<16x32xf32>, vector<96x32xf32>, vector<16x96xf32> -> vector<16x96xf32>
    %20 = vector.broadcast %13 : vector<1x96xf32> to vector<16x96xf32>
    %21 = arith.addf %19, %20 : vector<16x96xf32>
    %22 = vector.extract_strided_slice %21 {offsets = [0, 0], sizes = [16, 32], strides = [1, 1]} : vector<16x96xf32> to vector<16x32xf32>
    %cst_24 = arith.constant 5.000000e-01 : f32
    %23 = vector.broadcast %cst_24 : f32 to vector<16x32xf32>
    %24 = arith.mulf %22, %23 : vector<16x32xf32>
    %25 = vector.shape_cast %24 : vector<16x32xf32> to vector<2x8x32xf32>
    %26 = vector.extract_strided_slice %21 {offsets = [0, 32], sizes = [16, 32], strides = [1, 1]} : vector<16x96xf32> to vector<16x32xf32>
    %27 = vector.shape_cast %26 : vector<16x32xf32> to vector<2x8x32xf32>
    %28 = vector.extract_strided_slice %21 {offsets = [0, 64], sizes = [16, 32], strides = [1, 1]} : vector<16x96xf32> to vector<16x32xf32>
    %29 = vector.shape_cast %28 : vector<16x32xf32> to vector<2x8x32xf32>
    %30 = vector.extract_strided_slice %25 {offsets = [0, 0, 0], sizes = [1, 8, 32], strides = [1, 1, 1]} : vector<2x8x32xf32> to vector<1x8x32xf32>
    %31 = vector.shape_cast %30 : vector<1x8x32xf32> to vector<8x32xf32>
    %32 = vector.shape_cast %31 : vector<8x32xf32> to vector<1x8x32xf32>
    %33 = vector.broadcast %32 : vector<1x8x32xf32> to vector<2x8x32xf32>
    %34 = arith.mulf %33, %27 : vector<2x8x32xf32>
    %35 = vector.shape_cast %34 : vector<2x8x32xf32> to vector<16x32xf32>
    %cst_25 = arith.constant dense<0.000000e+00> : vector<16x8xf32>
    %36 = tpu.matmul %35, %2, %cst_25 {dimension_numbers = #tpu.dot_dimension_numbers<[1], [0], [0], [1], [0, 0, 1, 1], [], []>} : vector<16x32xf32>, vector<32x8xf32>, vector<16x8xf32> -> vector<16x8xf32>
    %37 = vector.shape_cast %36 : vector<16x8xf32> to vector<2x8x8xf32>
    %cst_26 = arith.constant dense<0xFF800000> : vector<8x8xf32>
    %38 = vector.multi_reduction <maximumf>, %37, %cst_26 [0] : vector<2x8x8xf32> to vector<8x8xf32>
    %39 = vector.shape_cast %38 : vector<8x8xf32> to vector<1x8x8xf32>
    %40 = vector.broadcast %39 : vector<1x8x8xf32> to vector<2x8x8xf32>
    %41 = arith.subf %37, %40 : vector<2x8x8xf32>
    %42 = math.exp %41 : vector<2x8x8xf32>
    %cst_27 = arith.constant dense<0.000000e+00> : vector<8x8xf32>
    %43 = vector.multi_reduction <add>, %42, %cst_27 [0] : vector<2x8x8xf32> to vector<8x8xf32>
    %44 = vector.shape_cast %43 : vector<8x8xf32> to vector<1x8x8xf32>
    %45 = vector.broadcast %44 : vector<1x8x8xf32> to vector<2x8x8xf32>
    %46 = arith.divf %42, %45 : vector<2x8x8xf32>
    %47 = vector.shape_cast %46 : vector<2x8x8xf32> to vector<16x8xf32>
    %cst_28 = arith.constant dense<0.000000e+00> : vector<16x32xf32>
    %48 = tpu.matmul %47, %2, %cst_28 {dimension_numbers = #tpu.dot_dimension_numbers<[1], [1], [0], [0], [0, 0, 1, 0], [], []>} : vector<16x8xf32>, vector<32x8xf32>, vector<16x32xf32> -> vector<16x32xf32>
    %49 = vector.shape_cast %48 : vector<16x32xf32> to vector<2x8x32xf32>
    %50 = arith.mulf %49, %29 : vector<2x8x32xf32>
    %cst_29 = arith.constant dense<0.000000e+00> : vector<8x32xf32>
    %51 = vector.multi_reduction <add>, %50, %cst_29 [0] : vector<2x8x32xf32> to vector<8x32xf32>
    %52 = vector.shape_cast %51 : vector<8x32xf32> to vector<1x8x32xf32>
    %53 = vector.extract_strided_slice %25 {offsets = [1, 0, 0], sizes = [1, 8, 32], strides = [1, 1, 1]} : vector<2x8x32xf32> to vector<1x8x32xf32>
    %54 = vector.shape_cast %53 : vector<1x8x32xf32> to vector<8x32xf32>
    %55 = vector.shape_cast %54 : vector<8x32xf32> to vector<1x8x32xf32>
    %56 = vector.broadcast %55 : vector<1x8x32xf32> to vector<2x8x32xf32>
    %57 = arith.mulf %56, %27 : vector<2x8x32xf32>
    %58 = vector.shape_cast %57 : vector<2x8x32xf32> to vector<16x32xf32>
    %cst_30 = arith.constant dense<0.000000e+00> : vector<16x8xf32>
    %59 = tpu.matmul %58, %2, %cst_30 {dimension_numbers = #tpu.dot_dimension_numbers<[1], [0], [0], [1], [0, 0, 1, 1], [], []>} : vector<16x32xf32>, vector<32x8xf32>, vector<16x8xf32> -> vector<16x8xf32>
    %60 = vector.shape_cast %59 : vector<16x8xf32> to vector<2x8x8xf32>
    %cst_31 = arith.constant dense<0xFF800000> : vector<8x8xf32>
    %61 = vector.multi_reduction <maximumf>, %60, %cst_31 [0] : vector<2x8x8xf32> to vector<8x8xf32>
    %62 = vector.shape_cast %61 : vector<8x8xf32> to vector<1x8x8xf32>
    %63 = vector.broadcast %62 : vector<1x8x8xf32> to vector<2x8x8xf32>
    %64 = arith.subf %60, %63 : vector<2x8x8xf32>
    %65 = math.exp %64 : vector<2x8x8xf32>
    %cst_32 = arith.constant dense<0.000000e+00> : vector<8x8xf32>
    %66 = vector.multi_reduction <add>, %65, %cst_32 [0] : vector<2x8x8xf32> to vector<8x8xf32>
    %67 = vector.shape_cast %66 : vector<8x8xf32> to vector<1x8x8xf32>
    %68 = vector.broadcast %67 : vector<1x8x8xf32> to vector<2x8x8xf32>
    %69 = arith.divf %65, %68 : vector<2x8x8xf32>
    %70 = vector.shape_cast %69 : vector<2x8x8xf32> to vector<16x8xf32>
    %cst_33 = arith.constant dense<0.000000e+00> : vector<16x32xf32>
    %71 = tpu.matmul %70, %2, %cst_33 {dimension_numbers = #tpu.dot_dimension_numbers<[1], [1], [0], [0], [0, 0, 1, 0], [], []>} : vector<16x8xf32>, vector<32x8xf32>, vector<16x32xf32> -> vector<16x32xf32>
    %72 = vector.shape_cast %71 : vector<16x32xf32> to vector<2x8x32xf32>
    %73 = arith.mulf %72, %29 : vector<2x8x32xf32>
    %cst_34 = arith.constant dense<0.000000e+00> : vector<8x32xf32>
    %74 = vector.multi_reduction <add>, %73, %cst_34 [0] : vector<2x8x32xf32> to vector<8x32xf32>
    %75 = vector.shape_cast %74 : vector<8x32xf32> to vector<1x8x32xf32>
    %76 = tpu.concatenate %52, %75 in 0 : vector<1x8x32xf32>, vector<1x8x32xf32> -> vector<2x8x32xf32>
    %77 = vector.shape_cast %76 : vector<2x8x32xf32> to vector<16x32xf32>
    %cst_35 = arith.constant dense<0.000000e+00> : vector<16x32xf32>
    %78 = tpu.matmul %77, %15, %cst_35 {dimension_numbers = #tpu.dot_dimension_numbers<[1], [1], [0], [0], [0, 0, 1, 0], [], []>} : vector<16x32xf32>, vector<32x32xf32>, vector<16x32xf32> -> vector<16x32xf32>
    %79 = vector.broadcast %17 : vector<1x32xf32> to vector<16x32xf32>
    %80 = arith.addf %78, %79 : vector<16x32xf32>
    %81 = vector.shape_cast %80 : vector<16x32xf32> to vector<2x8x32xf32>
    "tpu.trace_start"() <{level = 10 : i32, message = "bnm,bmh->bnh"}> : () -> ()
    %cst_36 = arith.constant dense<0.000000e+00> : vector<2x8x32xf32>
    %82 = tpu.matmul %1, %81, %cst_36 {dimension_numbers = #tpu.dot_dimension_numbers<[2], [1], [1], [2], [0, 0, 0, 1, 1, 2], [0], [0]>} : vector<2x8x8xf32>, vector<2x8x32xf32>, vector<2x8x32xf32> -> vector<2x8x32xf32>
    "tpu.trace_stop"() : () -> ()
    %83 = arith.addf %9, %82 : vector<2x8x32xf32>
    %cst_37 = arith.constant dense<0.000000e+00> : vector<2x8xf32>
    %84 = vector.multi_reduction <add>, %83, %cst_37 [2] : vector<2x8x32xf32> to vector<2x8xf32>
    %85 = vector.shape_cast %84 : vector<2x8xf32> to vector<2x8x1xf32>
    %cst_38 = arith.constant 3.200000e+01 : f32
    %86 = vector.broadcast %cst_38 : f32 to vector<2x8x1xf32>
    %87 = arith.divf %85, %86 : vector<2x8x1xf32>
    %88 = vector.broadcast %87 : vector<2x8x1xf32> to vector<2x8x32xf32>
    %89 = arith.subf %83, %88 : vector<2x8x32xf32>
    %90 = arith.mulf %89, %89 : vector<2x8x32xf32>
    %cst_39 = arith.constant dense<0.000000e+00> : vector<2x8xf32>
    %91 = vector.multi_reduction <add>, %90, %cst_39 [2] : vector<2x8x32xf32> to vector<2x8xf32>
    %92 = vector.shape_cast %91 : vector<2x8xf32> to vector<2x8x1xf32>
    %cst_40 = arith.constant 3.200000e+01 : f32
    %93 = vector.broadcast %cst_40 : f32 to vector<2x8x1xf32>
    %94 = arith.divf %92, %93 : vector<2x8x1xf32>
    %cst_41 = arith.constant 9.99999974E-6 : f32
    %95 = vector.broadcast %cst_41 : f32 to vector<2x8x1xf32>
    %96 = arith.addf %94, %95 : vector<2x8x1xf32>
    %97 = math.rsqrt %96 : vector<2x8x1xf32>
    %98 = vector.broadcast %97 : vector<2x8x1xf32> to vector<2x8x32xf32>
    %99 = arith.mulf %89, %98 : vector<2x8x32xf32>
    %c1 = arith.constant 1 : index
    %c0_42 = arith.constant 0 : index
    %c0_43 = arith.constant 0 : index
    %100 = vector.load %arg5[%c1, %c0_42, %c0_43] : memref<3x96x32xf32, #tpu.memory_space<vmem>>, vector<1x96x32xf32>
    %101 = vector.shape_cast %100 : vector<1x96x32xf32> to vector<96x32xf32>
    %c1_44 = arith.constant 1 : index
    %c0_45 = arith.constant 0 : index
    %c0_46 = arith.constant 0 : index
    %102 = vector.load %arg6[%c1_44, %c0_45, %c0_46] : memref<3x1x96xf32, #tpu.memory_space<vmem>>, vector<1x1x96xf32>
    %103 = vector.shape_cast %102 : vector<1x1x96xf32> to vector<1x96xf32>
    %c1_47 = arith.constant 1 : index
    %c0_48 = arith.constant 0 : index
    %c0_49 = arith.constant 0 : index
    %104 = vector.load %arg7[%c1_47, %c0_48, %c0_49] : memref<3x32x32xf32, #tpu.memory_space<vmem>>, vector<1x32x32xf32>
    %105 = vector.shape_cast %104 : vector<1x32x32xf32> to vector<32x32xf32>
    %c1_50 = arith.constant 1 : index
    %c0_51 = arith.constant 0 : index
    %c0_52 = arith.constant 0 : index
    %106 = vector.load %arg8[%c1_50, %c0_51, %c0_52] : memref<3x1x32xf32, #tpu.memory_space<vmem>>, vector<1x1x32xf32>
    %107 = vector.shape_cast %106 : vector<1x1x32xf32> to vector<1x32xf32>
    %108 = vector.shape_cast %99 : vector<2x8x32xf32> to vector<16x32xf32>
    %cst_53 = arith.constant dense<0.000000e+00> : vector<16x96xf32>
    %109 = tpu.matmul %108, %101, %cst_53 {dimension_numbers = #tpu.dot_dimension_numbers<[1], [1], [0], [0], [0, 0, 1, 0], [], []>} : vector<16x32xf32>, vector<96x32xf32>, vector<16x96xf32> -> vector<16x96xf32>
    %110 = vector.broadcast %103 : vector<1x96xf32> to vector<16x96xf32>
    %111 = arith.addf %109, %110 : vector<16x96xf32>
    %112 = vector.extract_strided_slice %111 {offsets = [0, 0], sizes = [16, 32], strides = [1, 1]} : vector<16x96xf32> to vector<16x32xf32>
    %cst_54 = arith.constant 5.000000e-01 : f32
    %113 = vector.broadcast %cst_54 : f32 to vector<16x32xf32>
    %114 = arith.mulf %112, %113 : vector<16x32xf32>
    %115 = vector.shape_cast %114 : vector<16x32xf32> to vector<2x8x32xf32>
    %116 = vector.extract_strided_slice %111 {offsets = [0, 32], sizes = [16, 32], strides = [1, 1]} : vector<16x96xf32> to vector<16x32xf32>
    %117 = vector.shape_cast %116 : vector<16x32xf32> to vector<2x8x32xf32>
    %118 = vector.extract_strided_slice %111 {offsets = [0, 64], sizes = [16, 32], strides = [1, 1]} : vector<16x96xf32> to vector<16x32xf32>
    %119 = vector.shape_cast %118 : vector<16x32xf32> to vector<2x8x32xf32>
    %120 = vector.extract_strided_slice %115 {offsets = [0, 0, 0], sizes = [1, 8, 32], strides = [1, 1, 1]} : vector<2x8x32xf32> to vector<1x8x32xf32>
    %121 = vector.shape_cast %120 : vector<1x8x32xf32> to vector<8x32xf32>
    %122 = vector.shape_cast %121 : vector<8x32xf32> to vector<1x8x32xf32>
    %123 = vector.broadcast %122 : vector<1x8x32xf32> to vector<2x8x32xf32>
    %124 = arith.mulf %123, %117 : vector<2x8x32xf32>
    %125 = vector.shape_cast %124 : vector<2x8x32xf32> to vector<16x32xf32>
    %cst_55 = arith.constant dense<0.000000e+00> : vector<16x8xf32>
    %126 = tpu.matmul %125, %2, %cst_55 {dimension_numbers = #tpu.dot_dimension_numbers<[1], [0], [0], [1], [0, 0, 1, 1], [], []>} : vector<16x32xf32>, vector<32x8xf32>, vector<16x8xf32> -> vector<16x8xf32>
    %127 = vector.shape_cast %126 : vector<16x8xf32> to vector<2x8x8xf32>
    %cst_56 = arith.constant dense<0xFF800000> : vector<8x8xf32>
    %128 = vector.multi_reduction <maximumf>, %127, %cst_56 [0] : vector<2x8x8xf32> to vector<8x8xf32>
    %129 = vector.shape_cast %128 : vector<8x8xf32> to vector<1x8x8xf32>
    %130 = vector.broadcast %129 : vector<1x8x8xf32> to vector<2x8x8xf32>
    %131 = arith.subf %127, %130 : vector<2x8x8xf32>
    %132 = math.exp %131 : vector<2x8x8xf32>
    %cst_57 = arith.constant dense<0.000000e+00> : vector<8x8xf32>
    %133 = vector.multi_reduction <add>, %132, %cst_57 [0] : vector<2x8x8xf32> to vector<8x8xf32>
    %134 = vector.shape_cast %133 : vector<8x8xf32> to vector<1x8x8xf32>
    %135 = vector.broadcast %134 : vector<1x8x8xf32> to vector<2x8x8xf32>
    %136 = arith.divf %132, %135 : vector<2x8x8xf32>
    %137 = vector.shape_cast %136 : vector<2x8x8xf32> to vector<16x8xf32>
    %cst_58 = arith.constant dense<0.000000e+00> : vector<16x32xf32>
    %138 = tpu.matmul %137, %2, %cst_58 {dimension_numbers = #tpu.dot_dimension_numbers<[1], [1], [0], [0], [0, 0, 1, 0], [], []>} : vector<16x8xf32>, vector<32x8xf32>, vector<16x32xf32> -> vector<16x32xf32>
    %139 = vector.shape_cast %138 : vector<16x32xf32> to vector<2x8x32xf32>
    %140 = arith.mulf %139, %119 : vector<2x8x32xf32>
    %cst_59 = arith.constant dense<0.000000e+00> : vector<8x32xf32>
    %141 = vector.multi_reduction <add>, %140, %cst_59 [0] : vector<2x8x32xf32> to vector<8x32xf32>
    %142 = vector.shape_cast %141 : vector<8x32xf32> to vector<1x8x32xf32>
    %143 = vector.extract_strided_slice %115 {offsets = [1, 0, 0], sizes = [1, 8, 32], strides = [1, 1, 1]} : vector<2x8x32xf32> to vector<1x8x32xf32>
    %144 = vector.shape_cast %143 : vector<1x8x32xf32> to vector<8x32xf32>
    %145 = vector.shape_cast %144 : vector<8x32xf32> to vector<1x8x32xf32>
    %146 = vector.broadcast %145 : vector<1x8x32xf32> to vector<2x8x32xf32>
    %147 = arith.mulf %146, %117 : vector<2x8x32xf32>
    %148 = vector.shape_cast %147 : vector<2x8x32xf32> to vector<16x32xf32>
    %cst_60 = arith.constant dense<0.000000e+00> : vector<16x8xf32>
    %149 = tpu.matmul %148, %2, %cst_60 {dimension_numbers = #tpu.dot_dimension_numbers<[1], [0], [0], [1], [0, 0, 1, 1], [], []>} : vector<16x32xf32>, vector<32x8xf32>, vector<16x8xf32> -> vector<16x8xf32>
    %150 = vector.shape_cast %149 : vector<16x8xf32> to vector<2x8x8xf32>
    %cst_61 = arith.constant dense<0xFF800000> : vector<8x8xf32>
    %151 = vector.multi_reduction <maximumf>, %150, %cst_61 [0] : vector<2x8x8xf32> to vector<8x8xf32>
    %152 = vector.shape_cast %151 : vector<8x8xf32> to vector<1x8x8xf32>
    %153 = vector.broadcast %152 : vector<1x8x8xf32> to vector<2x8x8xf32>
    %154 = arith.subf %150, %153 : vector<2x8x8xf32>
    %155 = math.exp %154 : vector<2x8x8xf32>
    %cst_62 = arith.constant dense<0.000000e+00> : vector<8x8xf32>
    %156 = vector.multi_reduction <add>, %155, %cst_62 [0] : vector<2x8x8xf32> to vector<8x8xf32>
    %157 = vector.shape_cast %156 : vector<8x8xf32> to vector<1x8x8xf32>
    %158 = vector.broadcast %157 : vector<1x8x8xf32> to vector<2x8x8xf32>
    %159 = arith.divf %155, %158 : vector<2x8x8xf32>
    %160 = vector.shape_cast %159 : vector<2x8x8xf32> to vector<16x8xf32>
    %cst_63 = arith.constant dense<0.000000e+00> : vector<16x32xf32>
    %161 = tpu.matmul %160, %2, %cst_63 {dimension_numbers = #tpu.dot_dimension_numbers<[1], [1], [0], [0], [0, 0, 1, 0], [], []>} : vector<16x8xf32>, vector<32x8xf32>, vector<16x32xf32> -> vector<16x32xf32>
    %162 = vector.shape_cast %161 : vector<16x32xf32> to vector<2x8x32xf32>
    %163 = arith.mulf %162, %119 : vector<2x8x32xf32>
    %cst_64 = arith.constant dense<0.000000e+00> : vector<8x32xf32>
    %164 = vector.multi_reduction <add>, %163, %cst_64 [0] : vector<2x8x32xf32> to vector<8x32xf32>
    %165 = vector.shape_cast %164 : vector<8x32xf32> to vector<1x8x32xf32>
    %166 = tpu.concatenate %142, %165 in 0 : vector<1x8x32xf32>, vector<1x8x32xf32> -> vector<2x8x32xf32>
    %167 = vector.shape_cast %166 : vector<2x8x32xf32> to vector<16x32xf32>
    %cst_65 = arith.constant dense<0.000000e+00> : vector<16x32xf32>
    %168 = tpu.matmul %167, %105, %cst_65 {dimension_numbers = #tpu.dot_dimension_numbers<[1], [1], [0], [0], [0, 0, 1, 0], [], []>} : vector<16x32xf32>, vector<32x32xf32>, vector<16x32xf32> -> vector<16x32xf32>
    %169 = vector.broadcast %107 : vector<1x32xf32> to vector<16x32xf32>
    %170 = arith.addf %168, %169 : vector<16x32xf32>
    %171 = vector.shape_cast %170 : vector<16x32xf32> to vector<2x8x32xf32>
    "tpu.trace_start"() <{level = 10 : i32, message = "bnm,bmh->bnh"}> : () -> ()
    %cst_66 = arith.constant dense<0.000000e+00> : vector<2x8x32xf32>
    %172 = tpu.matmul %1, %171, %cst_66 {dimension_numbers = #tpu.dot_dimension_numbers<[2], [1], [1], [2], [0, 0, 0, 1, 1, 2], [0], [0]>} : vector<2x8x8xf32>, vector<2x8x32xf32>, vector<2x8x32xf32> -> vector<2x8x32xf32>
    "tpu.trace_stop"() : () -> ()
    %173 = arith.addf %99, %172 : vector<2x8x32xf32>
    %cst_67 = arith.constant dense<0.000000e+00> : vector<2x8xf32>
    %174 = vector.multi_reduction <add>, %173, %cst_67 [2] : vector<2x8x32xf32> to vector<2x8xf32>
    %175 = vector.shape_cast %174 : vector<2x8xf32> to vector<2x8x1xf32>
    %cst_68 = arith.constant 3.200000e+01 : f32
    %176 = vector.broadcast %cst_68 : f32 to vector<2x8x1xf32>
    %177 = arith.divf %175, %176 : vector<2x8x1xf32>
    %178 = vector.broadcast %177 : vector<2x8x1xf32> to vector<2x8x32xf32>
    %179 = arith.subf %173, %178 : vector<2x8x32xf32>
    %180 = arith.mulf %179, %179 : vector<2x8x32xf32>
    %cst_69 = arith.constant dense<0.000000e+00> : vector<2x8xf32>
    %181 = vector.multi_reduction <add>, %180, %cst_69 [2] : vector<2x8x32xf32> to vector<2x8xf32>
    %182 = vector.shape_cast %181 : vector<2x8xf32> to vector<2x8x1xf32>
    %cst_70 = arith.constant 3.200000e+01 : f32
    %183 = vector.broadcast %cst_70 : f32 to vector<2x8x1xf32>
    %184 = arith.divf %182, %183 : vector<2x8x1xf32>
    %cst_71 = arith.constant 9.99999974E-6 : f32
    %185 = vector.broadcast %cst_71 : f32 to vector<2x8x1xf32>
    %186 = arith.addf %184, %185 : vector<2x8x1xf32>
    %187 = math.rsqrt %186 : vector<2x8x1xf32>
    %188 = vector.broadcast %187 : vector<2x8x1xf32> to vector<2x8x32xf32>
    %189 = arith.mulf %179, %188 : vector<2x8x32xf32>
    %c2 = arith.constant 2 : index
    %c0_72 = arith.constant 0 : index
    %c0_73 = arith.constant 0 : index
    %190 = vector.load %arg5[%c2, %c0_72, %c0_73] : memref<3x96x32xf32, #tpu.memory_space<vmem>>, vector<1x96x32xf32>
    %191 = vector.shape_cast %190 : vector<1x96x32xf32> to vector<96x32xf32>
    %c2_74 = arith.constant 2 : index
    %c0_75 = arith.constant 0 : index
    %c0_76 = arith.constant 0 : index
    %192 = vector.load %arg6[%c2_74, %c0_75, %c0_76] : memref<3x1x96xf32, #tpu.memory_space<vmem>>, vector<1x1x96xf32>
    %193 = vector.shape_cast %192 : vector<1x1x96xf32> to vector<1x96xf32>
    %c2_77 = arith.constant 2 : index
    %c0_78 = arith.constant 0 : index
    %c0_79 = arith.constant 0 : index
    %194 = vector.load %arg7[%c2_77, %c0_78, %c0_79] : memref<3x32x32xf32, #tpu.memory_space<vmem>>, vector<1x32x32xf32>
    %195 = vector.shape_cast %194 : vector<1x32x32xf32> to vector<32x32xf32>
    %c2_80 = arith.constant 2 : index
    %c0_81 = arith.constant 0 : index
    %c0_82 = arith.constant 0 : index
    %196 = vector.load %arg8[%c2_80, %c0_81, %c0_82] : memref<3x1x32xf32, #tpu.memory_space<vmem>>, vector<1x1x32xf32>
    %197 = vector.shape_cast %196 : vector<1x1x32xf32> to vector<1x32xf32>
    %198 = vector.shape_cast %189 : vector<2x8x32xf32> to vector<16x32xf32>
    %cst_83 = arith.constant dense<0.000000e+00> : vector<16x96xf32>
    %199 = tpu.matmul %198, %191, %cst_83 {dimension_numbers = #tpu.dot_dimension_numbers<[1], [1], [0], [0], [0, 0, 1, 0], [], []>} : vector<16x32xf32>, vector<96x32xf32>, vector<16x96xf32> -> vector<16x96xf32>
    %200 = vector.broadcast %193 : vector<1x96xf32> to vector<16x96xf32>
    %201 = arith.addf %199, %200 : vector<16x96xf32>
    %202 = vector.extract_strided_slice %201 {offsets = [0, 0], sizes = [16, 32], strides = [1, 1]} : vector<16x96xf32> to vector<16x32xf32>
    %cst_84 = arith.constant 5.000000e-01 : f32
    %203 = vector.broadcast %cst_84 : f32 to vector<16x32xf32>
    %204 = arith.mulf %202, %203 : vector<16x32xf32>
    %205 = vector.shape_cast %204 : vector<16x32xf32> to vector<2x8x32xf32>
    %206 = vector.extract_strided_slice %201 {offsets = [0, 32], sizes = [16, 32], strides = [1, 1]} : vector<16x96xf32> to vector<16x32xf32>
    %207 = vector.shape_cast %206 : vector<16x32xf32> to vector<2x8x32xf32>
    %208 = vector.extract_strided_slice %201 {offsets = [0, 64], sizes = [16, 32], strides = [1, 1]} : vector<16x96xf32> to vector<16x32xf32>
    %209 = vector.shape_cast %208 : vector<16x32xf32> to vector<2x8x32xf32>
    %210 = vector.extract_strided_slice %205 {offsets = [0, 0, 0], sizes = [1, 8, 32], strides = [1, 1, 1]} : vector<2x8x32xf32> to vector<1x8x32xf32>
    %211 = vector.shape_cast %210 : vector<1x8x32xf32> to vector<8x32xf32>
    %212 = vector.shape_cast %211 : vector<8x32xf32> to vector<1x8x32xf32>
    %213 = vector.broadcast %212 : vector<1x8x32xf32> to vector<2x8x32xf32>
    %214 = arith.mulf %213, %207 : vector<2x8x32xf32>
    %215 = vector.shape_cast %214 : vector<2x8x32xf32> to vector<16x32xf32>
    %cst_85 = arith.constant dense<0.000000e+00> : vector<16x8xf32>
    %216 = tpu.matmul %215, %2, %cst_85 {dimension_numbers = #tpu.dot_dimension_numbers<[1], [0], [0], [1], [0, 0, 1, 1], [], []>} : vector<16x32xf32>, vector<32x8xf32>, vector<16x8xf32> -> vector<16x8xf32>
    %217 = vector.shape_cast %216 : vector<16x8xf32> to vector<2x8x8xf32>
    %cst_86 = arith.constant dense<0xFF800000> : vector<8x8xf32>
    %218 = vector.multi_reduction <maximumf>, %217, %cst_86 [0] : vector<2x8x8xf32> to vector<8x8xf32>
    %219 = vector.shape_cast %218 : vector<8x8xf32> to vector<1x8x8xf32>
    %220 = vector.broadcast %219 : vector<1x8x8xf32> to vector<2x8x8xf32>
    %221 = arith.subf %217, %220 : vector<2x8x8xf32>
    %222 = math.exp %221 : vector<2x8x8xf32>
    %cst_87 = arith.constant dense<0.000000e+00> : vector<8x8xf32>
    %223 = vector.multi_reduction <add>, %222, %cst_87 [0] : vector<2x8x8xf32> to vector<8x8xf32>
    %224 = vector.shape_cast %223 : vector<8x8xf32> to vector<1x8x8xf32>
    %225 = vector.broadcast %224 : vector<1x8x8xf32> to vector<2x8x8xf32>
    %226 = arith.divf %222, %225 : vector<2x8x8xf32>
    %227 = vector.shape_cast %226 : vector<2x8x8xf32> to vector<16x8xf32>
    %cst_88 = arith.constant dense<0.000000e+00> : vector<16x32xf32>
    %228 = tpu.matmul %227, %2, %cst_88 {dimension_numbers = #tpu.dot_dimension_numbers<[1], [1], [0], [0], [0, 0, 1, 0], [], []>} : vector<16x8xf32>, vector<32x8xf32>, vector<16x32xf32> -> vector<16x32xf32>
    %229 = vector.shape_cast %228 : vector<16x32xf32> to vector<2x8x32xf32>
    %230 = arith.mulf %229, %209 : vector<2x8x32xf32>
    %cst_89 = arith.constant dense<0.000000e+00> : vector<8x32xf32>
    %231 = vector.multi_reduction <add>, %230, %cst_89 [0] : vector<2x8x32xf32> to vector<8x32xf32>
    %232 = vector.shape_cast %231 : vector<8x32xf32> to vector<1x8x32xf32>
    %233 = vector.extract_strided_slice %205 {offsets = [1, 0, 0], sizes = [1, 8, 32], strides = [1, 1, 1]} : vector<2x8x32xf32> to vector<1x8x32xf32>
    %234 = vector.shape_cast %233 : vector<1x8x32xf32> to vector<8x32xf32>
    %235 = vector.shape_cast %234 : vector<8x32xf32> to vector<1x8x32xf32>
    %236 = vector.broadcast %235 : vector<1x8x32xf32> to vector<2x8x32xf32>
    %237 = arith.mulf %236, %207 : vector<2x8x32xf32>
    %238 = vector.shape_cast %237 : vector<2x8x32xf32> to vector<16x32xf32>
    %cst_90 = arith.constant dense<0.000000e+00> : vector<16x8xf32>
    %239 = tpu.matmul %238, %2, %cst_90 {dimension_numbers = #tpu.dot_dimension_numbers<[1], [0], [0], [1], [0, 0, 1, 1], [], []>} : vector<16x32xf32>, vector<32x8xf32>, vector<16x8xf32> -> vector<16x8xf32>
    %240 = vector.shape_cast %239 : vector<16x8xf32> to vector<2x8x8xf32>
    %cst_91 = arith.constant dense<0xFF800000> : vector<8x8xf32>
    %241 = vector.multi_reduction <maximumf>, %240, %cst_91 [0] : vector<2x8x8xf32> to vector<8x8xf32>
    %242 = vector.shape_cast %241 : vector<8x8xf32> to vector<1x8x8xf32>
    %243 = vector.broadcast %242 : vector<1x8x8xf32> to vector<2x8x8xf32>
    %244 = arith.subf %240, %243 : vector<2x8x8xf32>
    %245 = math.exp %244 : vector<2x8x8xf32>
    %cst_92 = arith.constant dense<0.000000e+00> : vector<8x8xf32>
    %246 = vector.multi_reduction <add>, %245, %cst_92 [0] : vector<2x8x8xf32> to vector<8x8xf32>
    %247 = vector.shape_cast %246 : vector<8x8xf32> to vector<1x8x8xf32>
    %248 = vector.broadcast %247 : vector<1x8x8xf32> to vector<2x8x8xf32>
    %249 = arith.divf %245, %248 : vector<2x8x8xf32>
    %250 = vector.shape_cast %249 : vector<2x8x8xf32> to vector<16x8xf32>
    %cst_93 = arith.constant dense<0.000000e+00> : vector<16x32xf32>
    %251 = tpu.matmul %250, %2, %cst_93 {dimension_numbers = #tpu.dot_dimension_numbers<[1], [1], [0], [0], [0, 0, 1, 0], [], []>} : vector<16x8xf32>, vector<32x8xf32>, vector<16x32xf32> -> vector<16x32xf32>
    %252 = vector.shape_cast %251 : vector<16x32xf32> to vector<2x8x32xf32>
    %253 = arith.mulf %252, %209 : vector<2x8x32xf32>
    %cst_94 = arith.constant dense<0.000000e+00> : vector<8x32xf32>
    %254 = vector.multi_reduction <add>, %253, %cst_94 [0] : vector<2x8x32xf32> to vector<8x32xf32>
    %255 = vector.shape_cast %254 : vector<8x32xf32> to vector<1x8x32xf32>
    %256 = tpu.concatenate %232, %255 in 0 : vector<1x8x32xf32>, vector<1x8x32xf32> -> vector<2x8x32xf32>
    %257 = vector.shape_cast %256 : vector<2x8x32xf32> to vector<16x32xf32>
    %cst_95 = arith.constant dense<0.000000e+00> : vector<16x32xf32>
    %258 = tpu.matmul %257, %195, %cst_95 {dimension_numbers = #tpu.dot_dimension_numbers<[1], [1], [0], [0], [0, 0, 1, 0], [], []>} : vector<16x32xf32>, vector<32x32xf32>, vector<16x32xf32> -> vector<16x32xf32>
    %259 = vector.broadcast %197 : vector<1x32xf32> to vector<16x32xf32>
    %260 = arith.addf %258, %259 : vector<16x32xf32>
    %261 = vector.shape_cast %260 : vector<16x32xf32> to vector<2x8x32xf32>
    "tpu.trace_start"() <{level = 10 : i32, message = "bnm,bmh->bnh"}> : () -> ()
    %cst_96 = arith.constant dense<0.000000e+00> : vector<2x8x32xf32>
    %262 = tpu.matmul %1, %261, %cst_96 {dimension_numbers = #tpu.dot_dimension_numbers<[2], [1], [1], [2], [0, 0, 0, 1, 1, 2], [0], [0]>} : vector<2x8x8xf32>, vector<2x8x32xf32>, vector<2x8x32xf32> -> vector<2x8x32xf32>
    "tpu.trace_stop"() : () -> ()
    %263 = arith.addf %189, %262 : vector<2x8x32xf32>
    %cst_97 = arith.constant dense<0.000000e+00> : vector<2x8xf32>
    %264 = vector.multi_reduction <add>, %263, %cst_97 [2] : vector<2x8x32xf32> to vector<2x8xf32>
    %265 = vector.shape_cast %264 : vector<2x8xf32> to vector<2x8x1xf32>
    %cst_98 = arith.constant 3.200000e+01 : f32
    %266 = vector.broadcast %cst_98 : f32 to vector<2x8x1xf32>
    %267 = arith.divf %265, %266 : vector<2x8x1xf32>
    %268 = vector.broadcast %267 : vector<2x8x1xf32> to vector<2x8x32xf32>
    %269 = arith.subf %263, %268 : vector<2x8x32xf32>
    %270 = arith.mulf %269, %269 : vector<2x8x32xf32>
    %cst_99 = arith.constant dense<0.000000e+00> : vector<2x8xf32>
    %271 = vector.multi_reduction <add>, %270, %cst_99 [2] : vector<2x8x32xf32> to vector<2x8xf32>
    %272 = vector.shape_cast %271 : vector<2x8xf32> to vector<2x8x1xf32>
    %cst_100 = arith.constant 3.200000e+01 : f32
    %273 = vector.broadcast %cst_100 : f32 to vector<2x8x1xf32>
    %274 = arith.divf %272, %273 : vector<2x8x1xf32>
    %cst_101 = arith.constant 9.99999974E-6 : f32
    %275 = vector.broadcast %cst_101 : f32 to vector<2x8x1xf32>
    %276 = arith.addf %274, %275 : vector<2x8x1xf32>
    %277 = math.rsqrt %276 : vector<2x8x1xf32>
    %278 = vector.broadcast %277 : vector<2x8x1xf32> to vector<2x8x32xf32>
    %279 = arith.mulf %269, %278 : vector<2x8x32xf32>
    %c0_102 = arith.constant 0 : index
    %c0_103 = arith.constant 0 : index
    %280 = vector.load %arg9[%c0_102, %c0_103] : memref<8x32xf32, #tpu.memory_space<vmem>>, vector<8x32xf32>
    %281 = vector.shape_cast %279 : vector<2x8x32xf32> to vector<16x32xf32>
    %c0_104 = arith.constant 0 : index
    %c0_105 = arith.constant 0 : index
    %282 = vector.load %arg10[%c0_104, %c0_105] : memref<1x8xf32, #tpu.memory_space<vmem>>, vector<1x8xf32>
    %cst_106 = arith.constant dense<0.000000e+00> : vector<16x8xf32>
    %283 = tpu.matmul %281, %280, %cst_106 {dimension_numbers = #tpu.dot_dimension_numbers<[1], [1], [0], [0], [0, 0, 1, 0], [], []>} : vector<16x32xf32>, vector<8x32xf32>, vector<16x8xf32> -> vector<16x8xf32>
    %284 = vector.broadcast %282 : vector<1x8xf32> to vector<16x8xf32>
    %285 = arith.addf %283, %284 : vector<16x8xf32>
    %286 = vector.shape_cast %285 : vector<16x8xf32> to vector<2x8x8xf32>
    %287 = vector.extract_strided_slice %286 {offsets = [0, 0, 0], sizes = [2, 8, 6], strides = [1, 1, 1]} : vector<2x8x8xf32> to vector<2x8x6xf32>
    %288 = vector.extract_strided_slice %286 {offsets = [0, 0, 6], sizes = [2, 8, 1], strides = [1, 1, 1]} : vector<2x8x8xf32> to vector<2x8x1xf32>
    %289 = vector.extract_strided_slice %280 {offsets = [7, 0], sizes = [1, 32], strides = [1, 1]} : vector<8x32xf32> to vector<1x32xf32>
    %290 = vector.shape_cast %289 : vector<1x32xf32> to vector<1x1x32xf32>
    %291 = vector.shape_cast %290 : vector<1x1x32xf32> to vector<1x1x32xf32>
    %292 = vector.broadcast %291 : vector<1x1x32xf32> to vector<2x1x32xf32>
    "tpu.trace_start"() <{level = 10 : i32, message = "bxh,bnh->bxn"}> : () -> ()
    %cst_107 = arith.constant dense<0.000000e+00> : vector<2x1x8xf32>
    %293 = tpu.matmul %292, %279, %cst_107 {dimension_numbers = #tpu.dot_dimension_numbers<[2], [2], [1], [1], [0, 0, 0, 1, 1, 1], [0], [0]>} : vector<2x1x32xf32>, vector<2x8x32xf32>, vector<2x1x8xf32> -> vector<2x1x8xf32>
    "tpu.trace_stop"() : () -> ()
    %294 = vector.broadcast %288 : vector<2x8x1xf32> to vector<2x8x8xf32>
    %295 = vector.broadcast %293 : vector<2x1x8xf32> to vector<2x8x8xf32>
    %296 = arith.addf %294, %295 : vector<2x8x8xf32>
    %cst_108 = arith.constant dense<0.000000e+00> : vector<2x32xf32>
    %297 = vector.multi_reduction <add>, %279, %cst_108 [1] : vector<2x8x32xf32> to vector<2x32xf32>
    %cst_109 = arith.constant 8.000000e+00 : f32
    %298 = vector.broadcast %cst_109 : f32 to vector<2x32xf32>
    %299 = arith.divf %297, %298 : vector<2x32xf32>
    %c0_110 = arith.constant 0 : index
    %c0_111 = arith.constant 0 : index
    %300 = vector.load %arg11[%c0_110, %c0_111] : memref<32x32xf32, #tpu.memory_space<vmem>>, vector<32x32xf32>
    %c0_112 = arith.constant 0 : index
    %c0_113 = arith.constant 0 : index
    %301 = vector.load %arg12[%c0_112, %c0_113] : memref<1x32xf32, #tpu.memory_space<vmem>>, vector<1x32xf32>
    %cst_114 = arith.constant dense<0.000000e+00> : vector<2x32xf32>
    %302 = tpu.matmul %299, %300, %cst_114 {dimension_numbers = #tpu.dot_dimension_numbers<[1], [1], [0], [0], [0, 0, 1, 0], [], []>} : vector<2x32xf32>, vector<32x32xf32>, vector<2x32xf32> -> vector<2x32xf32>
    %303 = vector.broadcast %301 : vector<1x32xf32> to vector<2x32xf32>
    %304 = arith.addf %302, %303 : vector<2x32xf32>
    %305 = vector.shape_cast %304 : vector<2x32xf32> to vector<2x1x32xf32>
    %306 = vector.shape_cast %305 : vector<2x1x32xf32> to vector<2x1x32xf32>
    %307 = vector.broadcast %306 : vector<2x1x32xf32> to vector<2x8x32xf32>
    %cst_115 = arith.constant 0.000000e+00 : f32
    %308 = vector.broadcast %cst_115 : f32 to vector<2x8x50xf32>
    %309 = tpu.concatenate %279, %287, %296, %307, %308 in 2 : vector<2x8x32xf32>, vector<2x8x6xf32>, vector<2x8x8xf32>, vector<2x8x32xf32>, vector<2x8x50xf32> -> vector<2x8x128xf32>
    %c0_116 = arith.constant 0 : index
    %c0_117 = arith.constant 0 : index
    %c0_118 = arith.constant 0 : index
    %310 = vector.load %arg13[%c0_116, %c0_117, %c0_118] : memref<2x8x128xf32, #tpu.memory_space<vmem>>, vector<2x8x128xf32>
    tpu.vector_store %arg13[%c0_116, %c0_117, %c0_118], %309 {strides = array<i32>} : memref<2x8x128xf32, #tpu.memory_space<vmem>>, vector<2x8x128xf32>,
    return
  }
}

</mosaic_0001>

<llo_original>
// kernel: knowledge_graph_gnn.1
$region0: #{knowledge_graph_gnn.1}
  #allocation0 [shape = 'u32[]', space=smem, size = 0x4, offset = 0x4, fixed_abs, tag = 'smem constant byte address 0x4 - core index']
  #allocation1 [shape = 'u32[144,128]{1,0:T(1,128)}', space=vmem, size = 0x12000, scoped, tag = 'internal scratch']
  %s0 = inlined_call_operand.vmem [shape: f32[2,8,32], index: 0, kind: input, shape index: {}]
  %s1 = inlined_call_operand.vmem [shape: f32[2,8,8], index: 1, kind: input, shape index: {}]
  %s2 = inlined_call_operand.vmem [shape: f32[32,8], index: 2, kind: input, shape index: {}]
  %s3 = inlined_call_operand.vmem [shape: f32[32,32], index: 3, kind: input, shape index: {}]
  %s4 = inlined_call_operand.vmem [shape: f32[1,32], index: 4, kind: input, shape index: {}]
  %s5 = inlined_call_operand.vmem [shape: f32[3,96,32], index: 5, kind: input, shape index: {}]
  %s6 = inlined_call_operand.vmem [shape: f32[3,1,96], index: 6, kind: input, shape index: {}]
  %s7 = inlined_call_operand.vmem [shape: f32[3,32,32], index: 7, kind: input, shape index: {}]
  %s8 = inlined_call_operand.vmem [shape: f32[3,1,32], index: 8, kind: input, shape index: {}]
  %s9 = inlined_call_operand.vmem [shape: f32[8,32], index: 9, kind: input, shape index: {}]
  %s10 = inlined_call_operand.vmem [shape: f32[1,8], index: 10, kind: input, shape index: {}]
  %s11 = inlined_call_operand.vmem [shape: f32[32,32], index: 11, kind: input, shape index: {}]
  %s12 = inlined_call_operand.vmem [shape: f32[1,32], index: 12, kind: input, shape index: {}]
  %s13 = inlined_call_operand.vmem [shape: f32[2,8,128], index: 13, kind: output, shape index: {}]
  %s14 = sld [smem:[#allocation0]]
  $region62: #{knowledge_graph_gnn.1} parent=0
    _
  %s16 = ssub.s32 1, %s14
  %s17 = scalar_select 0, %s16, %s14
  // Predicated region
  $region2: #{knowledge_graph_gnn.1} parent=0 // pred_check
    _
  $region3: #{knowledge_graph_gnn.1} parent=0 // pred_check_branch
    %19 = sbr.rel (0) target = $region5
  $region4: #{knowledge_graph_gnn.1} parent=0 // pred_region
    _
  $region5: #{knowledge_graph_gnn.1} parent=0 // pred_fallthru
    _
  // Predicated region
  $region6: #{knowledge_graph_gnn.1} parent=0 // pred_check
    _
  $region7: #{knowledge_graph_gnn.1} parent=0 // pred_check_branch
    %21 = sbr.rel (0) target = $region9
  $region8: #{knowledge_graph_gnn.1} parent=0 // pred_region
    _
  $region9: #{knowledge_graph_gnn.1} parent=0 // pred_fallthru
    _
  // Predicated region
  $region10: #{knowledge_graph_gnn.1} parent=0 // pred_check
    _
  $region11: #{knowledge_graph_gnn.1} parent=0 // pred_check_branch
    %23 = sbr.rel (0) target = $region13
  $region12: #{knowledge_graph_gnn.1} parent=0 // pred_region
    _
  $region13: #{knowledge_graph_gnn.1} parent=0 // pred_fallthru
    _
  // Predicated region
  $region14: #{knowledge_graph_gnn.1} parent=0 // pred_check
    _
  $region15: #{knowledge_graph_gnn.1} parent=0 // pred_check_branch
    %25 = sbr.rel (0) target = $region17
  $region16: #{knowledge_graph_gnn.1} parent=0 // pred_region
    _
  $region17: #{knowledge_graph_gnn.1} parent=0 // pred_fallthru
    _
  // Predicated region
  $region18: #{knowledge_graph_gnn.1} parent=0 // pred_check
    _
  $region19: #{knowledge_graph_gnn.1} parent=0 // pred_check_branch
    %27 = sbr.rel (0) target = $region21
  $region20: #{knowledge_graph_gnn.1} parent=0 // pred_region
    _
  $region21: #{knowledge_graph_gnn.1} parent=0 // pred_fallthru
    _
  // Predicated region
  $region22: #{knowledge_graph_gnn.1} parent=0 // pred_check
    _
  $region23: #{knowledge_graph_gnn.1} parent=0 // pred_check_branch
    %29 = sbr.rel (0) target = $region25
  $region24: #{knowledge_graph_gnn.1} parent=0 // pred_region
    _
  $region25: #{knowledge_graph_gnn.1} parent=0 // pred_fallthru
    _
  // Predicated region
  $region26: #{knowledge_graph_gnn.1} parent=0 // pred_check
    _
  $region27: #{knowledge_graph_gnn.1} parent=0 // pred_check_branch
    %31 = sbr.rel (0) target = $region29
  $region28: #{knowledge_graph_gnn.1} parent=0 // pred_region
    _
  $region29: #{knowledge_graph_gnn.1} parent=0 // pred_fallthru
    _
  // Predicated region
  $region30: #{knowledge_graph_gnn.1} parent=0 // pred_check
    _
  $region31: #{knowledge_graph_gnn.1} parent=0 // pred_check_branch
    %33 = sbr.rel (0) target = $region33
  $region32: #{knowledge_graph_gnn.1} parent=0 // pred_region
    _
  $region33: #{knowledge_graph_gnn.1} parent=0 // pred_fallthru
    _
  // Predicated region
  $region34: #{knowledge_graph_gnn.1} parent=0 // pred_check
    _
  $region35: #{knowledge_graph_gnn.1} parent=0 // pred_check_branch
    %35 = sbr.rel (0) target = $region37
  $region36: #{knowledge_graph_gnn.1} parent=0 // pred_region
    _
  $region37: #{knowledge_graph_gnn.1} parent=0 // pred_fallthru
    _
  // Predicated region
  $region38: #{knowledge_graph_gnn.1} parent=0 // pred_check
    _
  $region39: #{knowledge_graph_gnn.1} parent=0 // pred_check_branch
    %37 = sbr.rel (0) target = $region41
  $region40: #{knowledge_graph_gnn.1} parent=0 // pred_region
    _
  $region41: #{knowledge_graph_gnn.1} parent=0 // pred_fallthru
    _
  // Predicated region
  $region42: #{knowledge_graph_gnn.1} parent=0 // pred_check
    _
  $region43: #{knowledge_graph_gnn.1} parent=0 // pred_check_branch
    %39 = sbr.rel (0) target = $region45
  $region44: #{knowledge_graph_gnn.1} parent=0 // pred_region
    _
  $region45: #{knowledge_graph_gnn.1} parent=0 // pred_fallthru
    _
  // Predicated region
  $region46: #{knowledge_graph_gnn.1} parent=0 // pred_check
    _
  $region47: #{knowledge_graph_gnn.1} parent=0 // pred_check_branch
    %41 = sbr.rel (0) target = $region49
  $region48: #{knowledge_graph_gnn.1} parent=0 // pred_region
    _
  $region49: #{knowledge_graph_gnn.1} parent=0 // pred_fallthru
    _
  // Predicated region
  $region50: #{knowledge_graph_gnn.1} parent=0 // pred_check
    _
  $region51: #{knowledge_graph_gnn.1} parent=0 // pred_check_branch
    %43 = sbr.rel (0) target = $region53
  $region52: #{knowledge_graph_gnn.1} parent=0 // pred_region
    _
  $region53: #{knowledge_graph_gnn.1} parent=0 // pred_fallthru
    _
  %v44 = vld [vmem:[%s0] sm:$0xff]
  %v45 = vld [vmem:[%s0 + $0x8] sm:$0xff]
  %v46 = vld [vmem:[%s1] sm:$0xff]
  %v47 = vld [vmem:[%s1 + $0x8] sm:$0xff]
  %v48 = vld [vmem:[%s2] sm:$0xff]
  %v49 = vld [vmem:[%s2 + $0x8] sm:$0xff]
  %v50 = vld [vmem:[%s2 + $0x10] sm:$0xff]
  %v51 = vld [vmem:[%s2 + $0x18] sm:$0xff]
  %v52 = vld [vmem:[%s3] sm:$0xff]
  %v53 = vld [vmem:[%s3 + $0x8] sm:$0xff]
  %v54 = vld [vmem:[%s3 + $0x10] sm:$0xff]
  %v55 = vld [vmem:[%s3 + $0x18] sm:$0xff]
  %v56 = vld [vmem:[%s4] sm:$0x1]
  %v58 = vlaneseq
  %v59 = vshrl.u32 %v58, 7
  %v60 = vsub.s32 0, %v59
  %v61 = vrot.slane %v56, %v60
  %vm63 = vcmask 261120
  %v65 = vsel %vm63, %v44, 0
  %v68 = vsel %vm63, %v45, 0
  %v71 = vsel %vm63, %v52, 0
  %v74 = vsel %vm63, %v53, 0
  %v77 = vsel %vm63, %v54, 0
  %v80 = vsel %vm63, %v55, 0
  %82 = vmatprep.subr.mxu0 0.0
  %83 = vmatpush1.xpose.msra.mxu0 %v71
  %84 = vmatprep.subr.mxu0 0.0
  %85 = vmatpush1.xpose.msra.mxu0 %v74
  %86 = vmatprep.subr.mxu0 0.0
  %87 = vmatpush1.xpose.msra.mxu0 %v77
  %88 = vmatprep.subr.mxu0 0.0
  %89 = vmatpush1.xpose.msra.mxu0 %v80
  %90 = vmatprep.subr.mxu0 0.0
  %91 = vmatpush1.xpose.msra.mxu0 0.0
  %92 = vmatprep.subr.mxu0 0.0
  %93 = vmatpush1.xpose.msra.mxu0 0.0
  %94 = vmatprep.subr.mxu0 0.0
  %95 = vmatpush1.xpose.msra.mxu0 0.0
  %96 = vmatprep.subr.mxu0 0.0
  %97 = vmatpush1.xpose.msra.mxu0 0.0
  %98 = vmatprep.subr.mxu0 0.0
  %99 = vmatpush1.xpose.msra.mxu0 0.0
  %100 = vmatprep.subr.mxu0 0.0
  %101 = vmatpush1.xpose.msra.mxu0 0.0
  %102 = vmatprep.subr.mxu0 0.0
  %103 = vmatpush1.xpose.msra.mxu0 0.0
  %104 = vmatprep.subr.mxu0 0.0
  %105 = vmatpush1.xpose.msra.mxu0 0.0
  %106 = vmatprep.subr.mxu0 0.0
  %107 = vmatpush1.xpose.msra.mxu0 0.0
  %108 = vmatprep.subr.mxu0 0.0
  %109 = vmatpush1.xpose.msra.mxu0 0.0
  %110 = vmatprep.subr.mxu0 0.0
  %111 = vmatpush1.xpose.msra.mxu0 0.0
  %112 = vmatprep.subr.mxu0 0.0
  %113 = vmatpush1.xpose.msra.mxu0 0.0
  %114 = vmatprep.subr.mxu0 0.0
  %115 = vmatpush1.xpose.msra.mxu0 0.0
  %116 = vmatprep.subr.mxu0 0.0
  %117 = vmatpush1.xpose.msra.mxu0 0.0
  %118 = vmatprep.subr.mxu0 0.0
  %119 = vmatpush1.xpose.msra.mxu0 0.0
  %120 = vmatprep.subr.mxu0 0.0
  %121 = vmatpush1.xpose.msra.mxu0 0.0
  %122 = vmatprep.subr.mxu0 0.0
  %123 = vmatpush1.xpose.msra.mxu0 0.0
  %124 = vmatprep.subr.mxu0 0.0
  %125 = vmatpush1.xpose.msra.mxu0 0.0
  %126 = vmatprep.subr.mxu0 0.0
  %127 = vmatpush1.xpose.msra.mxu0 0.0
  %128 = vmatprep.subr.mxu0 0.0
  %129 = vmatpush1.xpose.msra.mxu0 0.0
  %130 = vmatprep.subr.mxu0 0.0
  %131 = vmatpush1.xpose.msra.mxu0 0.0
  %132 = vmatprep.subr.mxu0 0.0
  %133 = vmatpush1.xpose.msra.mxu0 0.0
  %134 = vmatprep.subr.mxu0 0.0
  %135 = vmatpush1.xpose.msra.mxu0 0.0
  %136 = vmatprep.subr.mxu0 0.0
  %137 = vmatpush1.xpose.msra.mxu0 0.0
  %138 = vmatprep.subr.mxu0 0.0
  %139 = vmatpush1.xpose.msra.mxu0 0.0
  %140 = vmatprep.subr.mxu0 0.0
  %141 = vmatpush1.xpose.msra.mxu0 0.0
  %142 = vmatprep.subr.mxu0 0.0
  %143 = vmatpush1.xpose.msra.mxu0 0.0
  %144 = vmatprep.subr.mxu0 0.0
  %145 = vmatpush1.xpose.msra.mxu0 0.0
  %146 = vmatprep.mubr.f32.mxu0 0.0
  %147 = vmatmul.mubr.f32.gmra.mrb[0].mxu0 %v65
  %v148 = vpop.f32.mrb[0].mxu0
  %v149 = vadd.f32 %v61, %v148
  %v150 = vpop.f32.mrb[0].mxu0
  %151 = vmatprep.mubr.f32.mxu0 0.0
  %152 = vmatmul.mubr.f32.gmra.mrb[0].mxu0 %v68
  %v153 = vpop.f32.mrb[0].mxu0
  %v154 = vadd.f32 %v61, %v153
  %v155 = vpop.f32.mrb[0].mxu0
  %156 = vdwg.mxu0
  %v157 = vld [vmem:[%s5] sm:$0xff]
  %v158 = vld [vmem:[%s5 + $0x8] sm:$0xff]
  %v159 = vld [vmem:[%s5 + $0x10] sm:$0xff]
  %v160 = vld [vmem:[%s5 + $0x18] sm:$0xff]
  %v161 = vld [vmem:[%s5 + $0x20] sm:$0xff]
  %v162 = vld [vmem:[%s5 + $0x28] sm:$0xff]
  %v163 = vld [vmem:[%s5 + $0x30] sm:$0xff]
  %v164 = vld [vmem:[%s5 + $0x38] sm:$0xff]
  %v165 = vld [vmem:[%s5 + $0x40] sm:$0xff]
  %v166 = vld [vmem:[%s5 + $0x48] sm:$0xff]
  %v167 = vld [vmem:[%s5 + $0x50] sm:$0xff]
  %v168 = vld [vmem:[%s5 + $0x58] sm:$0xff]
  %v169 = vld [vmem:[%s6] sm:$0x1]
  %v170 = vld [vmem:[%s7] sm:$0xff]
  %v171 = vld [vmem:[%s7 + $0x8] sm:$0xff]
  %v172 = vld [vmem:[%s7 + $0x10] sm:$0xff]
  %v173 = vld [vmem:[%s7 + $0x18] sm:$0xff]
  %v174 = vld [vmem:[%s8] sm:$0x1]
  %v176 = vlaneseq
  %v177 = vshrl.u32 %v176, 7
  %v178 = vsub.s32 0, %v177
  %v179 = vrot.slane %v169, %v178
  %v182 = vsel %vm63, %v149, 0
  %v185 = vsel %vm63, %v154, 0
  %v188 = vsel %vm63, %v157, 0
  %v191 = vsel %vm63, %v158, 0
  %v194 = vsel %vm63, %v159, 0
  %v197 = vsel %vm63, %v160, 0
  %v200 = vsel %vm63, %v161, 0
  %v203 = vsel %vm63, %v162, 0
  %v206 = vsel %vm63, %v163, 0
  %v209 = vsel %vm63, %v164, 0
  %v212 = vsel %vm63, %v165, 0
  %v215 = vsel %vm63, %v166, 0
  %v218 = vsel %vm63, %v167, 0
  %v221 = vsel %vm63, %v168, 0
  %223 = vmatprep.subr.mxu0 0.0
  %224 = vmatpush1.xpose.msra.mxu0 %v188
  %225 = vmatprep.subr.mxu0 0.0
  %226 = vmatpush1.xpose.msra.mxu0 %v191
  %227 = vmatprep.subr.mxu0 0.0
  %228 = vmatpush1.xpose.msra.mxu0 %v194
  %229 = vmatprep.subr.mxu0 0.0
  %230 = vmatpush1.xpose.msra.mxu0 %v197
  %231 = vmatprep.subr.mxu0 0.0
  %232 = vmatpush1.xpose.msra.mxu0 %v200
  %233 = vmatprep.subr.mxu0 0.0
  %234 = vmatpush1.xpose.msra.mxu0 %v203
  %235 = vmatprep.subr.mxu0 0.0
  %236 = vmatpush1.xpose.msra.mxu0 %v206
  %237 = vmatprep.subr.mxu0 0.0
  %238 = vmatpush1.xpose.msra.mxu0 %v209
  %239 = vmatprep.subr.mxu0 0.0
  %240 = vmatpush1.xpose.msra.mxu0 %v212
  %241 = vmatprep.subr.mxu0 0.0
  %242 = vmatpush1.xpose.msra.mxu0 %v215
  %243 = vmatprep.subr.mxu0 0.0
  %244 = vmatpush1.xpose.msra.mxu0 %v218
  %245 = vmatprep.subr.mxu0 0.0
  %246 = vmatpush1.xpose.msra.mxu0 %v221
  %247 = vmatprep.subr.mxu0 0.0
  %248 = vmatpush1.xpose.msra.mxu0 0.0
  %249 = vmatprep.subr.mxu0 0.0
  %250 = vmatpush1.xpose.msra.mxu0 0.0
  %251 = vmatprep.subr.mxu0 0.0
  %252 = vmatpush1.xpose.msra.mxu0 0.0
  %253 = vmatprep.subr.mxu0 0.0
  %254 = vmatpush1.xpose.msra.mxu0 0.0
  %255 = vmatprep.subr.mxu0 0.0
  %256 = vmatpush1.xpose.msra.mxu0 0.0
  %257 = vmatprep.subr.mxu0 0.0
  %258 = vmatpush1.xpose.msra.mxu0 0.0
  %259 = vmatprep.subr.mxu0 0.0
  %260 = vmatpush1.xpose.msra.mxu0 0.0
  %261 = vmatprep.subr.mxu0 0.0
  %262 = vmatpush1.xpose.msra.mxu0 0.0
  %263 = vmatprep.subr.mxu0 0.0
  %264 = vmatpush1.xpose.msra.mxu0 0.0
  %265 = vmatprep.subr.mxu0 0.0
  %266 = vmatpush1.xpose.msra.mxu0 0.0
  %267 = vmatprep.subr.mxu0 0.0
  %268 = vmatpush1.xpose.msra.mxu0 0.0
  %269 = vmatprep.subr.mxu0 0.0
  %270 = vmatpush1.xpose.msra.mxu0 0.0
  %271 = vmatprep.subr.mxu0 0.0
  %272 = vmatpush1.xpose.msra.mxu0 0.0
  %273 = vmatprep.subr.mxu0 0.0
  %274 = vmatpush1.xpose.msra.mxu0 0.0
  %275 = vmatprep.subr.mxu0 0.0
  %276 = vmatpush1.xpose.msra.mxu0 0.0
  %277 = vmatprep.subr.mxu0 0.0
  %278 = vmatpush1.xpose.msra.mxu0 0.0
  %279 = vmatprep.subr.mxu0 0.0
  %280 = vmatpush1.xpose.msra.mxu0 0.0
  %281 = vmatprep.subr.mxu0 0.0
  %282 = vmatpush1.xpose.msra.mxu0 0.0
  %283 = vmatprep.subr.mxu0 0.0
  %284 = vmatpush1.xpose.msra.mxu0 0.0
  %285 = vmatprep.subr.mxu0 0.0
  %286 = vmatpush1.xpose.msra.mxu0 0.0
  %287 = vmatprep.mubr.f32.mxu0 0.0
  %288 = vmatmul.mubr.f32.gmra.mrb[0].mxu0 %v182
  %v289 = vpop.f32.mrb[0].mxu0
  %v290 = vadd.f32 %v179, %v289
  %v291 = vpop.f32.mrb[0].mxu0
  %292 = vmatprep.mubr.f32.mxu0 0.0
  %293 = vmatmul.mubr.f32.gmra.mrb[0].mxu0 %v185
  %v294 = vpop.f32.mrb[0].mxu0
  %v295 = vadd.f32 %v179, %v294
  %v296 = vpop.f32.mrb[0].mxu0
  %297 = vdwg.mxu0
  %v298 = vmul.f32 %v290, 0.5
  %v299 = vmul.f32 %v295, 0.5
  %302 = vrot.lane.b32.xlu0 %v290, 96
  %v303 = vpop.permute.xlu0 %302
  %304 = vrot.lane.b32.xlu0 %v295, 96
  %v305 = vpop.permute.xlu0 %304
  %v308 = vmul.f32 %v298, %v303
  %v309 = vmul.f32 %v298, %v305
  %v311 = vsel %vm63, %v308, 0
  %v314 = vsel %vm63, %v309, 0
  %316 = vmatprep.subr.mxu0 0.0
  %317 = vmatpush1.msra.mxu0 %v48
  %318 = vmatprep.subr.mxu0 0.0
  %319 = vmatpush1.msra.mxu0 %v49
  %320 = vmatprep.subr.mxu0 0.0
  %321 = vmatpush1.msra.mxu0 %v50
  %322 = vmatprep.subr.mxu0 0.0
  %323 = vmatpush1.msra.mxu0 %v51
  %324 = vmatprep.subr.mxu0 0.0
  %325 = vmatpush1.msra.mxu0 0.0
  %326 = vmatprep.subr.mxu0 0.0
  %327 = vmatpush1.msra.mxu0 0.0
  %328 = vmatprep.subr.mxu0 0.0
  %329 = vmatpush1.msra.mxu0 0.0
  %330 = vmatprep.subr.mxu0 0.0
  %331 = vmatpush1.msra.mxu0 0.0
  %332 = vmatprep.subr.mxu0 0.0
  %333 = vmatpush1.msra.mxu0 0.0
  %334 = vmatprep.subr.mxu0 0.0
  %335 = vmatpush1.msra.mxu0 0.0
  %336 = vmatprep.subr.mxu0 0.0
  %337 = vmatpush1.msra.mxu0 0.0
  %338 = vmatprep.subr.mxu0 0.0
  %339 = vmatpush1.msra.mxu0 0.0
  %340 = vmatprep.subr.mxu0 0.0
  %341 = vmatpush1.msra.mxu0 0.0
  %342 = vmatprep.subr.mxu0 0.0
  %343 = vmatpush1.msra.mxu0 0.0
  %344 = vmatprep.subr.mxu0 0.0
  %345 = vmatpush1.msra.mxu0 0.0
  %346 = vmatprep.subr.mxu0 0.0
  %347 = vmatpush1.msra.mxu0 0.0
  %348 = vmatprep.subr.mxu0 0.0
  %349 = vmatpush1.msra.mxu0 0.0
  %350 = vmatprep.subr.mxu0 0.0
  %351 = vmatpush1.msra.mxu0 0.0
  %352 = vmatprep.subr.mxu0 0.0
  %353 = vmatpush1.msra.mxu0 0.0
  %354 = vmatprep.subr.mxu0 0.0
  %355 = vmatpush1.msra.mxu0 0.0
  %356 = vmatprep.subr.mxu0 0.0
  %357 = vmatpush1.msra.mxu0 0.0
  %358 = vmatprep.subr.mxu0 0.0
  %359 = vmatpush1.msra.mxu0 0.0
  %360 = vmatprep.subr.mxu0 0.0
  %361 = vmatpush1.msra.mxu0 0.0
  %362 = vmatprep.subr.mxu0 0.0
  %363 = vmatpush1.msra.mxu0 0.0
  %364 = vmatprep.subr.mxu0 0.0
  %365 = vmatpush1.msra.mxu0 0.0
  %366 = vmatprep.subr.mxu0 0.0
  %367 = vmatpush1.msra.mxu0 0.0
  %368 = vmatprep.subr.mxu0 0.0
  %369 = vmatpush1.msra.mxu0 0.0
  %370 = vmatprep.subr.mxu0 0.0
  %371 = vmatpush1.msra.mxu0 0.0
  %372 = vmatprep.subr.mxu0 0.0
  %373 = vmatpush1.msra.mxu0 0.0
  %374 = vmatprep.subr.mxu0 0.0
  %375 = vmatpush1.msra.mxu0 0.0
  %376 = vmatprep.subr.mxu0 0.0
  %377 = vmatpush1.msra.mxu0 0.0
  %378 = vmatprep.subr.mxu0 0.0
  %379 = vmatpush1.msra.mxu0 0.0
  %380 = vmatprep.mubr.f32.mxu0 0.0
  %381 = vmatmul.mubr.f32.gmra.mrb[0].mxu0 %v311
  %v382 = vpop.f32.mrb[0].mxu0
  %v383 = vadd.f32 0.0, %v382
  %v384 = vpop.f32.mrb[0].mxu0
  %385 = vmatprep.mubr.f32.mxu0 0.0
  %386 = vmatmul.mubr.f32.gmra.mrb[0].mxu0 %v314
  %v387 = vpop.f32.mrb[0].mxu0
  %v388 = vadd.f32 0.0, %v387
  %v389 = vpop.f32.mrb[0].mxu0
  %390 = vdwg.mxu0
  %vm391 = vcmask 64512
  %v392 = vsel %vm391, %v383, -inf
  %v393 = vsel %vm391, %v388, -inf
  %v394 = vmax.f32 %v392, %v393
  %v395 = vsub.f32 %v383, %v394
  %v396 = vsub.f32 %v388, %v394
  %v397 = vmul.f32 %v395, 1.442695
  %v398 = vpow.pop %v397
  %v399 = vmul.f32 %v396, 1.442695
  %v400 = vpow.pop %v399
  %v401 = vsel %vm391, %v398, 0.0
  %v402 = vsel %vm391, %v400, 0.0
  %v403 = vadd.f32 %v401, %v402
  %v404 = vrcp.pop %v403
  %v405 = vmul.f32 %v398, %v404
  %v406 = vmul.f32 %v400, %v404
  %v408 = vsel %vm391, %v405, 0
  %v411 = vsel %vm391, %v406, 0
  %v414 = vsel %vm391, %v48, 0
  %v417 = vsel %vm391, %v49, 0
  %v420 = vsel %vm391, %v50, 0
  %v423 = vsel %vm391, %v51, 0
  %425 = vmatprep.subr.mxu0 0.0
  %426 = vmatpush1.xpose.msra.mxu0 %v414
  %427 = vmatprep.subr.mxu0 0.0
  %428 = vmatpush1.xpose.msra.mxu0 %v417
  %429 = vmatprep.subr.mxu0 0.0
  %430 = vmatpush1.xpose.msra.mxu0 %v420
  %431 = vmatprep.subr.mxu0 0.0
  %432 = vmatpush1.xpose.msra.mxu0 %v423
  %433 = vmatprep.subr.mxu0 0.0
  %434 = vmatpush1.xpose.msra.mxu0 0.0
  %435 = vmatprep.subr.mxu0 0.0
  %436 = vmatpush1.xpose.msra.mxu0 0.0
  %437 = vmatprep.subr.mxu0 0.0
  %438 = vmatpush1.xpose.msra.mxu0 0.0
  %439 = vmatprep.subr.mxu0 0.0
  %440 = vmatpush1.xpose.msra.mxu0 0.0
  %441 = vmatprep.subr.mxu0 0.0
  %442 = vmatpush1.xpose.msra.mxu0 0.0
  %443 = vmatprep.subr.mxu0 0.0
  %444 = vmatpush1.xpose.msra.mxu0 0.0
  %445 = vmatprep.subr.mxu0 0.0
  %446 = vmatpush1.xpose.msra.mxu0 0.0
  %447 = vmatprep.subr.mxu0 0.0
  %448 = vmatpush1.xpose.msra.mxu0 0.0
  %449 = vmatprep.subr.mxu0 0.0
  %450 = vmatpush1.xpose.msra.mxu0 0.0
  %451 = vmatprep.subr.mxu0 0.0
  %452 = vmatpush1.xpose.msra.mxu0 0.0
  %453 = vmatprep.subr.mxu0 0.0
  %454 = vmatpush1.xpose.msra.mxu0 0.0
  %455 = vmatprep.subr.mxu0 0.0
  %456 = vmatpush1.xpose.msra.mxu0 0.0
  %457 = vmatprep.subr.mxu0 0.0
  %458 = vmatpush1.xpose.msra.mxu0 0.0
  %459 = vmatprep.subr.mxu0 0.0
  %460 = vmatpush1.xpose.msra.mxu0 0.0
  %461 = vmatprep.subr.mxu0 0.0
  %462 = vmatpush1.xpose.msra.mxu0 0.0
  %463 = vmatprep.subr.mxu0 0.0
  %464 = vmatpush1.xpose.msra.mxu0 0.0
  %465 = vmatprep.subr.mxu0 0.0
  %466 = vmatpush1.xpose.msra.mxu0 0.0
  %467 = vmatprep.subr.mxu0 0.0
  %468 = vmatpush1.xpose.msra.mxu0 0.0
  %469 = vmatprep.subr.mxu0 0.0
  %470 = vmatpush1.xpose.msra.mxu0 0.0
  %471 = vmatprep.subr.mxu0 0.0
  %472 = vmatpush1.xpose.msra.mxu0 0.0
  %473 = vmatprep.subr.mxu0 0.0
  %474 = vmatpush1.xpose.msra.mxu0 0.0
  %475 = vmatprep.subr.mxu0 0.0
  %476 = vmatpush1.xpose.msra.mxu0 0.0
  %477 = vmatprep.subr.mxu0 0.0
  %478 = vmatpush1.xpose.msra.mxu0 0.0
  %479 = vmatprep.subr.mxu0 0.0
  %480 = vmatpush1.xpose.msra.mxu0 0.0
  %481 = vmatprep.subr.mxu0 0.0
  %482 = vmatpush1.xpose.msra.mxu0 0.0
  %483 = vmatprep.subr.mxu0 0.0
  %484 = vmatpush1.xpose.msra.mxu0 0.0
  %485 = vmatprep.subr.mxu0 0.0
  %486 = vmatpush1.xpose.msra.mxu0 0.0
  %487 = vmatprep.subr.mxu0 0.0
  %488 = vmatpush1.xpose.msra.mxu0 0.0
  %489 = vmatprep.mubr.f32.mxu0 0.0
  %490 = vmatmul.mubr.f32.gmra.mrb[0].mxu0 %v408
  %v491 = vpop.f32.mrb[0].mxu0
  %v492 = vadd.f32 0.0, %v491
  %v493 = vpop.f32.mrb[0].mxu0
  %494 = vmatprep.mubr.f32.mxu0 0.0
  %495 = vmatmul.mubr.f32.gmra.mrb[0].mxu0 %v411
  %v496 = vpop.f32.mrb[0].mxu0
  %v497 = vadd.f32 0.0, %v496
  %v498 = vpop.f32.mrb[0].mxu0
  %499 = vdwg.mxu0
  %500 = vrot.lane.b32.xlu0 %v290, 64
  %v501 = vpop.permute.xlu0 %500
  %502 = vrot.lane.b32.xlu0 %v295, 64
  %v503 = vpop.permute.xlu0 %502
  %v506 = vmul.f32 %v492, %v501
  %v507 = vmul.f32 %v497, %v503
  %v508 = vsel %vm63, %v506, 0.0
  %v509 = vsel %vm63, %v507, 0.0
  %v510 = vadd.f32 %v508, %v509
  %v511 = vmul.f32 %v299, %v303
  %v512 = vmul.f32 %v299, %v305
  %v514 = vsel %vm63, %v511, 0
  %v517 = vsel %vm63, %v512, 0
  %519 = vmatprep.subr.mxu0 0.0
  %520 = vmatpush1.msra.mxu0 %v48
  %521 = vmatprep.subr.mxu0 0.0
  %522 = vmatpush1.msra.mxu0 %v49
  %523 = vmatprep.subr.mxu0 0.0
  %524 = vmatpush1.msra.mxu0 %v50
  %525 = vmatprep.subr.mxu0 0.0
  %526 = vmatpush1.msra.mxu0 %v51
  %527 = vmatprep.subr.mxu0 0.0
  %528 = vmatpush1.msra.mxu0 0.0
  %529 = vmatprep.subr.mxu0 0.0
  %530 = vmatpush1.msra.mxu0 0.0
  %531 = vmatprep.subr.mxu0 0.0
  %532 = vmatpush1.msra.mxu0 0.0
  %533 = vmatprep.subr.mxu0 0.0
  %534 = vmatpush1.msra.mxu0 0.0
  %535 = vmatprep.subr.mxu0 0.0
  %536 = vmatpush1.msra.mxu0 0.0
  %537 = vmatprep.subr.mxu0 0.0
  %538 = vmatpush1.msra.mxu0 0.0
  %539 = vmatprep.subr.mxu0 0.0
  %540 = vmatpush1.msra.mxu0 0.0
  %541 = vmatprep.subr.mxu0 0.0
  %542 = vmatpush1.msra.mxu0 0.0
  %543 = vmatprep.subr.mxu0 0.0
  %544 = vmatpush1.msra.mxu0 0.0
  %545 = vmatprep.subr.mxu0 0.0
  %546 = vmatpush1.msra.mxu0 0.0
  %547 = vmatprep.subr.mxu0 0.0
  %548 = vmatpush1.msra.mxu0 0.0
  %549 = vmatprep.subr.mxu0 0.0
  %550 = vmatpush1.msra.mxu0 0.0
  %551 = vmatprep.subr.mxu0 0.0
  %552 = vmatpush1.msra.mxu0 0.0
  %553 = vmatprep.subr.mxu0 0.0
  %554 = vmatpush1.msra.mxu0 0.0
  %555 = vmatprep.subr.mxu0 0.0
  %556 = vmatpush1.msra.mxu0 0.0
  %557 = vmatprep.subr.mxu0 0.0
  %558 = vmatpush1.msra.mxu0 0.0
  %559 = vmatprep.subr.mxu0 0.0
  %560 = vmatpush1.msra.mxu0 0.0
  %561 = vmatprep.subr.mxu0 0.0
  %562 = vmatpush1.msra.mxu0 0.0
  %563 = vmatprep.subr.mxu0 0.0
  %564 = vmatpush1.msra.mxu0 0.0
  %565 = vmatprep.subr.mxu0 0.0
  %566 = vmatpush1.msra.mxu0 0.0
  %567 = vmatprep.subr.mxu0 0.0
  %568 = vmatpush1.msra.mxu0 0.0
  %569 = vmatprep.subr.mxu0 0.0
  %570 = vmatpush1.msra.mxu0 0.0
  %571 = vmatprep.subr.mxu0 0.0
  %572 = vmatpush1.msra.mxu0 0.0
  %573 = vmatprep.subr.mxu0 0.0
  %574 = vmatpush1.msra.mxu0 0.0
  %575 = vmatprep.subr.mxu0 0.0
  %576 = vmatpush1.msra.mxu0 0.0
  %577 = vmatprep.subr.mxu0 0.0
  %578 = vmatpush1.msra.mxu0 0.0
  %579 = vmatprep.subr.mxu0 0.0
  %580 = vmatpush1.msra.mxu0 0.0
  %581 = vmatprep.subr.mxu0 0.0
  %582 = vmatpush1.msra.mxu0 0.0
  %583 = vmatprep.mubr.f32.mxu0 0.0
  %584 = vmatmul.mubr.f32.gmra.mrb[0].mxu0 %v514
  %v585 = vpop.f32.mrb[0].mxu0
  %v586 = vadd.f32 0.0, %v585
  %v587 = vpop.f32.mrb[0].mxu0
  %588 = vmatprep.mubr.f32.mxu0 0.0
  %589 = vmatmul.mubr.f32.gmra.mrb[0].mxu0 %v517
  %v590 = vpop.f32.mrb[0].mxu0
  %v591 = vadd.f32 0.0, %v590
  %v592 = vpop.f32.mrb[0].mxu0
  %593 = vdwg.mxu0
  %v594 = vsel %vm391, %v586, -inf
  %v595 = vsel %vm391, %v591, -inf
  %v596 = vmax.f32 %v594, %v595
  %v597 = vsub.f32 %v586, %v596
  %v598 = vsub.f32 %v591, %v596
  %v599 = vmul.f32 %v597, 1.442695
  %v600 = vpow.pop %v599
  %v601 = vmul.f32 %v598, 1.442695
  %v602 = vpow.pop %v601
  %v603 = vsel %vm391, %v600, 0.0
  %v604 = vsel %vm391, %v602, 0.0
  %v605 = vadd.f32 %v603, %v604
  %v606 = vrcp.pop %v605
  %v607 = vmul.f32 %v600, %v606
  %v608 = vmul.f32 %v602, %v606
  %v610 = vsel %vm391, %v607, 0
  %v613 = vsel %vm391, %v608, 0
  %615 = vmatprep.subr.mxu0 0.0
  %616 = vmatpush1.xpose.msra.mxu0 %v414
  %617 = vmatprep.subr.mxu0 0.0
  %618 = vmatpush1.xpose.msra.mxu0 %v417
  %619 = vmatprep.subr.mxu0 0.0
  %620 = vmatpush1.xpose.msra.mxu0 %v420
  %621 = vmatprep.subr.mxu0 0.0
  %622 = vmatpush1.xpose.msra.mxu0 %v423
  %623 = vmatprep.subr.mxu0 0.0
  %624 = vmatpush1.xpose.msra.mxu0 0.0
  %625 = vmatprep.subr.mxu0 0.0
  %626 = vmatpush1.xpose.msra.mxu0 0.0
  %627 = vmatprep.subr.mxu0 0.0
  %628 = vmatpush1.xpose.msra.mxu0 0.0
  %629 = vmatprep.subr.mxu0 0.0
  %630 = vmatpush1.xpose.msra.mxu0 0.0
  %631 = vmatprep.subr.mxu0 0.0
  %632 = vmatpush1.xpose.msra.mxu0 0.0
  %633 = vmatprep.subr.mxu0 0.0
  %634 = vmatpush1.xpose.msra.mxu0 0.0
  %635 = vmatprep.subr.mxu0 0.0
  %636 = vmatpush1.xpose.msra.mxu0 0.0
  %637 = vmatprep.subr.mxu0 0.0
  %638 = vmatpush1.xpose.msra.mxu0 0.0
  %639 = vmatprep.subr.mxu0 0.0
  %640 = vmatpush1.xpose.msra.mxu0 0.0
  %641 = vmatprep.subr.mxu0 0.0
  %642 = vmatpush1.xpose.msra.mxu0 0.0
  %643 = vmatprep.subr.mxu0 0.0
  %644 = vmatpush1.xpose.msra.mxu0 0.0
  %645 = vmatprep.subr.mxu0 0.0
  %646 = vmatpush1.xpose.msra.mxu0 0.0
  %647 = vmatprep.subr.mxu0 0.0
  %648 = vmatpush1.xpose.msra.mxu0 0.0
  %649 = vmatprep.subr.mxu0 0.0
  %650 = vmatpush1.xpose.msra.mxu0 0.0
  %651 = vmatprep.subr.mxu0 0.0
  %652 = vmatpush1.xpose.msra.mxu0 0.0
  %653 = vmatprep.subr.mxu0 0.0
  %654 = vmatpush1.xpose.msra.mxu0 0.0
  %655 = vmatprep.subr.mxu0 0.0
  %656 = vmatpush1.xpose.msra.mxu0 0.0
  %657 = vmatprep.subr.mxu0 0.0
  %658 = vmatpush1.xpose.msra.mxu0 0.0
  %659 = vmatprep.subr.mxu0 0.0
  %660 = vmatpush1.xpose.msra.mxu0 0.0
  %661 = vmatprep.subr.mxu0 0.0
  %662 = vmatpush1.xpose.msra.mxu0 0.0
  %663 = vmatprep.subr.mxu0 0.0
  %664 = vmatpush1.xpose.msra.mxu0 0.0
  %665 = vmatprep.subr.mxu0 0.0
  %666 = vmatpush1.xpose.msra.mxu0 0.0
  %667 = vmatprep.subr.mxu0 0.0
  %668 = vmatpush1.xpose.msra.mxu0 0.0
  %669 = vmatprep.subr.mxu0 0.0
  %670 = vmatpush1.xpose.msra.mxu0 0.0
  %671 = vmatprep.subr.mxu0 0.0
  %672 = vmatpush1.xpose.msra.mxu0 0.0
  %673 = vmatprep.subr.mxu0 0.0
  %674 = vmatpush1.xpose.msra.mxu0 0.0
  %675 = vmatprep.subr.mxu0 0.0
  %676 = vmatpush1.xpose.msra.mxu0 0.0
  %677 = vmatprep.subr.mxu0 0.0
  %678 = vmatpush1.xpose.msra.mxu0 0.0
  %679 = vmatprep.mubr.f32.mxu0 0.0
  %680 = vmatmul.mubr.f32.gmra.mrb[0].mxu0 %v610
  %v681 = vpop.f32.mrb[0].mxu0
  %v682 = vadd.f32 0.0, %v681
  %v683 = vpop.f32.mrb[0].mxu0
  %684 = vmatprep.mubr.f32.mxu0 0.0
  %685 = vmatmul.mubr.f32.gmra.mrb[0].mxu0 %v613
  %v686 = vpop.f32.mrb[0].mxu0
  %v687 = vadd.f32 0.0, %v686
  %v688 = vpop.f32.mrb[0].mxu0
  %689 = vdwg.mxu0
  %v690 = vmul.f32 %v682, %v501
  %v691 = vmul.f32 %v687, %v503
  %v692 = vsel %vm63, %v690, 0.0
  %v693 = vsel %vm63, %v691, 0.0
  %v694 = vadd.f32 %v692, %v693
  %v696 = vlaneseq
  %v697 = vshrl.u32 %v696, 7
  %v698 = vsub.s32 0, %v697
  %v699 = vrot.slane %v174, %v698
  %v702 = vsel %vm63, %v510, 0
  %v705 = vsel %vm63, %v694, 0
  %v708 = vsel %vm63, %v170, 0
  %v711 = vsel %vm63, %v171, 0
  %v714 = vsel %vm63, %v172, 0
  %v717 = vsel %vm63, %v173, 0
  %719 = vmatprep.subr.mxu0 0.0
  %720 = vmatpush1.xpose.msra.mxu0 %v708
  %721 = vmatprep.subr.mxu0 0.0
  %722 = vmatpush1.xpose.msra.mxu0 %v711
  %723 = vmatprep.subr.mxu0 0.0
  %724 = vmatpush1.xpose.msra.mxu0 %v714
  %725 = vmatprep.subr.mxu0 0.0
  %726 = vmatpush1.xpose.msra.mxu0 %v717
  %727 = vmatprep.subr.mxu0 0.0
  %728 = vmatpush1.xpose.msra.mxu0 0.0
  %729 = vmatprep.subr.mxu0 0.0
  %730 = vmatpush1.xpose.msra.mxu0 0.0
  %731 = vmatprep.subr.mxu0 0.0
  %732 = vmatpush1.xpose.msra.mxu0 0.0
  %733 = vmatprep.subr.mxu0 0.0
  %734 = vmatpush1.xpose.msra.mxu0 0.0
  %735 = vmatprep.subr.mxu0 0.0
  %736 = vmatpush1.xpose.msra.mxu0 0.0
  %737 = vmatprep.subr.mxu0 0.0
  %738 = vmatpush1.xpose.msra.mxu0 0.0
  %739 = vmatprep.subr.mxu0 0.0
  %740 = vmatpush1.xpose.msra.mxu0 0.0
  %741 = vmatprep.subr.mxu0 0.0
  %742 = vmatpush1.xpose.msra.mxu0 0.0
  %743 = vmatprep.subr.mxu0 0.0
  %744 = vmatpush1.xpose.msra.mxu0 0.0
  %745 = vmatprep.subr.mxu0 0.0
  %746 = vmatpush1.xpose.msra.mxu0 0.0
  %747 = vmatprep.subr.mxu0 0.0
  %748 = vmatpush1.xpose.msra.mxu0 0.0
  %749 = vmatprep.subr.mxu0 0.0
  %750 = vmatpush1.xpose.msra.mxu0 0.0
  %751 = vmatprep.subr.mxu0 0.0
  %752 = vmatpush1.xpose.msra.mxu0 0.0
  %753 = vmatprep.subr.mxu0 0.0
  %754 = vmatpush1.xpose.msra.mxu0 0.0
  %755 = vmatprep.subr.mxu0 0.0
  %756 = vmatpush1.xpose.msra.mxu0 0.0
  %757 = vmatprep.subr.mxu0 0.0
  %758 = vmatpush1.xpose.msra.mxu0 0.0
  %759 = vmatprep.subr.mxu0 0.0
  %760 = vmatpush1.xpose.msra.mxu0 0.0
  %761 = vmatprep.subr.mxu0 0.0
  %762 = vmatpush1.xpose.msra.mxu0 0.0
  %763 = vmatprep.subr.mxu0 0.0
  %764 = vmatpush1.xpose.msra.mxu0 0.0
  %765 = vmatprep.subr.mxu0 0.0
  %766 = vmatpush1.xpose.msra.mxu0 0.0
  %767 = vmatprep.subr.mxu0 0.0
  %768 = vmatpush1.xpose.msra.mxu0 0.0
  %769 = vmatprep.subr.mxu0 0.0
  %770 = vmatpush1.xpose.msra.mxu0 0.0
  %771 = vmatprep.subr.mxu0 0.0
  %772 = vmatpush1.xpose.msra.mxu0 0.0
  %773 = vmatprep.subr.mxu0 0.0
  %774 = vmatpush1.xpose.msra.mxu0 0.0
  %775 = vmatprep.subr.mxu0 0.0
  %776 = vmatpush1.xpose.msra.mxu0 0.0
  %777 = vmatprep.subr.mxu0 0.0
  %778 = vmatpush1.xpose.msra.mxu0 0.0
  %779 = vmatprep.subr.mxu0 0.0
  %780 = vmatpush1.xpose.msra.mxu0 0.0
  %781 = vmatprep.subr.mxu0 0.0
  %782 = vmatpush1.xpose.msra.mxu0 0.0
  %783 = vmatprep.mubr.f32.mxu0 0.0
  %784 = vmatmul.mubr.f32.gmra.mrb[0].mxu0 %v702
  %v785 = vpop.f32.mrb[0].mxu0
  %v786 = vadd.f32 %v699, %v785
  %v787 = vpop.f32.mrb[0].mxu0
  %788 = vmatprep.mubr.f32.mxu0 0.0
  %789 = vmatmul.mubr.f32.gmra.mrb[0].mxu0 %v705
  %v790 = vpop.f32.mrb[0].mxu0
  %v791 = vadd.f32 %v699, %v790
  %v792 = vpop.f32.mrb[0].mxu0
  %793 = vdwg.mxu0
  %v795 = vsel %vm391, %v46, 0
  %797 = vmatprep.subr.mxu0 0.0
  %798 = vmatpush1.msra.mxu0 %v786
  %799 = vmatprep.subr.mxu0 0.0
  %800 = vmatpush1.msra.mxu0 0.0
  %801 = vmatprep.subr.mxu0 0.0
  %802 = vmatpush1.msra.mxu0 0.0
  %803 = vmatprep.subr.mxu0 0.0
  %804 = vmatpush1.msra.mxu0 0.0
  %805 = vmatprep.subr.mxu0 0.0
  %806 = vmatpush1.msra.mxu0 0.0
  %807 = vmatprep.subr.mxu0 0.0
  %808 = vmatpush1.msra.mxu0 0.0
  %809 = vmatprep.subr.mxu0 0.0
  %810 = vmatpush1.msra.mxu0 0.0
  %811 = vmatprep.subr.mxu0 0.0
  %812 = vmatpush1.msra.mxu0 0.0
  %813 = vmatprep.subr.mxu0 0.0
  %814 = vmatpush1.msra.mxu0 0.0
  %815 = vmatprep.subr.mxu0 0.0
  %816 = vmatpush1.msra.mxu0 0.0
  %817 = vmatprep.subr.mxu0 0.0
  %818 = vmatpush1.msra.mxu0 0.0
  %819 = vmatprep.subr.mxu0 0.0
  %820 = vmatpush1.msra.mxu0 0.0
  %821 = vmatprep.subr.mxu0 0.0
  %822 = vmatpush1.msra.mxu0 0.0
  %823 = vmatprep.subr.mxu0 0.0
  %824 = vmatpush1.msra.mxu0 0.0
  %825 = vmatprep.subr.mxu0 0.0
  %826 = vmatpush1.msra.mxu0 0.0
  %827 = vmatprep.subr.mxu0 0.0
  %828 = vmatpush1.msra.mxu0 0.0
  %829 = vmatprep.subr.mxu0 0.0
  %830 = vmatpush1.msra.mxu0 0.0
  %831 = vmatprep.subr.mxu0 0.0
  %832 = vmatpush1.msra.mxu0 0.0
  %833 = vmatprep.subr.mxu0 0.0
  %834 = vmatpush1.msra.mxu0 0.0
  %835 = vmatprep.subr.mxu0 0.0
  %836 = vmatpush1.msra.mxu0 0.0
  %837 = vmatprep.subr.mxu0 0.0
  %838 = vmatpush1.msra.mxu0 0.0
  %839 = vmatprep.subr.mxu0 0.0
  %840 = vmatpush1.msra.mxu0 0.0
  %841 = vmatprep.subr.mxu0 0.0
  %842 = vmatpush1.msra.mxu0 0.0
  %843 = vmatprep.subr.mxu0 0.0
  %844 = vmatpush1.msra.mxu0 0.0
  %845 = vmatprep.subr.mxu0 0.0
  %846 = vmatpush1.msra.mxu0 0.0
  %847 = vmatprep.subr.mxu0 0.0
  %848 = vmatpush1.msra.mxu0 0.0
  %849 = vmatprep.subr.mxu0 0.0
  %850 = vmatpush1.msra.mxu0 0.0
  %851 = vmatprep.subr.mxu0 0.0
  %852 = vmatpush1.msra.mxu0 0.0
  %853 = vmatprep.subr.mxu0 0.0
  %854 = vmatpush1.msra.mxu0 0.0
  %855 = vmatprep.subr.mxu0 0.0
  %856 = vmatpush1.msra.mxu0 0.0
  %857 = vmatprep.subr.mxu0 0.0
  %858 = vmatpush1.msra.mxu0 0.0
  %859 = vmatprep.subr.mxu0 0.0
  %860 = vmatpush1.msra.mxu0 0.0
  %861 = vmatprep.mubr.f32.mxu0 0.0
  %862 = vmatmul.mubr.f32.gmra.mrb[0].mxu0 %v795
  %v863 = vpop.f32.mrb[0].mxu0
  %v864 = vadd.f32 0.0, %v863
  %v865 = vpop.f32.mrb[0].mxu0
  %866 = vdwg.mxu0
  %v868 = vsel %vm391, %v47, 0
  %870 = vmatprep.subr.mxu0 0.0
  %871 = vmatpush1.msra.mxu0 %v791
  %872 = vmatprep.subr.mxu0 0.0
  %873 = vmatpush1.msra.mxu0 0.0
  %874 = vmatprep.subr.mxu0 0.0
  %875 = vmatpush1.msra.mxu0 0.0
  %876 = vmatprep.subr.mxu0 0.0
  %877 = vmatpush1.msra.mxu0 0.0
  %878 = vmatprep.subr.mxu0 0.0
  %879 = vmatpush1.msra.mxu0 0.0
  %880 = vmatprep.subr.mxu0 0.0
  %881 = vmatpush1.msra.mxu0 0.0
  %882 = vmatprep.subr.mxu0 0.0
  %883 = vmatpush1.msra.mxu0 0.0
  %884 = vmatprep.subr.mxu0 0.0
  %885 = vmatpush1.msra.mxu0 0.0
  %886 = vmatprep.subr.mxu0 0.0
  %887 = vmatpush1.msra.mxu0 0.0
  %888 = vmatprep.subr.mxu0 0.0
  %889 = vmatpush1.msra.mxu0 0.0
  %890 = vmatprep.subr.mxu0 0.0
  %891 = vmatpush1.msra.mxu0 0.0
  %892 = vmatprep.subr.mxu0 0.0
  %893 = vmatpush1.msra.mxu0 0.0
  %894 = vmatprep.subr.mxu0 0.0
  %895 = vmatpush1.msra.mxu0 0.0
  %896 = vmatprep.subr.mxu0 0.0
  %897 = vmatpush1.msra.mxu0 0.0
  %898 = vmatprep.subr.mxu0 0.0
  %899 = vmatpush1.msra.mxu0 0.0
  %900 = vmatprep.subr.mxu0 0.0
  %901 = vmatpush1.msra.mxu0 0.0
  %902 = vmatprep.subr.mxu0 0.0
  %903 = vmatpush1.msra.mxu0 0.0
  %904 = vmatprep.subr.mxu0 0.0
  %905 = vmatpush1.msra.mxu0 0.0
  %906 = vmatprep.subr.mxu0 0.0
  %907 = vmatpush1.msra.mxu0 0.0
  %908 = vmatprep.subr.mxu0 0.0
  %909 = vmatpush1.msra.mxu0 0.0
  %910 = vmatprep.subr.mxu0 0.0
  %911 = vmatpush1.msra.mxu0 0.0
  %912 = vmatprep.subr.mxu0 0.0
  %913 = vmatpush1.msra.mxu0 0.0
  %914 = vmatprep.subr.mxu0 0.0
  %915 = vmatpush1.msra.mxu0 0.0
  %916 = vmatprep.subr.mxu0 0.0
  %917 = vmatpush1.msra.mxu0 0.0
  %918 = vmatprep.subr.mxu0 0.0
  %919 = vmatpush1.msra.mxu0 0.0
  %920 = vmatprep.subr.mxu0 0.0
  %921 = vmatpush1.msra.mxu0 0.0
  %922 = vmatprep.subr.mxu0 0.0
  %923 = vmatpush1.msra.mxu0 0.0
  %924 = vmatprep.subr.mxu0 0.0
  %925 = vmatpush1.msra.mxu0 0.0
  %926 = vmatprep.subr.mxu0 0.0
  %927 = vmatpush1.msra.mxu0 0.0
  %928 = vmatprep.subr.mxu0 0.0
  %929 = vmatpush1.msra.mxu0 0.0
  %930 = vmatprep.subr.mxu0 0.0
  %931 = vmatpush1.msra.mxu0 0.0
  %932 = vmatprep.subr.mxu0 0.0
  %933 = vmatpush1.msra.mxu0 0.0
  %934 = vmatprep.mubr.f32.mxu0 0.0
  %935 = vmatmul.mubr.f32.gmra.mrb[0].mxu0 %v868
  %v936 = vpop.f32.mrb[0].mxu0
  %v937 = vadd.f32 0.0, %v936
  %v938 = vpop.f32.mrb[0].mxu0
  %939 = vdwg.mxu0
  %v940 = vadd.f32 %v149, %v864
  %v941 = vadd.f32 %v154, %v937
  %v942 = vsel %vm63, %v940, 0.0
  %943 = vadd.xlane.f32.xlu0 %v942
  %v944 = vpop.xlane.xlu0 %943
  %v945 = vsel %vm63, %v941, 0.0
  %946 = vadd.xlane.f32.xlu0 %v945
  %v947 = vpop.xlane.xlu0 %946
  %v948 = vrcp.pop 32.0
  %v949 = vmul.f32 %v944, %v948
  %v950 = vmul.f32 %v947, %v948
  %v951 = vsub.f32 %v940, %v949
  %v952 = vsub.f32 %v941, %v950
  %v953 = vmul.f32 %v951, %v951
  %v954 = vmul.f32 %v952, %v952
  %v955 = vsel %vm63, %v953, 0.0
  %956 = vadd.xlane.f32.xlu0 %v955
  %v957 = vpop.xlane.xlu0 %956
  %v958 = vsel %vm63, %v954, 0.0
  %959 = vadd.xlane.f32.xlu0 %v958
  %v960 = vpop.xlane.xlu0 %959
  %v961 = vmul.f32 %v957, %v948
  %v962 = vmul.f32 %v960, %v948
  %v963 = vadd.f32 %v961, 1e-05
  %v964 = vadd.f32 %v962, 1e-05
  %v965 = vrsqrt.pop %v963
  %v966 = vrsqrt.pop %v964
  %v967 = vmul.f32 %v951, %v965
  %v968 = vmul.f32 %v952, %v966
  %s969 = scalar_lea.vmem %s5, 96
  %v970 = vld [vmem:[%s969] sm:$0xff]
  %v971 = vld [vmem:[%s969 + $0x8] sm:$0xff]
  %v972 = vld [vmem:[%s969 + $0x10] sm:$0xff]
  %v973 = vld [vmem:[%s969 + $0x18] sm:$0xff]
  %v974 = vld [vmem:[%s969 + $0x20] sm:$0xff]
  %v975 = vld [vmem:[%s969 + $0x28] sm:$0xff]
  %v976 = vld [vmem:[%s969 + $0x30] sm:$0xff]
  %v977 = vld [vmem:[%s969 + $0x38] sm:$0xff]
  %v978 = vld [vmem:[%s969 + $0x40] sm:$0xff]
  %v979 = vld [vmem:[%s969 + $0x48] sm:$0xff]
  %v980 = vld [vmem:[%s969 + $0x50] sm:$0xff]
  %v981 = vld [vmem:[%s969 + $0x58] sm:$0xff]
  %s982 = scalar_lea.vmem %s6, 1
  %v983 = vld [vmem:[%s982] sm:$0x1]
  %s984 = scalar_lea.vmem %s7, 32
  %v985 = vld [vmem:[%s984] sm:$0xff]
  %v986 = vld [vmem:[%s984 + $0x8] sm:$0xff]
  %v987 = vld [vmem:[%s984 + $0x10] sm:$0xff]
  %v988 = vld [vmem:[%s984 + $0x18] sm:$0xff]
  %s989 = scalar_lea.vmem %s8, 1
  %v990 = vld [vmem:[%s989] sm:$0x1]
  %v992 = vlaneseq
  %v993 = vshrl.u32 %v992, 7
  %v994 = vsub.s32 0, %v993
  %v995 = vrot.slane %v983, %v994
  %v998 = vsel %vm63, %v967, 0
  %v1001 = vsel %vm63, %v968, 0
  %v1004 = vsel %vm63, %v970, 0
  %v1007 = vsel %vm63, %v971, 0
  %v1010 = vsel %vm63, %v972, 0
  %v1013 = vsel %vm63, %v973, 0
  %v1016 = vsel %vm63, %v974, 0
  %v1019 = vsel %vm63, %v975, 0
  %v1022 = vsel %vm63, %v976, 0
  %v1025 = vsel %vm63, %v977, 0
  %v1028 = vsel %vm63, %v978, 0
  %v1031 = vsel %vm63, %v979, 0
  %v1034 = vsel %vm63, %v980, 0
  %v1037 = vsel %vm63, %v981, 0
  %1039 = vmatprep.subr.mxu0 0.0
  %1040 = vmatpush1.xpose.msra.mxu0 %v1004
  %1041 = vmatprep.subr.mxu0 0.0
  %1042 = vmatpush1.xpose.msra.mxu0 %v1007
  %1043 = vmatprep.subr.mxu0 0.0
  %1044 = vmatpush1.xpose.msra.mxu0 %v1010
  %1045 = vmatprep.subr.mxu0 0.0
  %1046 = vmatpush1.xpose.msra.mxu0 %v1013
  %1047 = vmatprep.subr.mxu0 0.0
  %1048 = vmatpush1.xpose.msra.mxu0 %v1016
  %1049 = vmatprep.subr.mxu0 0.0
  %1050 = vmatpush1.xpose.msra.mxu0 %v1019
  %1051 = vmatprep.subr.mxu0 0.0
  %1052 = vmatpush1.xpose.msra.mxu0 %v1022
  %1053 = vmatprep.subr.mxu0 0.0
  %1054 = vmatpush1.xpose.msra.mxu0 %v1025
  %1055 = vmatprep.subr.mxu0 0.0
  %1056 = vmatpush1.xpose.msra.mxu0 %v1028
  %1057 = vmatprep.subr.mxu0 0.0
  %1058 = vmatpush1.xpose.msra.mxu0 %v1031
  %1059 = vmatprep.subr.mxu0 0.0
  %1060 = vmatpush1.xpose.msra.mxu0 %v1034
  %1061 = vmatprep.subr.mxu0 0.0
  %1062 = vmatpush1.xpose.msra.mxu0 %v1037
  %1063 = vmatprep.subr.mxu0 0.0
  %1064 = vmatpush1.xpose.msra.mxu0 0.0
  %1065 = vmatprep.subr.mxu0 0.0
  %1066 = vmatpush1.xpose.msra.mxu0 0.0
  %1067 = vmatprep.subr.mxu0 0.0
  %1068 = vmatpush1.xpose.msra.mxu0 0.0
  %1069 = vmatprep.subr.mxu0 0.0
  %1070 = vmatpush1.xpose.msra.mxu0 0.0
  %1071 = vmatprep.subr.mxu0 0.0
  %1072 = vmatpush1.xpose.msra.mxu0 0.0
  %1073 = vmatprep.subr.mxu0 0.0
  %1074 = vmatpush1.xpose.msra.mxu0 0.0
  %1075 = vmatprep.subr.mxu0 0.0
  %1076 = vmatpush1.xpose.msra.mxu0 0.0
  %1077 = vmatprep.subr.mxu0 0.0
  %1078 = vmatpush1.xpose.msra.mxu0 0.0
  %1079 = vmatprep.subr.mxu0 0.0
  %1080 = vmatpush1.xpose.msra.mxu0 0.0
  %1081 = vmatprep.subr.mxu0 0.0
  %1082 = vmatpush1.xpose.msra.mxu0 0.0
  %1083 = vmatprep.subr.mxu0 0.0
  %1084 = vmatpush1.xpose.msra.mxu0 0.0
  %1085 = vmatprep.subr.mxu0 0.0
  %1086 = vmatpush1.xpose.msra.mxu0 0.0
  %1087 = vmatprep.subr.mxu0 0.0
  %1088 = vmatpush1.xpose.msra.mxu0 0.0
  %1089 = vmatprep.subr.mxu0 0.0
  %1090 = vmatpush1.xpose.msra.mxu0 0.0
  %1091 = vmatprep.subr.mxu0 0.0
  %1092 = vmatpush1.xpose.msra.mxu0 0.0
  %1093 = vmatprep.subr.mxu0 0.0
  %1094 = vmatpush1.xpose.msra.mxu0 0.0
  %1095 = vmatprep.subr.mxu0 0.0
  %1096 = vmatpush1.xpose.msra.mxu0 0.0
  %1097 = vmatprep.subr.mxu0 0.0
  %1098 = vmatpush1.xpose.msra.mxu0 0.0
  %1099 = vmatprep.subr.mxu0 0.0
  %1100 = vmatpush1.xpose.msra.mxu0 0.0
  %1101 = vmatprep.subr.mxu0 0.0
  %1102 = vmatpush1.xpose.msra.mxu0 0.0
  %1103 = vmatprep.mubr.f32.mxu0 0.0
  %1104 = vmatmul.mubr.f32.gmra.mrb[0].mxu0 %v998
  %v1105 = vpop.f32.mrb[0].mxu0
  %v1106 = vadd.f32 %v995, %v1105
  %v1107 = vpop.f32.mrb[0].mxu0
  %1108 = vmatprep.mubr.f32.mxu0 0.0
  %1109 = vmatmul.mubr.f32.gmra.mrb[0].mxu0 %v1001
  %v1110 = vpop.f32.mrb[0].mxu0
  %v1111 = vadd.f32 %v995, %v1110
  %v1112 = vpop.f32.mrb[0].mxu0
  %1113 = vdwg.mxu0
  %v1114 = vmul.f32 %v1106, 0.5
  %v1115 = vmul.f32 %v1111, 0.5
  %1118 = vrot.lane.b32.xlu0 %v1106, 96
  %v1119 = vpop.permute.xlu0 %1118
  %1120 = vrot.lane.b32.xlu0 %v1111, 96
  %v1121 = vpop.permute.xlu0 %1120
  %v1124 = vmul.f32 %v1114, %v1119
  %v1125 = vmul.f32 %v1114, %v1121
  %v1127 = vsel %vm63, %v1124, 0
  %v1130 = vsel %vm63, %v1125, 0
  %1132 = vmatprep.subr.mxu0 0.0
  %1133 = vmatpush1.msra.mxu0 %v48
  %1134 = vmatprep.subr.mxu0 0.0
  %1135 = vmatpush1.msra.mxu0 %v49
  %1136 = vmatprep.subr.mxu0 0.0
  %1137 = vmatpush1.msra.mxu0 %v50
  %1138 = vmatprep.subr.mxu0 0.0
  %1139 = vmatpush1.msra.mxu0 %v51
  %1140 = vmatprep.subr.mxu0 0.0
  %1141 = vmatpush1.msra.mxu0 0.0
  %1142 = vmatprep.subr.mxu0 0.0
  %1143 = vmatpush1.msra.mxu0 0.0
  %1144 = vmatprep.subr.mxu0 0.0
  %1145 = vmatpush1.msra.mxu0 0.0
  %1146 = vmatprep.subr.mxu0 0.0
  %1147 = vmatpush1.msra.mxu0 0.0
  %1148 = vmatprep.subr.mxu0 0.0
  %1149 = vmatpush1.msra.mxu0 0.0
  %1150 = vmatprep.subr.mxu0 0.0
  %1151 = vmatpush1.msra.mxu0 0.0
  %1152 = vmatprep.subr.mxu0 0.0
  %1153 = vmatpush1.msra.mxu0 0.0
  %1154 = vmatprep.subr.mxu0 0.0
  %1155 = vmatpush1.msra.mxu0 0.0
  %1156 = vmatprep.subr.mxu0 0.0
  %1157 = vmatpush1.msra.mxu0 0.0
  %1158 = vmatprep.subr.mxu0 0.0
  %1159 = vmatpush1.msra.mxu0 0.0
  %1160 = vmatprep.subr.mxu0 0.0
  %1161 = vmatpush1.msra.mxu0 0.0
  %1162 = vmatprep.subr.mxu0 0.0
  %1163 = vmatpush1.msra.mxu0 0.0
  %1164 = vmatprep.subr.mxu0 0.0
  %1165 = vmatpush1.msra.mxu0 0.0
  %1166 = vmatprep.subr.mxu0 0.0
  %1167 = vmatpush1.msra.mxu0 0.0
  %1168 = vmatprep.subr.mxu0 0.0
  %1169 = vmatpush1.msra.mxu0 0.0
  %1170 = vmatprep.subr.mxu0 0.0
  %1171 = vmatpush1.msra.mxu0 0.0
  %1172 = vmatprep.subr.mxu0 0.0
  %1173 = vmatpush1.msra.mxu0 0.0
  %1174 = vmatprep.subr.mxu0 0.0
  %1175 = vmatpush1.msra.mxu0 0.0
  %1176 = vmatprep.subr.mxu0 0.0
  %1177 = vmatpush1.msra.mxu0 0.0
  %1178 = vmatprep.subr.mxu0 0.0
  %1179 = vmatpush1.msra.mxu0 0.0
  %1180 = vmatprep.subr.mxu0 0.0
  %1181 = vmatpush1.msra.mxu0 0.0
  %1182 = vmatprep.subr.mxu0 0.0
  %1183 = vmatpush1.msra.mxu0 0.0
  %1184 = vmatprep.subr.mxu0 0.0
  %1185 = vmatpush1.msra.mxu0 0.0
  %1186 = vmatprep.subr.mxu0 0.0
  %1187 = vmatpush1.msra.mxu0 0.0
  %1188 = vmatprep.subr.mxu0 0.0
  %1189 = vmatpush1.msra.mxu0 0.0
  %1190 = vmatprep.subr.mxu0 0.0
  %1191 = vmatpush1.msra.mxu0 0.0
  %1192 = vmatprep.subr.mxu0 0.0
  %1193 = vmatpush1.msra.mxu0 0.0
  %1194 = vmatprep.subr.mxu0 0.0
  %1195 = vmatpush1.msra.mxu0 0.0
  %1196 = vmatprep.mubr.f32.mxu0 0.0
  %1197 = vmatmul.mubr.f32.gmra.mrb[0].mxu0 %v1127
  %v1198 = vpop.f32.mrb[0].mxu0
  %v1199 = vadd.f32 0.0, %v1198
  %v1200 = vpop.f32.mrb[0].mxu0
  %1201 = vmatprep.mubr.f32.mxu0 0.0
  %1202 = vmatmul.mubr.f32.gmra.mrb[0].mxu0 %v1130
  %v1203 = vpop.f32.mrb[0].mxu0
  %v1204 = vadd.f32 0.0, %v1203
  %v1205 = vpop.f32.mrb[0].mxu0
  %1206 = vdwg.mxu0
  %v1207 = vsel %vm391, %v1199, -inf
  %v1208 = vsel %vm391, %v1204, -inf
  %v1209 = vmax.f32 %v1207, %v1208
  %v1210 = vsub.f32 %v1199, %v1209
  %v1211 = vsub.f32 %v1204, %v1209
  %v1212 = vmul.f32 %v1210, 1.442695
  %v1213 = vpow.pop %v1212
  %v1214 = vmul.f32 %v1211, 1.442695
  %v1215 = vpow.pop %v1214
  %v1216 = vsel %vm391, %v1213, 0.0
  %v1217 = vsel %vm391, %v1215, 0.0
  %v1218 = vadd.f32 %v1216, %v1217
  %v1219 = vrcp.pop %v1218
  %v1220 = vmul.f32 %v1213, %v1219
  %v1221 = vmul.f32 %v1215, %v1219
  %v1223 = vsel %vm391, %v1220, 0
  %v1226 = vsel %vm391, %v1221, 0
  %1228 = vmatprep.subr.mxu0 0.0
  %1229 = vmatpush1.xpose.msra.mxu0 %v414
  %1230 = vmatprep.subr.mxu0 0.0
  %1231 = vmatpush1.xpose.msra.mxu0 %v417
  %1232 = vmatprep.subr.mxu0 0.0
  %1233 = vmatpush1.xpose.msra.mxu0 %v420
  %1234 = vmatprep.subr.mxu0 0.0
  %1235 = vmatpush1.xpose.msra.mxu0 %v423
  %1236 = vmatprep.subr.mxu0 0.0
  %1237 = vmatpush1.xpose.msra.mxu0 0.0
  %1238 = vmatprep.subr.mxu0 0.0
  %1239 = vmatpush1.xpose.msra.mxu0 0.0
  %1240 = vmatprep.subr.mxu0 0.0
  %1241 = vmatpush1.xpose.msra.mxu0 0.0
  %1242 = vmatprep.subr.mxu0 0.0
  %1243 = vmatpush1.xpose.msra.mxu0 0.0
  %1244 = vmatprep.subr.mxu0 0.0
  %1245 = vmatpush1.xpose.msra.mxu0 0.0
  %1246 = vmatprep.subr.mxu0 0.0
  %1247 = vmatpush1.xpose.msra.mxu0 0.0
  %1248 = vmatprep.subr.mxu0 0.0
  %1249 = vmatpush1.xpose.msra.mxu0 0.0
  %1250 = vmatprep.subr.mxu0 0.0
  %1251 = vmatpush1.xpose.msra.mxu0 0.0
  %1252 = vmatprep.subr.mxu0 0.0
  %1253 = vmatpush1.xpose.msra.mxu0 0.0
  %1254 = vmatprep.subr.mxu0 0.0
  %1255 = vmatpush1.xpose.msra.mxu0 0.0
  %1256 = vmatprep.subr.mxu0 0.0
  %1257 = vmatpush1.xpose.msra.mxu0 0.0
  %1258 = vmatprep.subr.mxu0 0.0
  %1259 = vmatpush1.xpose.msra.mxu0 0.0
  %1260 = vmatprep.subr.mxu0 0.0
  %1261 = vmatpush1.xpose.msra.mxu0 0.0
  %1262 = vmatprep.subr.mxu0 0.0
  %1263 = vmatpush1.xpose.msra.mxu0 0.0
  %1264 = vmatprep.subr.mxu0 0.0
  %1265 = vmatpush1.xpose.msra.mxu0 0.0
  %1266 = vmatprep.subr.mxu0 0.0
  %1267 = vmatpush1.xpose.msra.mxu0 0.0
  %1268 = vmatprep.subr.mxu0 0.0
  %1269 = vmatpush1.xpose.msra.mxu0 0.0
  %1270 = vmatprep.subr.mxu0 0.0
  %1271 = vmatpush1.xpose.msra.mxu0 0.0
  %1272 = vmatprep.subr.mxu0 0.0
  %1273 = vmatpush1.xpose.msra.mxu0 0.0
  %1274 = vmatprep.subr.mxu0 0.0
  %1275 = vmatpush1.xpose.msra.mxu0 0.0
  %1276 = vmatprep.subr.mxu0 0.0
  %1277 = vmatpush1.xpose.msra.mxu0 0.0
  %1278 = vmatprep.subr.mxu0 0.0
  %1279 = vmatpush1.xpose.msra.mxu0 0.0
  %1280 = vmatprep.subr.mxu0 0.0
  %1281 = vmatpush1.xpose.msra.mxu0 0.0
  %1282 = vmatprep.subr.mxu0 0.0
  %1283 = vmatpush1.xpose.msra.mxu0 0.0
  %1284 = vmatprep.subr.mxu0 0.0
  %1285 = vmatpush1.xpose.msra.mxu0 0.0
  %1286 = vmatprep.subr.mxu0 0.0
  %1287 = vmatpush1.xpose.msra.mxu0 0.0
  %1288 = vmatprep.subr.mxu0 0.0
  %1289 = vmatpush1.xpose.msra.mxu0 0.0
  %1290 = vmatprep.subr.mxu0 0.0
  %1291 = vmatpush1.xpose.msra.mxu0 0.0
  %1292 = vmatprep.mubr.f32.mxu0 0.0
  %1293 = vmatmul.mubr.f32.gmra.mrb[0].mxu0 %v1223
  %v1294 = vpop.f32.mrb[0].mxu0
  %v1295 = vadd.f32 0.0, %v1294
  %v1296 = vpop.f32.mrb[0].mxu0
  %1297 = vmatprep.mubr.f32.mxu0 0.0
  %1298 = vmatmul.mubr.f32.gmra.mrb[0].mxu0 %v1226
  %v1299 = vpop.f32.mrb[0].mxu0
  %v1300 = vadd.f32 0.0, %v1299
  %v1301 = vpop.f32.mrb[0].mxu0
  %1302 = vdwg.mxu0
  %1303 = vrot.lane.b32.xlu0 %v1106, 64
  %v1304 = vpop.permute.xlu0 %1303
  %1305 = vrot.lane.b32.xlu0 %v1111, 64
  %v1306 = vpop.permute.xlu0 %1305
  %v1309 = vmul.f32 %v1295, %v1304
  %v1310 = vmul.f32 %v1300, %v1306
  %v1311 = vsel %vm63, %v1309, 0.0
  %v1312 = vsel %vm63, %v1310, 0.0
  %v1313 = vadd.f32 %v1311, %v1312
  %v1314 = vmul.f32 %v1115, %v1119
  %v1315 = vmul.f32 %v1115, %v1121
  %v1317 = vsel %vm63, %v1314, 0
  %v1320 = vsel %vm63, %v1315, 0
  %1322 = vmatprep.subr.mxu0 0.0
  %1323 = vmatpush1.msra.mxu0 %v48
  %1324 = vmatprep.subr.mxu0 0.0
  %1325 = vmatpush1.msra.mxu0 %v49
  %1326 = vmatprep.subr.mxu0 0.0
  %1327 = vmatpush1.msra.mxu0 %v50
  %1328 = vmatprep.subr.mxu0 0.0
  %1329 = vmatpush1.msra.mxu0 %v51
  %1330 = vmatprep.subr.mxu0 0.0
  %1331 = vmatpush1.msra.mxu0 0.0
  %1332 = vmatprep.subr.mxu0 0.0
  %1333 = vmatpush1.msra.mxu0 0.0
  %1334 = vmatprep.subr.mxu0 0.0
  %1335 = vmatpush1.msra.mxu0 0.0
  %1336 = vmatprep.subr.mxu0 0.0
  %1337 = vmatpush1.msra.mxu0 0.0
  %1338 = vmatprep.subr.mxu0 0.0
  %1339 = vmatpush1.msra.mxu0 0.0
  %1340 = vmatprep.subr.mxu0 0.0
  %1341 = vmatpush1.msra.mxu0 0.0
  %1342 = vmatprep.subr.mxu0 0.0
  %1343 = vmatpush1.msra.mxu0 0.0
  %1344 = vmatprep.subr.mxu0 0.0
  %1345 = vmatpush1.msra.mxu0 0.0
  %1346 = vmatprep.subr.mxu0 0.0
  %1347 = vmatpush1.msra.mxu0 0.0
  %1348 = vmatprep.subr.mxu0 0.0
  %1349 = vmatpush1.msra.mxu0 0.0
  %1350 = vmatprep.subr.mxu0 0.0
  %1351 = vmatpush1.msra.mxu0 0.0
  %1352 = vmatprep.subr.mxu0 0.0
  %1353 = vmatpush1.msra.mxu0 0.0
  %1354 = vmatprep.subr.mxu0 0.0
  %1355 = vmatpush1.msra.mxu0 0.0
  %1356 = vmatprep.subr.mxu0 0.0
  %1357 = vmatpush1.msra.mxu0 0.0
  %1358 = vmatprep.subr.mxu0 0.0
  %1359 = vmatpush1.msra.mxu0 0.0
  %1360 = vmatprep.subr.mxu0 0.0
  %1361 = vmatpush1.msra.mxu0 0.0
  %1362 = vmatprep.subr.mxu0 0.0
  %1363 = vmatpush1.msra.mxu0 0.0
  %1364 = vmatprep.subr.mxu0 0.0
  %1365 = vmatpush1.msra.mxu0 0.0
  %1366 = vmatprep.subr.mxu0 0.0
  %1367 = vmatpush1.msra.mxu0 0.0
  %1368 = vmatprep.subr.mxu0 0.0
  %1369 = vmatpush1.msra.mxu0 0.0
  %1370 = vmatprep.subr.mxu0 0.0
  %1371 = vmatpush1.msra.mxu0 0.0
  %1372 = vmatprep.subr.mxu0 0.0
  %1373 = vmatpush1.msra.mxu0 0.0
  %1374 = vmatprep.subr.mxu0 0.0
  %1375 = vmatpush1.msra.mxu0 0.0
  %1376 = vmatprep.subr.mxu0 0.0
  %1377 = vmatpush1.msra.mxu0 0.0
  %1378 = vmatprep.subr.mxu0 0.0
  %1379 = vmatpush1.msra.mxu0 0.0
  %1380 = vmatprep.subr.mxu0 0.0
  %1381 = vmatpush1.msra.mxu0 0.0
  %1382 = vmatprep.subr.mxu0 0.0
  %1383 = vmatpush1.msra.mxu0 0.0
  %1384 = vmatprep.subr.mxu0 0.0
  %1385 = vmatpush1.msra.mxu0 0.0
  %1386 = vmatprep.mubr.f32.mxu0 0.0
  %1387 = vmatmul.mubr.f32.gmra.mrb[0].mxu0 %v1317
  %v1388 = vpop.f32.mrb[0].mxu0
  %v1389 = vadd.f32 0.0, %v1388
  %v1390 = vpop.f32.mrb[0].mxu0
  %1391 = vmatprep.mubr.f32.mxu0 0.0
  %1392 = vmatmul.mubr.f32.gmra.mrb[0].mxu0 %v1320
  %v1393 = vpop.f32.mrb[0].mxu0
  %v1394 = vadd.f32 0.0, %v1393
  %v1395 = vpop.f32.mrb[0].mxu0
  %1396 = vdwg.mxu0
  %v1397 = vsel %vm391, %v1389, -inf
  %v1398 = vsel %vm391, %v1394, -inf
  %v1399 = vmax.f32 %v1397, %v1398
  %v1400 = vsub.f32 %v1389, %v1399
  %v1401 = vsub.f32 %v1394, %v1399
  %v1402 = vmul.f32 %v1400, 1.442695
  %v1403 = vpow.pop %v1402
  %v1404 = vmul.f32 %v1401, 1.442695
  %v1405 = vpow.pop %v1404
  %v1406 = vsel %vm391, %v1403, 0.0
  %v1407 = vsel %vm391, %v1405, 0.0
  %v1408 = vadd.f32 %v1406, %v1407
  %v1409 = vrcp.pop %v1408
  %v1410 = vmul.f32 %v1403, %v1409
  %v1411 = vmul.f32 %v1405, %v1409
  %v1413 = vsel %vm391, %v1410, 0
  %v1416 = vsel %vm391, %v1411, 0
  %1418 = vmatprep.subr.mxu0 0.0
  %1419 = vmatpush1.xpose.msra.mxu0 %v414
  %1420 = vmatprep.subr.mxu0 0.0
  %1421 = vmatpush1.xpose.msra.mxu0 %v417
  %1422 = vmatprep.subr.mxu0 0.0
  %1423 = vmatpush1.xpose.msra.mxu0 %v420
  %1424 = vmatprep.subr.mxu0 0.0
  %1425 = vmatpush1.xpose.msra.mxu0 %v423
  %1426 = vmatprep.subr.mxu0 0.0
  %1427 = vmatpush1.xpose.msra.mxu0 0.0
  %1428 = vmatprep.subr.mxu0 0.0
  %1429 = vmatpush1.xpose.msra.mxu0 0.0
  %1430 = vmatprep.subr.mxu0 0.0
  %1431 = vmatpush1.xpose.msra.mxu0 0.0
  %1432 = vmatprep.subr.mxu0 0.0
  %1433 = vmatpush1.xpose.msra.mxu0 0.0
  %1434 = vmatprep.subr.mxu0 0.0
  %1435 = vmatpush1.xpose.msra.mxu0 0.0
  %1436 = vmatprep.subr.mxu0 0.0
  %1437 = vmatpush1.xpose.msra.mxu0 0.0
  %1438 = vmatprep.subr.mxu0 0.0
  %1439 = vmatpush1.xpose.msra.mxu0 0.0
  %1440 = vmatprep.subr.mxu0 0.0
  %1441 = vmatpush1.xpose.msra.mxu0 0.0
  %1442 = vmatprep.subr.mxu0 0.0
  %1443 = vmatpush1.xpose.msra.mxu0 0.0
  %1444 = vmatprep.subr.mxu0 0.0
  %1445 = vmatpush1.xpose.msra.mxu0 0.0
  %1446 = vmatprep.subr.mxu0 0.0
  %1447 = vmatpush1.xpose.msra.mxu0 0.0
  %1448 = vmatprep.subr.mxu0 0.0
  %1449 = vmatpush1.xpose.msra.mxu0 0.0
  %1450 = vmatprep.subr.mxu0 0.0
  %1451 = vmatpush1.xpose.msra.mxu0 0.0
  %1452 = vmatprep.subr.mxu0 0.0
  %1453 = vmatpush1.xpose.msra.mxu0 0.0
  %1454 = vmatprep.subr.mxu0 0.0
  %1455 = vmatpush1.xpose.msra.mxu0 0.0
  %1456 = vmatprep.subr.mxu0 0.0
  %1457 = vmatpush1.xpose.msra.mxu0 0.0
  %1458 = vmatprep.subr.mxu0 0.0
  %1459 = vmatpush1.xpose.msra.mxu0 0.0
  %1460 = vmatprep.subr.mxu0 0.0
  %1461 = vmatpush1.xpose.msra.mxu0 0.0
  %1462 = vmatprep.subr.mxu0 0.0
  %1463 = vmatpush1.xpose.msra.mxu0 0.0
  %1464 = vmatprep.subr.mxu0 0.0
  %1465 = vmatpush1.xpose.msra.mxu0 0.0
  %1466 = vmatprep.subr.mxu0 0.0
  %1467 = vmatpush1.xpose.msra.mxu0 0.0
  %1468 = vmatprep.subr.mxu0 0.0
  %1469 = vmatpush1.xpose.msra.mxu0 0.0
  %1470 = vmatprep.subr.mxu0 0.0
  %1471 = vmatpush1.xpose.msra.mxu0 0.0
  %1472 = vmatprep.subr.mxu0 0.0
  %1473 = vmatpush1.xpose.msra.mxu0 0.0
  %1474 = vmatprep.subr.mxu0 0.0
  %1475 = vmatpush1.xpose.msra.mxu0 0.0
  %1476 = vmatprep.subr.mxu0 0.0
  %1477 = vmatpush1.xpose.msra.mxu0 0.0
  %1478 = vmatprep.subr.mxu0 0.0
  %1479 = vmatpush1.xpose.msra.mxu0 0.0
  %1480 = vmatprep.subr.mxu0 0.0
  %1481 = vmatpush1.xpose.msra.mxu0 0.0
  %1482 = vmatprep.mubr.f32.mxu0 0.0
  %1483 = vmatmul.mubr.f32.gmra.mrb[0].mxu0 %v1413
  %v1484 = vpop.f32.mrb[0].mxu0
  %v1485 = vadd.f32 0.0, %v1484
  %v1486 = vpop.f32.mrb[0].mxu0
  %1487 = vmatprep.mubr.f32.mxu0 0.0
  %1488 = vmatmul.mubr.f32.gmra.mrb[0].mxu0 %v1416
  %v1489 = vpop.f32.mrb[0].mxu0
  %v1490 = vadd.f32 0.0, %v1489
  %v1491 = vpop.f32.mrb[0].mxu0
  %1492 = vdwg.mxu0
  %v1493 = vmul.f32 %v1485, %v1304
  %v1494 = vmul.f32 %v1490, %v1306
  %v1495 = vsel %vm63, %v1493, 0.0
  %v1496 = vsel %vm63, %v1494, 0.0
  %v1497 = vadd.f32 %v1495, %v1496
  %v1499 = vlaneseq
  %v1500 = vshrl.u32 %v1499, 7
  %v1501 = vsub.s32 0, %v1500
  %v1502 = vrot.slane %v990, %v1501
  %v1505 = vsel %vm63, %v1313, 0
  %v1508 = vsel %vm63, %v1497, 0
  %v1511 = vsel %vm63, %v985, 0
  %v1514 = vsel %vm63, %v986, 0
  %v1517 = vsel %vm63, %v987, 0
  %v1520 = vsel %vm63, %v988, 0
  %1522 = vmatprep.subr.mxu0 0.0
  %1523 = vmatpush1.xpose.msra.mxu0 %v1511
  %1524 = vmatprep.subr.mxu0 0.0
  %1525 = vmatpush1.xpose.msra.mxu0 %v1514
  %1526 = vmatprep.subr.mxu0 0.0
  %1527 = vmatpush1.xpose.msra.mxu0 %v1517
  %1528 = vmatprep.subr.mxu0 0.0
  %1529 = vmatpush1.xpose.msra.mxu0 %v1520
  %1530 = vmatprep.subr.mxu0 0.0
  %1531 = vmatpush1.xpose.msra.mxu0 0.0
  %1532 = vmatprep.subr.mxu0 0.0
  %1533 = vmatpush1.xpose.msra.mxu0 0.0
  %1534 = vmatprep.subr.mxu0 0.0
  %1535 = vmatpush1.xpose.msra.mxu0 0.0
  %1536 = vmatprep.subr.mxu0 0.0
  %1537 = vmatpush1.xpose.msra.mxu0 0.0
  %1538 = vmatprep.subr.mxu0 0.0
  %1539 = vmatpush1.xpose.msra.mxu0 0.0
  %1540 = vmatprep.subr.mxu0 0.0
  %1541 = vmatpush1.xpose.msra.mxu0 0.0
  %1542 = vmatprep.subr.mxu0 0.0
  %1543 = vmatpush1.xpose.msra.mxu0 0.0
  %1544 = vmatprep.subr.mxu0 0.0
  %1545 = vmatpush1.xpose.msra.mxu0 0.0
  %1546 = vmatprep.subr.mxu0 0.0
  %1547 = vmatpush1.xpose.msra.mxu0 0.0
  %1548 = vmatprep.subr.mxu0 0.0
  %1549 = vmatpush1.xpose.msra.mxu0 0.0
  %1550 = vmatprep.subr.mxu0 0.0
  %1551 = vmatpush1.xpose.msra.mxu0 0.0
  %1552 = vmatprep.subr.mxu0 0.0
  %1553 = vmatpush1.xpose.msra.mxu0 0.0
  %1554 = vmatprep.subr.mxu0 0.0
  %1555 = vmatpush1.xpose.msra.mxu0 0.0
  %1556 = vmatprep.subr.mxu0 0.0
  %1557 = vmatpush1.xpose.msra.mxu0 0.0
  %1558 = vmatprep.subr.mxu0 0.0
  %1559 = vmatpush1.xpose.msra.mxu0 0.0
  %1560 = vmatprep.subr.mxu0 0.0
  %1561 = vmatpush1.xpose.msra.mxu0 0.0
  %1562 = vmatprep.subr.mxu0 0.0
  %1563 = vmatpush1.xpose.msra.mxu0 0.0
  %1564 = vmatprep.subr.mxu0 0.0
  %1565 = vmatpush1.xpose.msra.mxu0 0.0
  %1566 = vmatprep.subr.mxu0 0.0
  %1567 = vmatpush1.xpose.msra.mxu0 0.0
  %1568 = vmatprep.subr.mxu0 0.0
  %1569 = vmatpush1.xpose.msra.mxu0 0.0
  %1570 = vmatprep.subr.mxu0 0.0
  %1571 = vmatpush1.xpose.msra.mxu0 0.0
  %1572 = vmatprep.subr.mxu0 0.0
  %1573 = vmatpush1.xpose.msra.mxu0 0.0
  %1574 = vmatprep.subr.mxu0 0.0
  %1575 = vmatpush1.xpose.msra.mxu0 0.0
  %1576 = vmatprep.subr.mxu0 0.0
  %1577 = vmatpush1.xpose.msra.mxu0 0.0
  %1578 = vmatprep.subr.mxu0 0.0
  %1579 = vmatpush1.xpose.msra.mxu0 0.0
  %1580 = vmatprep.subr.mxu0 0.0
  %1581 = vmatpush1.xpose.msra.mxu0 0.0
  %1582 = vmatprep.subr.mxu0 0.0
  %1583 = vmatpush1.xpose.msra.mxu0 0.0
  %1584 = vmatprep.subr.mxu0 0.0
  %1585 = vmatpush1.xpose.msra.mxu0 0.0
  %1586 = vmatprep.mubr.f32.mxu0 0.0
  %1587 = vmatmul.mubr.f32.gmra.mrb[0].mxu0 %v1505
  %v1588 = vpop.f32.mrb[0].mxu0
  %v1589 = vadd.f32 %v1502, %v1588
  %v1590 = vpop.f32.mrb[0].mxu0
  %1591 = vmatprep.mubr.f32.mxu0 0.0
  %1592 = vmatmul.mubr.f32.gmra.mrb[0].mxu0 %v1508
  %v1593 = vpop.f32.mrb[0].mxu0
  %v1594 = vadd.f32 %v1502, %v1593
  %v1595 = vpop.f32.mrb[0].mxu0
  %1596 = vdwg.mxu0
  %1597 = vmatprep.subr.mxu0 0.0
  %1598 = vmatpush1.msra.mxu0 %v1589
  %1599 = vmatprep.subr.mxu0 0.0
  %1600 = vmatpush1.msra.mxu0 0.0
  %1601 = vmatprep.subr.mxu0 0.0
  %1602 = vmatpush1.msra.mxu0 0.0
  %1603 = vmatprep.subr.mxu0 0.0
  %1604 = vmatpush1.msra.mxu0 0.0
  %1605 = vmatprep.subr.mxu0 0.0
  %1606 = vmatpush1.msra.mxu0 0.0
  %1607 = vmatprep.subr.mxu0 0.0
  %1608 = vmatpush1.msra.mxu0 0.0
  %1609 = vmatprep.subr.mxu0 0.0
  %1610 = vmatpush1.msra.mxu0 0.0
  %1611 = vmatprep.subr.mxu0 0.0
  %1612 = vmatpush1.msra.mxu0 0.0
  %1613 = vmatprep.subr.mxu0 0.0
  %1614 = vmatpush1.msra.mxu0 0.0
  %1615 = vmatprep.subr.mxu0 0.0
  %1616 = vmatpush1.msra.mxu0 0.0
  %1617 = vmatprep.subr.mxu0 0.0
  %1618 = vmatpush1.msra.mxu0 0.0
  %1619 = vmatprep.subr.mxu0 0.0
  %1620 = vmatpush1.msra.mxu0 0.0
  %1621 = vmatprep.subr.mxu0 0.0
  %1622 = vmatpush1.msra.mxu0 0.0
  %1623 = vmatprep.subr.mxu0 0.0
  %1624 = vmatpush1.msra.mxu0 0.0
  %1625 = vmatprep.subr.mxu0 0.0
  %1626 = vmatpush1.msra.mxu0 0.0
  %1627 = vmatprep.subr.mxu0 0.0
  %1628 = vmatpush1.msra.mxu0 0.0
  %1629 = vmatprep.subr.mxu0 0.0
  %1630 = vmatpush1.msra.mxu0 0.0
  %1631 = vmatprep.subr.mxu0 0.0
  %1632 = vmatpush1.msra.mxu0 0.0
  %1633 = vmatprep.subr.mxu0 0.0
  %1634 = vmatpush1.msra.mxu0 0.0
  %1635 = vmatprep.subr.mxu0 0.0
  %1636 = vmatpush1.msra.mxu0 0.0
  %1637 = vmatprep.subr.mxu0 0.0
  %1638 = vmatpush1.msra.mxu0 0.0
  %1639 = vmatprep.subr.mxu0 0.0
  %1640 = vmatpush1.msra.mxu0 0.0
  %1641 = vmatprep.subr.mxu0 0.0
  %1642 = vmatpush1.msra.mxu0 0.0
  %1643 = vmatprep.subr.mxu0 0.0
  %1644 = vmatpush1.msra.mxu0 0.0
  %1645 = vmatprep.subr.mxu0 0.0
  %1646 = vmatpush1.msra.mxu0 0.0
  %1647 = vmatprep.subr.mxu0 0.0
  %1648 = vmatpush1.msra.mxu0 0.0
  %1649 = vmatprep.subr.mxu0 0.0
  %1650 = vmatpush1.msra.mxu0 0.0
  %1651 = vmatprep.subr.mxu0 0.0
  %1652 = vmatpush1.msra.mxu0 0.0
  %1653 = vmatprep.subr.mxu0 0.0
  %1654 = vmatpush1.msra.mxu0 0.0
  %1655 = vmatprep.subr.mxu0 0.0
  %1656 = vmatpush1.msra.mxu0 0.0
  %1657 = vmatprep.subr.mxu0 0.0
  %1658 = vmatpush1.msra.mxu0 0.0
  %1659 = vmatprep.subr.mxu0 0.0
  %1660 = vmatpush1.msra.mxu0 0.0
  %1661 = vmatprep.mubr.f32.mxu0 0.0
  %1662 = vmatmul.mubr.f32.gmra.mrb[0].mxu0 %v795
  %v1663 = vpop.f32.mrb[0].mxu0
  %v1664 = vadd.f32 0.0, %v1663
  %v1665 = vpop.f32.mrb[0].mxu0
  %1666 = vdwg.mxu0
  %1667 = vmatprep.subr.mxu0 0.0
  %1668 = vmatpush1.msra.mxu0 %v1594
  %1669 = vmatprep.subr.mxu0 0.0
  %1670 = vmatpush1.msra.mxu0 0.0
  %1671 = vmatprep.subr.mxu0 0.0
  %1672 = vmatpush1.msra.mxu0 0.0
  %1673 = vmatprep.subr.mxu0 0.0
  %1674 = vmatpush1.msra.mxu0 0.0
  %1675 = vmatprep.subr.mxu0 0.0
  %1676 = vmatpush1.msra.mxu0 0.0
  %1677 = vmatprep.subr.mxu0 0.0
  %1678 = vmatpush1.msra.mxu0 0.0
  %1679 = vmatprep.subr.mxu0 0.0
  %1680 = vmatpush1.msra.mxu0 0.0
  %1681 = vmatprep.subr.mxu0 0.0
  %1682 = vmatpush1.msra.mxu0 0.0
  %1683 = vmatprep.subr.mxu0 0.0
  %1684 = vmatpush1.msra.mxu0 0.0
  %1685 = vmatprep.subr.mxu0 0.0
  %1686 = vmatpush1.msra.mxu0 0.0
  %1687 = vmatprep.subr.mxu0 0.0
  %1688 = vmatpush1.msra.mxu0 0.0
  %1689 = vmatprep.subr.mxu0 0.0
  %1690 = vmatpush1.msra.mxu0 0.0
  %1691 = vmatprep.subr.mxu0 0.0
  %1692 = vmatpush1.msra.mxu0 0.0
  %1693 = vmatprep.subr.mxu0 0.0
  %1694 = vmatpush1.msra.mxu0 0.0
  %1695 = vmatprep.subr.mxu0 0.0
  %1696 = vmatpush1.msra.mxu0 0.0
  %1697 = vmatprep.subr.mxu0 0.0
  %1698 = vmatpush1.msra.mxu0 0.0
  %1699 = vmatprep.subr.mxu0 0.0
  %1700 = vmatpush1.msra.mxu0 0.0
  %1701 = vmatprep.subr.mxu0 0.0
  %1702 = vmatpush1.msra.mxu0 0.0
  %1703 = vmatprep.subr.mxu0 0.0
  %1704 = vmatpush1.msra.mxu0 0.0
  %1705 = vmatprep.subr.mxu0 0.0
  %1706 = vmatpush1.msra.mxu0 0.0
  %1707 = vmatprep.subr.mxu0 0.0
  %1708 = vmatpush1.msra.mxu0 0.0
  %1709 = vmatprep.subr.mxu0 0.0
  %1710 = vmatpush1.msra.mxu0 0.0
  %1711 = vmatprep.subr.mxu0 0.0
  %1712 = vmatpush1.msra.mxu0 0.0
  %1713 = vmatprep.subr.mxu0 0.0
  %1714 = vmatpush1.msra.mxu0 0.0
  %1715 = vmatprep.subr.mxu0 0.0
  %1716 = vmatpush1.msra.mxu0 0.0
  %1717 = vmatprep.subr.mxu0 0.0
  %1718 = vmatpush1.msra.mxu0 0.0
  %1719 = vmatprep.subr.mxu0 0.0
  %1720 = vmatpush1.msra.mxu0 0.0
  %1721 = vmatprep.subr.mxu0 0.0
  %1722 = vmatpush1.msra.mxu0 0.0
  %1723 = vmatprep.subr.mxu0 0.0
  %1724 = vmatpush1.msra.mxu0 0.0
  %1725 = vmatprep.subr.mxu0 0.0
  %1726 = vmatpush1.msra.mxu0 0.0
  %1727 = vmatprep.subr.mxu0 0.0
  %1728 = vmatpush1.msra.mxu0 0.0
  %1729 = vmatprep.subr.mxu0 0.0
  %1730 = vmatpush1.msra.mxu0 0.0
  %1731 = vmatprep.mubr.f32.mxu0 0.0
  %1732 = vmatmul.mubr.f32.gmra.mrb[0].mxu0 %v868
  %v1733 = vpop.f32.mrb[0].mxu0
  %v1734 = vadd.f32 0.0, %v1733
  %v1735 = vpop.f32.mrb[0].mxu0
  %1736 = vdwg.mxu0
  %v1737 = vadd.f32 %v967, %v1664
  %v1738 = vadd.f32 %v968, %v1734
  %v1739 = vsel %vm63, %v1737, 0.0
  %1740 = vadd.xlane.f32.xlu0 %v1739
  %v1741 = vpop.xlane.xlu0 %1740
  %v1742 = vsel %vm63, %v1738, 0.0
  %1743 = vadd.xlane.f32.xlu0 %v1742
  %v1744 = vpop.xlane.xlu0 %1743
  %v1745 = vmul.f32 %v1741, %v948
  %v1746 = vmul.f32 %v1744, %v948
  %v1747 = vsub.f32 %v1737, %v1745
  %v1748 = vsub.f32 %v1738, %v1746
  %v1749 = vmul.f32 %v1747, %v1747
  %v1750 = vmul.f32 %v1748, %v1748
  %v1751 = vsel %vm63, %v1749, 0.0
  %1752 = vadd.xlane.f32.xlu0 %v1751
  %v1753 = vpop.xlane.xlu0 %1752
  %v1754 = vsel %vm63, %v1750, 0.0
  %1755 = vadd.xlane.f32.xlu0 %v1754
  %v1756 = vpop.xlane.xlu0 %1755
  %v1757 = vmul.f32 %v1753, %v948
  %v1758 = vmul.f32 %v1756, %v948
  %v1759 = vadd.f32 %v1757, 1e-05
  %v1760 = vadd.f32 %v1758, 1e-05
  %v1761 = vrsqrt.pop %v1759
  %v1762 = vrsqrt.pop %v1760
  %v1763 = vmul.f32 %v1747, %v1761
  %v1764 = vmul.f32 %v1748, %v1762
  %s1765 = scalar_lea.vmem %s5, 192
  %v1766 = vld [vmem:[%s1765] sm:$0xff]
  %v1767 = vld [vmem:[%s1765 + $0x8] sm:$0xff]
  %v1768 = vld [vmem:[%s1765 + $0x10] sm:$0xff]
  %v1769 = vld [vmem:[%s1765 + $0x18] sm:$0xff]
  %v1770 = vld [vmem:[%s1765 + $0x20] sm:$0xff]
  %v1771 = vld [vmem:[%s1765 + $0x28] sm:$0xff]
  %v1772 = vld [vmem:[%s1765 + $0x30] sm:$0xff]
  %v1773 = vld [vmem:[%s1765 + $0x38] sm:$0xff]
  %v1774 = vld [vmem:[%s1765 + $0x40] sm:$0xff]
  %v1775 = vld [vmem:[%s1765 + $0x48] sm:$0xff]
  %v1776 = vld [vmem:[%s1765 + $0x50] sm:$0xff]
  %v1777 = vld [vmem:[%s1765 + $0x58] sm:$0xff]
  %s1778 = scalar_lea.vmem %s6, 2
  %v1779 = vld [vmem:[%s1778] sm:$0x1]
  %s1780 = scalar_lea.vmem %s7, 64
  %v1781 = vld [vmem:[%s1780] sm:$0xff]
  %v1782 = vld [vmem:[%s1780 + $0x8] sm:$0xff]
  %v1783 = vld [vmem:[%s1780 + $0x10] sm:$0xff]
  %v1784 = vld [vmem:[%s1780 + $0x18] sm:$0xff]
  %s1785 = scalar_lea.vmem %s8, 2
  %v1786 = vld [vmem:[%s1785] sm:$0x1]
  %v1788 = vlaneseq
  %v1789 = vshrl.u32 %v1788, 7
  %v1790 = vsub.s32 0, %v1789
  %v1791 = vrot.slane %v1779, %v1790
  %v1794 = vsel %vm63, %v1763, 0
  %v1797 = vsel %vm63, %v1764, 0
  %v1800 = vsel %vm63, %v1766, 0
  %v1803 = vsel %vm63, %v1767, 0
  %v1806 = vsel %vm63, %v1768, 0
  %v1809 = vsel %vm63, %v1769, 0
  %v1812 = vsel %vm63, %v1770, 0
  %v1815 = vsel %vm63, %v1771, 0
  %v1818 = vsel %vm63, %v1772, 0
  %v1821 = vsel %vm63, %v1773, 0
  %v1824 = vsel %vm63, %v1774, 0
  %v1827 = vsel %vm63, %v1775, 0
  %v1830 = vsel %vm63, %v1776, 0
  %v1833 = vsel %vm63, %v1777, 0
  %1835 = vmatprep.subr.mxu0 0.0
  %1836 = vmatpush1.xpose.msra.mxu0 %v1800
  %1837 = vmatprep.subr.mxu0 0.0
  %1838 = vmatpush1.xpose.msra.mxu0 %v1803
  %1839 = vmatprep.subr.mxu0 0.0
  %1840 = vmatpush1.xpose.msra.mxu0 %v1806
  %1841 = vmatprep.subr.mxu0 0.0
  %1842 = vmatpush1.xpose.msra.mxu0 %v1809
  %1843 = vmatprep.subr.mxu0 0.0
  %1844 = vmatpush1.xpose.msra.mxu0 %v1812
  %1845 = vmatprep.subr.mxu0 0.0
  %1846 = vmatpush1.xpose.msra.mxu0 %v1815
  %1847 = vmatprep.subr.mxu0 0.0
  %1848 = vmatpush1.xpose.msra.mxu0 %v1818
  %1849 = vmatprep.subr.mxu0 0.0
  %1850 = vmatpush1.xpose.msra.mxu0 %v1821
  %1851 = vmatprep.subr.mxu0 0.0
  %1852 = vmatpush1.xpose.msra.mxu0 %v1824
  %1853 = vmatprep.subr.mxu0 0.0
  %1854 = vmatpush1.xpose.msra.mxu0 %v1827
  %1855 = vmatprep.subr.mxu0 0.0
  %1856 = vmatpush1.xpose.msra.mxu0 %v1830
  %1857 = vmatprep.subr.mxu0 0.0
  %1858 = vmatpush1.xpose.msra.mxu0 %v1833
  %1859 = vmatprep.subr.mxu0 0.0
  %1860 = vmatpush1.xpose.msra.mxu0 0.0
  %1861 = vmatprep.subr.mxu0 0.0
  %1862 = vmatpush1.xpose.msra.mxu0 0.0
  %1863 = vmatprep.subr.mxu0 0.0
  %1864 = vmatpush1.xpose.msra.mxu0 0.0
  %1865 = vmatprep.subr.mxu0 0.0
  %1866 = vmatpush1.xpose.msra.mxu0 0.0
  %1867 = vmatprep.subr.mxu0 0.0
  %1868 = vmatpush1.xpose.msra.mxu0 0.0
  %1869 = vmatprep.subr.mxu0 0.0
  %1870 = vmatpush1.xpose.msra.mxu0 0.0
  %1871 = vmatprep.subr.mxu0 0.0
  %1872 = vmatpush1.xpose.msra.mxu0 0.0
  %1873 = vmatprep.subr.mxu0 0.0
  %1874 = vmatpush1.xpose.msra.mxu0 0.0
  %1875 = vmatprep.subr.mxu0 0.0
  %1876 = vmatpush1.xpose.msra.mxu0 0.0
  %1877 = vmatprep.subr.mxu0 0.0
  %1878 = vmatpush1.xpose.msra.mxu0 0.0
  %1879 = vmatprep.subr.mxu0 0.0
  %1880 = vmatpush1.xpose.msra.mxu0 0.0
  %1881 = vmatprep.subr.mxu0 0.0
  %1882 = vmatpush1.xpose.msra.mxu0 0.0
  %1883 = vmatprep.subr.mxu0 0.0
  %1884 = vmatpush1.xpose.msra.mxu0 0.0
  %1885 = vmatprep.subr.mxu0 0.0
  %1886 = vmatpush1.xpose.msra.mxu0 0.0
  %1887 = vmatprep.subr.mxu0 0.0
  %1888 = vmatpush1.xpose.msra.mxu0 0.0
  %1889 = vmatprep.subr.mxu0 0.0
  %1890 = vmatpush1.xpose.msra.mxu0 0.0
  %1891 = vmatprep.subr.mxu0 0.0
  %1892 = vmatpush1.xpose.msra.mxu0 0.0
  %1893 = vmatprep.subr.mxu0 0.0
  %1894 = vmatpush1.xpose.msra.mxu0 0.0
  %1895 = vmatprep.subr.mxu0 0.0
  %1896 = vmatpush1.xpose.msra.mxu0 0.0
  %1897 = vmatprep.subr.mxu0 0.0
  %1898 = vmatpush1.xpose.msra.mxu0 0.0
  %1899 = vmatprep.mubr.f32.mxu0 0.0
  %1900 = vmatmul.mubr.f32.gmra.mrb[0].mxu0 %v1794
  %v1901 = vpop.f32.mrb[0].mxu0
  %v1902 = vadd.f32 %v1791, %v1901
  %v1903 = vpop.f32.mrb[0].mxu0
  %1904 = vmatprep.mubr.f32.mxu0 0.0
  %1905 = vmatmul.mubr.f32.gmra.mrb[0].mxu0 %v1797
  %v1906 = vpop.f32.mrb[0].mxu0
  %v1907 = vadd.f32 %v1791, %v1906
  %v1908 = vpop.f32.mrb[0].mxu0
  %1909 = vdwg.mxu0
  %v1910 = vmul.f32 %v1902, 0.5
  %v1911 = vmul.f32 %v1907, 0.5
  %1914 = vrot.lane.b32.xlu0 %v1902, 96
  %v1915 = vpop.permute.xlu0 %1914
  %1916 = vrot.lane.b32.xlu0 %v1907, 96
  %v1917 = vpop.permute.xlu0 %1916
  %v1920 = vmul.f32 %v1910, %v1915
  %v1921 = vmul.f32 %v1910, %v1917
  %v1923 = vsel %vm63, %v1920, 0
  %v1926 = vsel %vm63, %v1921, 0
  %1928 = vmatprep.subr.mxu0 0.0
  %1929 = vmatpush1.msra.mxu0 %v48
  %1930 = vmatprep.subr.mxu0 0.0
  %1931 = vmatpush1.msra.mxu0 %v49
  %1932 = vmatprep.subr.mxu0 0.0
  %1933 = vmatpush1.msra.mxu0 %v50
  %1934 = vmatprep.subr.mxu0 0.0
  %1935 = vmatpush1.msra.mxu0 %v51
  %1936 = vmatprep.subr.mxu0 0.0
  %1937 = vmatpush1.msra.mxu0 0.0
  %1938 = vmatprep.subr.mxu0 0.0
  %1939 = vmatpush1.msra.mxu0 0.0
  %1940 = vmatprep.subr.mxu0 0.0
  %1941 = vmatpush1.msra.mxu0 0.0
  %1942 = vmatprep.subr.mxu0 0.0
  %1943 = vmatpush1.msra.mxu0 0.0
  %1944 = vmatprep.subr.mxu0 0.0
  %1945 = vmatpush1.msra.mxu0 0.0
  %1946 = vmatprep.subr.mxu0 0.0
  %1947 = vmatpush1.msra.mxu0 0.0
  %1948 = vmatprep.subr.mxu0 0.0
  %1949 = vmatpush1.msra.mxu0 0.0
  %1950 = vmatprep.subr.mxu0 0.0
  %1951 = vmatpush1.msra.mxu0 0.0
  %1952 = vmatprep.subr.mxu0 0.0
  %1953 = vmatpush1.msra.mxu0 0.0
  %1954 = vmatprep.subr.mxu0 0.0
  %1955 = vmatpush1.msra.mxu0 0.0
  %1956 = vmatprep.subr.mxu0 0.0
  %1957 = vmatpush1.msra.mxu0 0.0
  %1958 = vmatprep.subr.mxu0 0.0
  %1959 = vmatpush1.msra.mxu0 0.0
  %1960 = vmatprep.subr.mxu0 0.0
  %1961 = vmatpush1.msra.mxu0 0.0
  %1962 = vmatprep.subr.mxu0 0.0
  %1963 = vmatpush1.msra.mxu0 0.0
  %1964 = vmatprep.subr.mxu0 0.0
  %1965 = vmatpush1.msra.mxu0 0.0
  %1966 = vmatprep.subr.mxu0 0.0
  %1967 = vmatpush1.msra.mxu0 0.0
  %1968 = vmatprep.subr.mxu0 0.0
  %1969 = vmatpush1.msra.mxu0 0.0
  %1970 = vmatprep.subr.mxu0 0.0
  %1971 = vmatpush1.msra.mxu0 0.0
  %1972 = vmatprep.subr.mxu0 0.0
  %1973 = vmatpush1.msra.mxu0 0.0
  %1974 = vmatprep.subr.mxu0 0.0
  %1975 = vmatpush1.msra.mxu0 0.0
  %1976 = vmatprep.subr.mxu0 0.0
  %1977 = vmatpush1.msra.mxu0 0.0
  %1978 = vmatprep.subr.mxu0 0.0
  %1979 = vmatpush1.msra.mxu0 0.0
  %1980 = vmatprep.subr.mxu0 0.0
  %1981 = vmatpush1.msra.mxu0 0.0
  %1982 = vmatprep.subr.mxu0 0.0
  %1983 = vmatpush1.msra.mxu0 0.0
  %1984 = vmatprep.subr.mxu0 0.0
  %1985 = vmatpush1.msra.mxu0 0.0
  %1986 = vmatprep.subr.mxu0 0.0
  %1987 = vmatpush1.msra.mxu0 0.0
  %1988 = vmatprep.subr.mxu0 0.0
  %1989 = vmatpush1.msra.mxu0 0.0
  %1990 = vmatprep.subr.mxu0 0.0
  %1991 = vmatpush1.msra.mxu0 0.0
  %1992 = vmatprep.mubr.f32.mxu0 0.0
  %1993 = vmatmul.mubr.f32.gmra.mrb[0].mxu0 %v1923
  %v1994 = vpop.f32.mrb[0].mxu0
  %v1995 = vadd.f32 0.0, %v1994
  %v1996 = vpop.f32.mrb[0].mxu0
  %1997 = vmatprep.mubr.f32.mxu0 0.0
  %1998 = vmatmul.mubr.f32.gmra.mrb[0].mxu0 %v1926
  %v1999 = vpop.f32.mrb[0].mxu0
  %v2000 = vadd.f32 0.0, %v1999
  %v2001 = vpop.f32.mrb[0].mxu0
  %2002 = vdwg.mxu0
  %v2003 = vsel %vm391, %v1995, -inf
  %v2004 = vsel %vm391, %v2000, -inf
  %v2005 = vmax.f32 %v2003, %v2004
  %v2006 = vsub.f32 %v1995, %v2005
  %v2007 = vsub.f32 %v2000, %v2005
  %v2008 = vmul.f32 %v2006, 1.442695
  %v2009 = vpow.pop %v2008
  %v2010 = vmul.f32 %v2007, 1.442695
  %v2011 = vpow.pop %v2010
  %v2012 = vsel %vm391, %v2009, 0.0
  %v2013 = vsel %vm391, %v2011, 0.0
  %v2014 = vadd.f32 %v2012, %v2013
  %v2015 = vrcp.pop %v2014
  %v2016 = vmul.f32 %v2009, %v2015
  %v2017 = vmul.f32 %v2011, %v2015
  %v2019 = vsel %vm391, %v2016, 0
  %v2022 = vsel %vm391, %v2017, 0
  %2024 = vmatprep.subr.mxu0 0.0
  %2025 = vmatpush1.xpose.msra.mxu0 %v414
  %2026 = vmatprep.subr.mxu0 0.0
  %2027 = vmatpush1.xpose.msra.mxu0 %v417
  %2028 = vmatprep.subr.mxu0 0.0
  %2029 = vmatpush1.xpose.msra.mxu0 %v420
  %2030 = vmatprep.subr.mxu0 0.0
  %2031 = vmatpush1.xpose.msra.mxu0 %v423
  %2032 = vmatprep.subr.mxu0 0.0
  %2033 = vmatpush1.xpose.msra.mxu0 0.0
  %2034 = vmatprep.subr.mxu0 0.0
  %2035 = vmatpush1.xpose.msra.mxu0 0.0
  %2036 = vmatprep.subr.mxu0 0.0
  %2037 = vmatpush1.xpose.msra.mxu0 0.0
  %2038 = vmatprep.subr.mxu0 0.0
  %2039 = vmatpush1.xpose.msra.mxu0 0.0
  %2040 = vmatprep.subr.mxu0 0.0
  %2041 = vmatpush1.xpose.msra.mxu0 0.0
  %2042 = vmatprep.subr.mxu0 0.0
  %2043 = vmatpush1.xpose.msra.mxu0 0.0
  %2044 = vmatprep.subr.mxu0 0.0
  %2045 = vmatpush1.xpose.msra.mxu0 0.0
  %2046 = vmatprep.subr.mxu0 0.0
  %2047 = vmatpush1.xpose.msra.mxu0 0.0
  %2048 = vmatprep.subr.mxu0 0.0
  %2049 = vmatpush1.xpose.msra.mxu0 0.0
  %2050 = vmatprep.subr.mxu0 0.0
  %2051 = vmatpush1.xpose.msra.mxu0 0.0
  %2052 = vmatprep.subr.mxu0 0.0
  %2053 = vmatpush1.xpose.msra.mxu0 0.0
  %2054 = vmatprep.subr.mxu0 0.0
  %2055 = vmatpush1.xpose.msra.mxu0 0.0
  %2056 = vmatprep.subr.mxu0 0.0
  %2057 = vmatpush1.xpose.msra.mxu0 0.0
  %2058 = vmatprep.subr.mxu0 0.0
  %2059 = vmatpush1.xpose.msra.mxu0 0.0
  %2060 = vmatprep.subr.mxu0 0.0
  %2061 = vmatpush1.xpose.msra.mxu0 0.0
  %2062 = vmatprep.subr.mxu0 0.0
  %2063 = vmatpush1.xpose.msra.mxu0 0.0
  %2064 = vmatprep.subr.mxu0 0.0
  %2065 = vmatpush1.xpose.msra.mxu0 0.0
  %2066 = vmatprep.subr.mxu0 0.0
  %2067 = vmatpush1.xpose.msra.mxu0 0.0
  %2068 = vmatprep.subr.mxu0 0.0
  %2069 = vmatpush1.xpose.msra.mxu0 0.0
  %2070 = vmatprep.subr.mxu0 0.0
  %2071 = vmatpush1.xpose.msra.mxu0 0.0
  %2072 = vmatprep.subr.mxu0 0.0
  %2073 = vmatpush1.xpose.msra.mxu0 0.0
  %2074 = vmatprep.subr.mxu0 0.0
  %2075 = vmatpush1.xpose.msra.mxu0 0.0
  %2076 = vmatprep.subr.mxu0 0.0
  %2077 = vmatpush1.xpose.msra.mxu0 0.0
  %2078 = vmatprep.subr.mxu0 0.0
  %2079 = vmatpush1.xpose.msra.mxu0 0.0
  %2080 = vmatprep.subr.mxu0 0.0
  %2081 = vmatpush1.xpose.msra.mxu0 0.0
  %2082 = vmatprep.subr.mxu0 0.0
  %2083 = vmatpush1.xpose.msra.mxu0 0.0
  %2084 = vmatprep.subr.mxu0 0.0
  %2085 = vmatpush1.xpose.msra.mxu0 0.0
  %2086 = vmatprep.subr.mxu0 0.0
  %2087 = vmatpush1.xpose.msra.mxu0 0.0
  %2088 = vmatprep.mubr.f32.mxu0 0.0
  %2089 = vmatmul.mubr.f32.gmra.mrb[0].mxu0 %v2019
  %v2090 = vpop.f32.mrb[0].mxu0
  %v2091 = vadd.f32 0.0, %v2090
  %v2092 = vpop.f32.mrb[0].mxu0
  %2093 = vmatprep.mubr.f32.mxu0 0.0
  %2094 = vmatmul.mubr.f32.gmra.mrb[0].mxu0 %v2022
  %v2095 = vpop.f32.mrb[0].mxu0
  %v2096 = vadd.f32 0.0, %v2095
  %v2097 = vpop.f32.mrb[0].mxu0
  %2098 = vdwg.mxu0
  %2099 = vrot.lane.b32.xlu0 %v1902, 64
  %v2100 = vpop.permute.xlu0 %2099
  %2101 = vrot.lane.b32.xlu0 %v1907, 64
  %v2102 = vpop.permute.xlu0 %2101
  %v2105 = vmul.f32 %v2091, %v2100
  %v2106 = vmul.f32 %v2096, %v2102
  %v2107 = vsel %vm63, %v2105, 0.0
  %v2108 = vsel %vm63, %v2106, 0.0
  %v2109 = vadd.f32 %v2107, %v2108
  %v2110 = vmul.f32 %v1911, %v1915
  %v2111 = vmul.f32 %v1911, %v1917
  %v2113 = vsel %vm63, %v2110, 0
  %v2116 = vsel %vm63, %v2111, 0
  %2118 = vmatprep.subr.mxu0 0.0
  %2119 = vmatpush1.msra.mxu0 %v48
  %2120 = vmatprep.subr.mxu0 0.0
  %2121 = vmatpush1.msra.mxu0 %v49
  %2122 = vmatprep.subr.mxu0 0.0
  %2123 = vmatpush1.msra.mxu0 %v50
  %2124 = vmatprep.subr.mxu0 0.0
  %2125 = vmatpush1.msra.mxu0 %v51
  %2126 = vmatprep.subr.mxu0 0.0
  %2127 = vmatpush1.msra.mxu0 0.0
  %2128 = vmatprep.subr.mxu0 0.0
  %2129 = vmatpush1.msra.mxu0 0.0
  %2130 = vmatprep.subr.mxu0 0.0
  %2131 = vmatpush1.msra.mxu0 0.0
  %2132 = vmatprep.subr.mxu0 0.0
  %2133 = vmatpush1.msra.mxu0 0.0
  %2134 = vmatprep.subr.mxu0 0.0
  %2135 = vmatpush1.msra.mxu0 0.0
  %2136 = vmatprep.subr.mxu0 0.0
  %2137 = vmatpush1.msra.mxu0 0.0
  %2138 = vmatprep.subr.mxu0 0.0
  %2139 = vmatpush1.msra.mxu0 0.0
  %2140 = vmatprep.subr.mxu0 0.0
  %2141 = vmatpush1.msra.mxu0 0.0
  %2142 = vmatprep.subr.mxu0 0.0
  %2143 = vmatpush1.msra.mxu0 0.0
  %2144 = vmatprep.subr.mxu0 0.0
  %2145 = vmatpush1.msra.mxu0 0.0
  %2146 = vmatprep.subr.mxu0 0.0
  %2147 = vmatpush1.msra.mxu0 0.0
  %2148 = vmatprep.subr.mxu0 0.0
  %2149 = vmatpush1.msra.mxu0 0.0
  %2150 = vmatprep.subr.mxu0 0.0
  %2151 = vmatpush1.msra.mxu0 0.0
  %2152 = vmatprep.subr.mxu0 0.0
  %2153 = vmatpush1.msra.mxu0 0.0
  %2154 = vmatprep.subr.mxu0 0.0
  %2155 = vmatpush1.msra.mxu0 0.0
  %2156 = vmatprep.subr.mxu0 0.0
  %2157 = vmatpush1.msra.mxu0 0.0
  %2158 = vmatprep.subr.mxu0 0.0
  %2159 = vmatpush1.msra.mxu0 0.0
  %2160 = vmatprep.subr.mxu0 0.0
  %2161 = vmatpush1.msra.mxu0 0.0
  %2162 = vmatprep.subr.mxu0 0.0
  %2163 = vmatpush1.msra.mxu0 0.0
  %2164 = vmatprep.subr.mxu0 0.0
  %2165 = vmatpush1.msra.mxu0 0.0
  %2166 = vmatprep.subr.mxu0 0.0
  %2167 = vmatpush1.msra.mxu0 0.0
  %2168 = vmatprep.subr.mxu0 0.0
  %2169 = vmatpush1.msra.mxu0 0.0
  %2170 = vmatprep.subr.mxu0 0.0
  %2171 = vmatpush1.msra.mxu0 0.0
  %2172 = vmatprep.subr.mxu0 0.0
  %2173 = vmatpush1.msra.mxu0 0.0
  %2174 = vmatprep.subr.mxu0 0.0
  %2175 = vmatpush1.msra.mxu0 0.0
  %2176 = vmatprep.subr.mxu0 0.0
  %2177 = vmatpush1.msra.mxu0 0.0
  %2178 = vmatprep.subr.mxu0 0.0
  %2179 = vmatpush1.msra.mxu0 0.0
  %2180 = vmatprep.subr.mxu0 0.0
  %2181 = vmatpush1.msra.mxu0 0.0
  %2182 = vmatprep.mubr.f32.mxu0 0.0
  %2183 = vmatmul.mubr.f32.gmra.mrb[0].mxu0 %v2113
  %v2184 = vpop.f32.mrb[0].mxu0
  %v2185 = vadd.f32 0.0, %v2184
  %v2186 = vpop.f32.mrb[0].mxu0
  %2187 = vmatprep.mubr.f32.mxu0 0.0
  %2188 = vmatmul.mubr.f32.gmra.mrb[0].mxu0 %v2116
  %v2189 = vpop.f32.mrb[0].mxu0
  %v2190 = vadd.f32 0.0, %v2189
  %v2191 = vpop.f32.mrb[0].mxu0
  %2192 = vdwg.mxu0
  %v2193 = vsel %vm391, %v2185, -inf
  %v2194 = vsel %vm391, %v2190, -inf
  %v2195 = vmax.f32 %v2193, %v2194
  %v2196 = vsub.f32 %v2185, %v2195
  %v2197 = vsub.f32 %v2190, %v2195
  %v2198 = vmul.f32 %v2196, 1.442695
  %v2199 = vpow.pop %v2198
  %v2200 = vmul.f32 %v2197, 1.442695
  %v2201 = vpow.pop %v2200
  %v2202 = vsel %vm391, %v2199, 0.0
  %v2203 = vsel %vm391, %v2201, 0.0
  %v2204 = vadd.f32 %v2202, %v2203
  %v2205 = vrcp.pop %v2204
  %v2206 = vmul.f32 %v2199, %v2205
  %v2207 = vmul.f32 %v2201, %v2205
  %v2209 = vsel %vm391, %v2206, 0
  %v2212 = vsel %vm391, %v2207, 0
  %2214 = vmatprep.subr.mxu0 0.0
  %2215 = vmatpush1.xpose.msra.mxu0 %v414
  %2216 = vmatprep.subr.mxu0 0.0
  %2217 = vmatpush1.xpose.msra.mxu0 %v417
  %2218 = vmatprep.subr.mxu0 0.0
  %2219 = vmatpush1.xpose.msra.mxu0 %v420
  %2220 = vmatprep.subr.mxu0 0.0
  %2221 = vmatpush1.xpose.msra.mxu0 %v423
  %2222 = vmatprep.subr.mxu0 0.0
  %2223 = vmatpush1.xpose.msra.mxu0 0.0
  %2224 = vmatprep.subr.mxu0 0.0
  %2225 = vmatpush1.xpose.msra.mxu0 0.0
  %2226 = vmatprep.subr.mxu0 0.0
  %2227 = vmatpush1.xpose.msra.mxu0 0.0
  %2228 = vmatprep.subr.mxu0 0.0
  %2229 = vmatpush1.xpose.msra.mxu0 0.0
  %2230 = vmatprep.subr.mxu0 0.0
  %2231 = vmatpush1.xpose.msra.mxu0 0.0
  %2232 = vmatprep.subr.mxu0 0.0
  %2233 = vmatpush1.xpose.msra.mxu0 0.0
  %2234 = vmatprep.subr.mxu0 0.0
  %2235 = vmatpush1.xpose.msra.mxu0 0.0
  %2236 = vmatprep.subr.mxu0 0.0
  %2237 = vmatpush1.xpose.msra.mxu0 0.0
  %2238 = vmatprep.subr.mxu0 0.0
  %2239 = vmatpush1.xpose.msra.mxu0 0.0
  %2240 = vmatprep.subr.mxu0 0.0
  %2241 = vmatpush1.xpose.msra.mxu0 0.0
  %2242 = vmatprep.subr.mxu0 0.0
  %2243 = vmatpush1.xpose.msra.mxu0 0.0
  %2244 = vmatprep.subr.mxu0 0.0
  %2245 = vmatpush1.xpose.msra.mxu0 0.0
  %2246 = vmatprep.subr.mxu0 0.0
  %2247 = vmatpush1.xpose.msra.mxu0 0.0
  %2248 = vmatprep.subr.mxu0 0.0
  %2249 = vmatpush1.xpose.msra.mxu0 0.0
  %2250 = vmatprep.subr.mxu0 0.0
  %2251 = vmatpush1.xpose.msra.mxu0 0.0
  %2252 = vmatprep.subr.mxu0 0.0
  %2253 = vmatpush1.xpose.msra.mxu0 0.0
  %2254 = vmatprep.subr.mxu0 0.0
  %2255 = vmatpush1.xpose.msra.mxu0 0.0
  %2256 = vmatprep.subr.mxu0 0.0
  %2257 = vmatpush1.xpose.msra.mxu0 0.0
  %2258 = vmatprep.subr.mxu0 0.0
  %2259 = vmatpush1.xpose.msra.mxu0 0.0
  %2260 = vmatprep.subr.mxu0 0.0
  %2261 = vmatpush1.xpose.msra.mxu0 0.0
  %2262 = vmatprep.subr.mxu0 0.0
  %2263 = vmatpush1.xpose.msra.mxu0 0.0
  %2264 = vmatprep.subr.mxu0 0.0
  %2265 = vmatpush1.xpose.msra.mxu0 0.0
  %2266 = vmatprep.subr.mxu0 0.0
  %2267 = vmatpush1.xpose.msra.mxu0 0.0
  %2268 = vmatprep.subr.mxu0 0.0
  %2269 = vmatpush1.xpose.msra.mxu0 0.0
  %2270 = vmatprep.subr.mxu0 0.0
  %2271 = vmatpush1.xpose.msra.mxu0 0.0
  %2272 = vmatprep.subr.mxu0 0.0
  %2273 = vmatpush1.xpose.msra.mxu0 0.0
  %2274 = vmatprep.subr.mxu0 0.0
  %2275 = vmatpush1.xpose.msra.mxu0 0.0
  %2276 = vmatprep.subr.mxu0 0.0
  %2277 = vmatpush1.xpose.msra.mxu0 0.0
  %2278 = vmatprep.mubr.f32.mxu0 0.0
  %2279 = vmatmul.mubr.f32.gmra.mrb[0].mxu0 %v2209
  %v2280 = vpop.f32.mrb[0].mxu0
  %v2281 = vadd.f32 0.0, %v2280
  %v2282 = vpop.f32.mrb[0].mxu0
  %2283 = vmatprep.mubr.f32.mxu0 0.0
  %2284 = vmatmul.mubr.f32.gmra.mrb[0].mxu0 %v2212
  %v2285 = vpop.f32.mrb[0].mxu0
  %v2286 = vadd.f32 0.0, %v2285
  %v2287 = vpop.f32.mrb[0].mxu0
  %2288 = vdwg.mxu0
  %v2289 = vmul.f32 %v2281, %v2100
  %v2290 = vmul.f32 %v2286, %v2102
  %v2291 = vsel %vm63, %v2289, 0.0
  %v2292 = vsel %vm63, %v2290, 0.0
  %v2293 = vadd.f32 %v2291, %v2292
  %v2295 = vlaneseq
  %v2296 = vshrl.u32 %v2295, 7
  %v2297 = vsub.s32 0, %v2296
  %v2298 = vrot.slane %v1786, %v2297
  %v2301 = vsel %vm63, %v2109, 0
  %v2304 = vsel %vm63, %v2293, 0
  %v2307 = vsel %vm63, %v1781, 0
  %v2310 = vsel %vm63, %v1782, 0
  %v2313 = vsel %vm63, %v1783, 0
  %v2316 = vsel %vm63, %v1784, 0
  %2318 = vmatprep.subr.mxu0 0.0
  %2319 = vmatpush1.xpose.msra.mxu0 %v2307
  %2320 = vmatprep.subr.mxu0 0.0
  %2321 = vmatpush1.xpose.msra.mxu0 %v2310
  %2322 = vmatprep.subr.mxu0 0.0
  %2323 = vmatpush1.xpose.msra.mxu0 %v2313
  %2324 = vmatprep.subr.mxu0 0.0
  %2325 = vmatpush1.xpose.msra.mxu0 %v2316
  %2326 = vmatprep.subr.mxu0 0.0
  %2327 = vmatpush1.xpose.msra.mxu0 0.0
  %2328 = vmatprep.subr.mxu0 0.0
  %2329 = vmatpush1.xpose.msra.mxu0 0.0
  %2330 = vmatprep.subr.mxu0 0.0
  %2331 = vmatpush1.xpose.msra.mxu0 0.0
  %2332 = vmatprep.subr.mxu0 0.0
  %2333 = vmatpush1.xpose.msra.mxu0 0.0
  %2334 = vmatprep.subr.mxu0 0.0
  %2335 = vmatpush1.xpose.msra.mxu0 0.0
  %2336 = vmatprep.subr.mxu0 0.0
  %2337 = vmatpush1.xpose.msra.mxu0 0.0
  %2338 = vmatprep.subr.mxu0 0.0
  %2339 = vmatpush1.xpose.msra.mxu0 0.0
  %2340 = vmatprep.subr.mxu0 0.0
  %2341 = vmatpush1.xpose.msra.mxu0 0.0
  %2342 = vmatprep.subr.mxu0 0.0
  %2343 = vmatpush1.xpose.msra.mxu0 0.0
  %2344 = vmatprep.subr.mxu0 0.0
  %2345 = vmatpush1.xpose.msra.mxu0 0.0
  %2346 = vmatprep.subr.mxu0 0.0
  %2347 = vmatpush1.xpose.msra.mxu0 0.0
  %2348 = vmatprep.subr.mxu0 0.0
  %2349 = vmatpush1.xpose.msra.mxu0 0.0
  %2350 = vmatprep.subr.mxu0 0.0
  %2351 = vmatpush1.xpose.msra.mxu0 0.0
  %2352 = vmatprep.subr.mxu0 0.0
  %2353 = vmatpush1.xpose.msra.mxu0 0.0
  %2354 = vmatprep.subr.mxu0 0.0
  %2355 = vmatpush1.xpose.msra.mxu0 0.0
  %2356 = vmatprep.subr.mxu0 0.0
  %2357 = vmatpush1.xpose.msra.mxu0 0.0
  %2358 = vmatprep.subr.mxu0 0.0
  %2359 = vmatpush1.xpose.msra.mxu0 0.0
  %2360 = vmatprep.subr.mxu0 0.0
  %2361 = vmatpush1.xpose.msra.mxu0 0.0
  %2362 = vmatprep.subr.mxu0 0.0
  %2363 = vmatpush1.xpose.msra.mxu0 0.0
  %2364 = vmatprep.subr.mxu0 0.0
  %2365 = vmatpush1.xpose.msra.mxu0 0.0
  %2366 = vmatprep.subr.mxu0 0.0
  %2367 = vmatpush1.xpose.msra.mxu0 0.0
  %2368 = vmatprep.subr.mxu0 0.0
  %2369 = vmatpush1.xpose.msra.mxu0 0.0
  %2370 = vmatprep.subr.mxu0 0.0
  %2371 = vmatpush1.xpose.msra.mxu0 0.0
  %2372 = vmatprep.subr.mxu0 0.0
  %2373 = vmatpush1.xpose.msra.mxu0 0.0
  %2374 = vmatprep.subr.mxu0 0.0
  %2375 = vmatpush1.xpose.msra.mxu0 0.0
  %2376 = vmatprep.subr.mxu0 0.0
  %2377 = vmatpush1.xpose.msra.mxu0 0.0
  %2378 = vmatprep.subr.mxu0 0.0
  %2379 = vmatpush1.xpose.msra.mxu0 0.0
  %2380 = vmatprep.subr.mxu0 0.0
  %2381 = vmatpush1.xpose.msra.mxu0 0.0
  %2382 = vmatprep.mubr.f32.mxu0 0.0
  %2383 = vmatmul.mubr.f32.gmra.mrb[0].mxu0 %v2301
  %v2384 = vpop.f32.mrb[0].mxu0
  %v2385 = vadd.f32 %v2298, %v2384
  %v2386 = vpop.f32.mrb[0].mxu0
  %2387 = vmatprep.mubr.f32.mxu0 0.0
  %2388 = vmatmul.mubr.f32.gmra.mrb[0].mxu0 %v2304
  %v2389 = vpop.f32.mrb[0].mxu0
  %v2390 = vadd.f32 %v2298, %v2389
  %v2391 = vpop.f32.mrb[0].mxu0
  %2392 = vdwg.mxu0
  %2393 = vmatprep.subr.mxu0 0.0
  %2394 = vmatpush1.msra.mxu0 %v2385
  %2395 = vmatprep.subr.mxu0 0.0
  %2396 = vmatpush1.msra.mxu0 0.0
  %2397 = vmatprep.subr.mxu0 0.0
  %2398 = vmatpush1.msra.mxu0 0.0
  %2399 = vmatprep.subr.mxu0 0.0
  %2400 = vmatpush1.msra.mxu0 0.0
  %2401 = vmatprep.subr.mxu0 0.0
  %2402 = vmatpush1.msra.mxu0 0.0
  %2403 = vmatprep.subr.mxu0 0.0
  %2404 = vmatpush1.msra.mxu0 0.0
  %2405 = vmatprep.subr.mxu0 0.0
  %2406 = vmatpush1.msra.mxu0 0.0
  %2407 = vmatprep.subr.mxu0 0.0
  %2408 = vmatpush1.msra.mxu0 0.0
  %2409 = vmatprep.subr.mxu0 0.0
  %2410 = vmatpush1.msra.mxu0 0.0
  %2411 = vmatprep.subr.mxu0 0.0
  %2412 = vmatpush1.msra.mxu0 0.0
  %2413 = vmatprep.subr.mxu0 0.0
  %2414 = vmatpush1.msra.mxu0 0.0
  %2415 = vmatprep.subr.mxu0 0.0
  %2416 = vmatpush1.msra.mxu0 0.0
  %2417 = vmatprep.subr.mxu0 0.0
  %2418 = vmatpush1.msra.mxu0 0.0
  %2419 = vmatprep.subr.mxu0 0.0
  %2420 = vmatpush1.msra.mxu0 0.0
  %2421 = vmatprep.subr.mxu0 0.0
  %2422 = vmatpush1.msra.mxu0 0.0
  %2423 = vmatprep.subr.mxu0 0.0
  %2424 = vmatpush1.msra.mxu0 0.0
  %2425 = vmatprep.subr.mxu0 0.0
  %2426 = vmatpush1.msra.mxu0 0.0
  %2427 = vmatprep.subr.mxu0 0.0
  %2428 = vmatpush1.msra.mxu0 0.0
  %2429 = vmatprep.subr.mxu0 0.0
  %2430 = vmatpush1.msra.mxu0 0.0
  %2431 = vmatprep.subr.mxu0 0.0
  %2432 = vmatpush1.msra.mxu0 0.0
  %2433 = vmatprep.subr.mxu0 0.0
  %2434 = vmatpush1.msra.mxu0 0.0
  %2435 = vmatprep.subr.mxu0 0.0
  %2436 = vmatpush1.msra.mxu0 0.0
  %2437 = vmatprep.subr.mxu0 0.0
  %2438 = vmatpush1.msra.mxu0 0.0
  %2439 = vmatprep.subr.mxu0 0.0
  %2440 = vmatpush1.msra.mxu0 0.0
  %2441 = vmatprep.subr.mxu0 0.0
  %2442 = vmatpush1.msra.mxu0 0.0
  %2443 = vmatprep.subr.mxu0 0.0
  %2444 = vmatpush1.msra.mxu0 0.0
  %2445 = vmatprep.subr.mxu0 0.0
  %2446 = vmatpush1.msra.mxu0 0.0
  %2447 = vmatprep.subr.mxu0 0.0
  %2448 = vmatpush1.msra.mxu0 0.0
  %2449 = vmatprep.subr.mxu0 0.0
  %2450 = vmatpush1.msra.mxu0 0.0
  %2451 = vmatprep.subr.mxu0 0.0
  %2452 = vmatpush1.msra.mxu0 0.0
  %2453 = vmatprep.subr.mxu0 0.0
  %2454 = vmatpush1.msra.mxu0 0.0
  %2455 = vmatprep.subr.mxu0 0.0
  %2456 = vmatpush1.msra.mxu0 0.0
  %2457 = vmatprep.mubr.f32.mxu0 0.0
  %2458 = vmatmul.mubr.f32.gmra.mrb[0].mxu0 %v795
  %v2459 = vpop.f32.mrb[0].mxu0
  %v2460 = vadd.f32 0.0, %v2459
  %v2461 = vpop.f32.mrb[0].mxu0
  %2462 = vdwg.mxu0
  %2463 = vmatprep.subr.mxu0 0.0
  %2464 = vmatpush1.msra.mxu0 %v2390
  %2465 = vmatprep.subr.mxu0 0.0
  %2466 = vmatpush1.msra.mxu0 0.0
  %2467 = vmatprep.subr.mxu0 0.0
  %2468 = vmatpush1.msra.mxu0 0.0
  %2469 = vmatprep.subr.mxu0 0.0
  %2470 = vmatpush1.msra.mxu0 0.0
  %2471 = vmatprep.subr.mxu0 0.0
  %2472 = vmatpush1.msra.mxu0 0.0
  %2473 = vmatprep.subr.mxu0 0.0
  %2474 = vmatpush1.msra.mxu0 0.0
  %2475 = vmatprep.subr.mxu0 0.0
  %2476 = vmatpush1.msra.mxu0 0.0
  %2477 = vmatprep.subr.mxu0 0.0
  %2478 = vmatpush1.msra.mxu0 0.0
  %2479 = vmatprep.subr.mxu0 0.0
  %2480 = vmatpush1.msra.mxu0 0.0
  %2481 = vmatprep.subr.mxu0 0.0
  %2482 = vmatpush1.msra.mxu0 0.0
  %2483 = vmatprep.subr.mxu0 0.0
  %2484 = vmatpush1.msra.mxu0 0.0
  %2485 = vmatprep.subr.mxu0 0.0
  %2486 = vmatpush1.msra.mxu0 0.0
  %2487 = vmatprep.subr.mxu0 0.0
  %2488 = vmatpush1.msra.mxu0 0.0
  %2489 = vmatprep.subr.mxu0 0.0
  %2490 = vmatpush1.msra.mxu0 0.0
  %2491 = vmatprep.subr.mxu0 0.0
  %2492 = vmatpush1.msra.mxu0 0.0
  %2493 = vmatprep.subr.mxu0 0.0
  %2494 = vmatpush1.msra.mxu0 0.0
  %2495 = vmatprep.subr.mxu0 0.0
  %2496 = vmatpush1.msra.mxu0 0.0
  %2497 = vmatprep.subr.mxu0 0.0
  %2498 = vmatpush1.msra.mxu0 0.0
  %2499 = vmatprep.subr.mxu0 0.0
  %2500 = vmatpush1.msra.mxu0 0.0
  %2501 = vmatprep.subr.mxu0 0.0
  %2502 = vmatpush1.msra.mxu0 0.0
  %2503 = vmatprep.subr.mxu0 0.0
  %2504 = vmatpush1.msra.mxu0 0.0
  %2505 = vmatprep.subr.mxu0 0.0
  %2506 = vmatpush1.msra.mxu0 0.0
  %2507 = vmatprep.subr.mxu0 0.0
  %2508 = vmatpush1.msra.mxu0 0.0
  %2509 = vmatprep.subr.mxu0 0.0
  %2510 = vmatpush1.msra.mxu0 0.0
  %2511 = vmatprep.subr.mxu0 0.0
  %2512 = vmatpush1.msra.mxu0 0.0
  %2513 = vmatprep.subr.mxu0 0.0
  %2514 = vmatpush1.msra.mxu0 0.0
  %2515 = vmatprep.subr.mxu0 0.0
  %2516 = vmatpush1.msra.mxu0 0.0
  %2517 = vmatprep.subr.mxu0 0.0
  %2518 = vmatpush1.msra.mxu0 0.0
  %2519 = vmatprep.subr.mxu0 0.0
  %2520 = vmatpush1.msra.mxu0 0.0
  %2521 = vmatprep.subr.mxu0 0.0
  %2522 = vmatpush1.msra.mxu0 0.0
  %2523 = vmatprep.subr.mxu0 0.0
  %2524 = vmatpush1.msra.mxu0 0.0
  %2525 = vmatprep.subr.mxu0 0.0
  %2526 = vmatpush1.msra.mxu0 0.0
  %2527 = vmatprep.mubr.f32.mxu0 0.0
  %2528 = vmatmul.mubr.f32.gmra.mrb[0].mxu0 %v868
  %v2529 = vpop.f32.mrb[0].mxu0
  %v2530 = vadd.f32 0.0, %v2529
  %v2531 = vpop.f32.mrb[0].mxu0
  %2532 = vdwg.mxu0
  %v2533 = vadd.f32 %v1763, %v2460
  %v2534 = vadd.f32 %v1764, %v2530
  %v2535 = vsel %vm63, %v2533, 0.0
  %2536 = vadd.xlane.f32.xlu0 %v2535
  %v2537 = vpop.xlane.xlu0 %2536
  %v2538 = vsel %vm63, %v2534, 0.0
  %2539 = vadd.xlane.f32.xlu0 %v2538
  %v2540 = vpop.xlane.xlu0 %2539
  %v2541 = vmul.f32 %v2537, %v948
  %v2542 = vmul.f32 %v2540, %v948
  %v2543 = vsub.f32 %v2533, %v2541
  %v2544 = vsub.f32 %v2534, %v2542
  %v2545 = vmul.f32 %v2543, %v2543
  %v2546 = vmul.f32 %v2544, %v2544
  %v2547 = vsel %vm63, %v2545, 0.0
  %2548 = vadd.xlane.f32.xlu0 %v2547
  %v2549 = vpop.xlane.xlu0 %2548
  %v2550 = vsel %vm63, %v2546, 0.0
  %2551 = vadd.xlane.f32.xlu0 %v2550
  %v2552 = vpop.xlane.xlu0 %2551
  %v2553 = vmul.f32 %v2549, %v948
  %v2554 = vmul.f32 %v2552, %v948
  %v2555 = vadd.f32 %v2553, 1e-05
  %v2556 = vadd.f32 %v2554, 1e-05
  %v2557 = vrsqrt.pop %v2555
  %v2558 = vrsqrt.pop %v2556
  %v2559 = vmul.f32 %v2543, %v2557
  %v2560 = vmul.f32 %v2544, %v2558
  %v2561 = vld [vmem:[%s9] sm:$0xff]
  %v2562 = vld [vmem:[%s10] sm:$0x1]
  %v2564 = vlaneseq
  %v2565 = vshrl.u32 %v2564, 7
  %v2566 = vsub.s32 0, %v2565
  %v2567 = vrot.slane %v2562, %v2566
  %v2570 = vsel %vm63, %v2559, 0
  %v2573 = vsel %vm63, %v2560, 0
  %v2576 = vsel %vm63, %v2561, 0
  %2578 = vmatprep.subr.mxu0 0.0
  %2579 = vmatpush1.xpose.msra.mxu0 %v2576
  %2580 = vmatprep.subr.mxu0 0.0
  %2581 = vmatpush1.xpose.msra.mxu0 0.0
  %2582 = vmatprep.subr.mxu0 0.0
  %2583 = vmatpush1.xpose.msra.mxu0 0.0
  %2584 = vmatprep.subr.mxu0 0.0
  %2585 = vmatpush1.xpose.msra.mxu0 0.0
  %2586 = vmatprep.subr.mxu0 0.0
  %2587 = vmatpush1.xpose.msra.mxu0 0.0
  %2588 = vmatprep.subr.mxu0 0.0
  %2589 = vmatpush1.xpose.msra.mxu0 0.0
  %2590 = vmatprep.subr.mxu0 0.0
  %2591 = vmatpush1.xpose.msra.mxu0 0.0
  %2592 = vmatprep.subr.mxu0 0.0
  %2593 = vmatpush1.xpose.msra.mxu0 0.0
  %2594 = vmatprep.subr.mxu0 0.0
  %2595 = vmatpush1.xpose.msra.mxu0 0.0
  %2596 = vmatprep.subr.mxu0 0.0
  %2597 = vmatpush1.xpose.msra.mxu0 0.0
  %2598 = vmatprep.subr.mxu0 0.0
  %2599 = vmatpush1.xpose.msra.mxu0 0.0
  %2600 = vmatprep.subr.mxu0 0.0
  %2601 = vmatpush1.xpose.msra.mxu0 0.0
  %2602 = vmatprep.subr.mxu0 0.0
  %2603 = vmatpush1.xpose.msra.mxu0 0.0
  %2604 = vmatprep.subr.mxu0 0.0
  %2605 = vmatpush1.xpose.msra.mxu0 0.0
  %2606 = vmatprep.subr.mxu0 0.0
  %2607 = vmatpush1.xpose.msra.mxu0 0.0
  %2608 = vmatprep.subr.mxu0 0.0
  %2609 = vmatpush1.xpose.msra.mxu0 0.0
  %2610 = vmatprep.subr.mxu0 0.0
  %2611 = vmatpush1.xpose.msra.mxu0 0.0
  %2612 = vmatprep.subr.mxu0 0.0
  %2613 = vmatpush1.xpose.msra.mxu0 0.0
  %2614 = vmatprep.subr.mxu0 0.0
  %2615 = vmatpush1.xpose.msra.mxu0 0.0
  %2616 = vmatprep.subr.mxu0 0.0
  %2617 = vmatpush1.xpose.msra.mxu0 0.0
  %2618 = vmatprep.subr.mxu0 0.0
  %2619 = vmatpush1.xpose.msra.mxu0 0.0
  %2620 = vmatprep.subr.mxu0 0.0
  %2621 = vmatpush1.xpose.msra.mxu0 0.0
  %2622 = vmatprep.subr.mxu0 0.0
  %2623 = vmatpush1.xpose.msra.mxu0 0.0
  %2624 = vmatprep.subr.mxu0 0.0
  %2625 = vmatpush1.xpose.msra.mxu0 0.0
  %2626 = vmatprep.subr.mxu0 0.0
  %2627 = vmatpush1.xpose.msra.mxu0 0.0
  %2628 = vmatprep.subr.mxu0 0.0
  %2629 = vmatpush1.xpose.msra.mxu0 0.0
  %2630 = vmatprep.subr.mxu0 0.0
  %2631 = vmatpush1.xpose.msra.mxu0 0.0
  %2632 = vmatprep.subr.mxu0 0.0
  %2633 = vmatpush1.xpose.msra.mxu0 0.0
  %2634 = vmatprep.subr.mxu0 0.0
  %2635 = vmatpush1.xpose.msra.mxu0 0.0
  %2636 = vmatprep.subr.mxu0 0.0
  %2637 = vmatpush1.xpose.msra.mxu0 0.0
  %2638 = vmatprep.subr.mxu0 0.0
  %2639 = vmatpush1.xpose.msra.mxu0 0.0
  %2640 = vmatprep.subr.mxu0 0.0
  %2641 = vmatpush1.xpose.msra.mxu0 0.0
  %2642 = vmatprep.mubr.f32.mxu0 0.0
  %2643 = vmatmul.mubr.f32.gmra.mrb[0].mxu0 %v2570
  %v2644 = vpop.f32.mrb[0].mxu0
  %v2645 = vadd.f32 %v2567, %v2644
  %v2646 = vpop.f32.mrb[0].mxu0
  %2647 = vmatprep.mubr.f32.mxu0 0.0
  %2648 = vmatmul.mubr.f32.gmra.mrb[0].mxu0 %v2573
  %v2649 = vpop.f32.mrb[0].mxu0
  %v2650 = vadd.f32 %v2567, %v2649
  %v2651 = vpop.f32.mrb[0].mxu0
  %2652 = vdwg.mxu0
  %v2653 = vrot.slane %v2561, 7
  %v2654 = vsel %vm63, %v2653, 0
  %2656 = vmatprep.subr.mxu0 0.0
  %2657 = vmatpush1.xpose.msra.mxu0 %v2570
  %2658 = vmatprep.subr.mxu0 0.0
  %2659 = vmatpush1.xpose.msra.mxu0 0.0
  %2660 = vmatprep.subr.mxu0 0.0
  %2661 = vmatpush1.xpose.msra.mxu0 0.0
  %2662 = vmatprep.subr.mxu0 0.0
  %2663 = vmatpush1.xpose.msra.mxu0 0.0
  %2664 = vmatprep.subr.mxu0 0.0
  %2665 = vmatpush1.xpose.msra.mxu0 0.0
  %2666 = vmatprep.subr.mxu0 0.0
  %2667 = vmatpush1.xpose.msra.mxu0 0.0
  %2668 = vmatprep.subr.mxu0 0.0
  %2669 = vmatpush1.xpose.msra.mxu0 0.0
  %2670 = vmatprep.subr.mxu0 0.0
  %2671 = vmatpush1.xpose.msra.mxu0 0.0
  %2672 = vmatprep.subr.mxu0 0.0
  %2673 = vmatpush1.xpose.msra.mxu0 0.0
  %2674 = vmatprep.subr.mxu0 0.0
  %2675 = vmatpush1.xpose.msra.mxu0 0.0
  %2676 = vmatprep.subr.mxu0 0.0
  %2677 = vmatpush1.xpose.msra.mxu0 0.0
  %2678 = vmatprep.subr.mxu0 0.0
  %2679 = vmatpush1.xpose.msra.mxu0 0.0
  %2680 = vmatprep.subr.mxu0 0.0
  %2681 = vmatpush1.xpose.msra.mxu0 0.0
  %2682 = vmatprep.subr.mxu0 0.0
  %2683 = vmatpush1.xpose.msra.mxu0 0.0
  %2684 = vmatprep.subr.mxu0 0.0
  %2685 = vmatpush1.xpose.msra.mxu0 0.0
  %2686 = vmatprep.subr.mxu0 0.0
  %2687 = vmatpush1.xpose.msra.mxu0 0.0
  %2688 = vmatprep.subr.mxu0 0.0
  %2689 = vmatpush1.xpose.msra.mxu0 0.0
  %2690 = vmatprep.subr.mxu0 0.0
  %2691 = vmatpush1.xpose.msra.mxu0 0.0
  %2692 = vmatprep.subr.mxu0 0.0
  %2693 = vmatpush1.xpose.msra.mxu0 0.0
  %2694 = vmatprep.subr.mxu0 0.0
  %2695 = vmatpush1.xpose.msra.mxu0 0.0
  %2696 = vmatprep.subr.mxu0 0.0
  %2697 = vmatpush1.xpose.msra.mxu0 0.0
  %2698 = vmatprep.subr.mxu0 0.0
  %2699 = vmatpush1.xpose.msra.mxu0 0.0
  %2700 = vmatprep.subr.mxu0 0.0
  %2701 = vmatpush1.xpose.msra.mxu0 0.0
  %2702 = vmatprep.subr.mxu0 0.0
  %2703 = vmatpush1.xpose.msra.mxu0 0.0
  %2704 = vmatprep.subr.mxu0 0.0
  %2705 = vmatpush1.xpose.msra.mxu0 0.0
  %2706 = vmatprep.subr.mxu0 0.0
  %2707 = vmatpush1.xpose.msra.mxu0 0.0
  %2708 = vmatprep.subr.mxu0 0.0
  %2709 = vmatpush1.xpose.msra.mxu0 0.0
  %2710 = vmatprep.subr.mxu0 0.0
  %2711 = vmatpush1.xpose.msra.mxu0 0.0
  %2712 = vmatprep.subr.mxu0 0.0
  %2713 = vmatpush1.xpose.msra.mxu0 0.0
  %2714 = vmatprep.subr.mxu0 0.0
  %2715 = vmatpush1.xpose.msra.mxu0 0.0
  %2716 = vmatprep.subr.mxu0 0.0
  %2717 = vmatpush1.xpose.msra.mxu0 0.0
  %2718 = vmatprep.subr.mxu0 0.0
  %2719 = vmatpush1.xpose.msra.mxu0 0.0
  %2720 = vmatprep.mubr.f32.mxu0 0.0
  %2721 = vmatmul.mubr.f32.gmra.mrb[0].mxu0 %v2654
  %v2722 = vpop.f32.mrb[0].mxu0
  %v2723 = vadd.f32 0.0, %v2722
  %v2724 = vpop.f32.mrb[0].mxu0
  %2725 = vdwg.mxu0
  %2726 = vmatprep.subr.mxu0 0.0
  %2727 = vmatpush1.xpose.msra.mxu0 %v2573
  %2728 = vmatprep.subr.mxu0 0.0
  %2729 = vmatpush1.xpose.msra.mxu0 0.0
  %2730 = vmatprep.subr.mxu0 0.0
  %2731 = vmatpush1.xpose.msra.mxu0 0.0
  %2732 = vmatprep.subr.mxu0 0.0
  %2733 = vmatpush1.xpose.msra.mxu0 0.0
  %2734 = vmatprep.subr.mxu0 0.0
  %2735 = vmatpush1.xpose.msra.mxu0 0.0
  %2736 = vmatprep.subr.mxu0 0.0
  %2737 = vmatpush1.xpose.msra.mxu0 0.0
  %2738 = vmatprep.subr.mxu0 0.0
  %2739 = vmatpush1.xpose.msra.mxu0 0.0
  %2740 = vmatprep.subr.mxu0 0.0
  %2741 = vmatpush1.xpose.msra.mxu0 0.0
  %2742 = vmatprep.subr.mxu0 0.0
  %2743 = vmatpush1.xpose.msra.mxu0 0.0
  %2744 = vmatprep.subr.mxu0 0.0
  %2745 = vmatpush1.xpose.msra.mxu0 0.0
  %2746 = vmatprep.subr.mxu0 0.0
  %2747 = vmatpush1.xpose.msra.mxu0 0.0
  %2748 = vmatprep.subr.mxu0 0.0
  %2749 = vmatpush1.xpose.msra.mxu0 0.0
  %2750 = vmatprep.subr.mxu0 0.0
  %2751 = vmatpush1.xpose.msra.mxu0 0.0
  %2752 = vmatprep.subr.mxu0 0.0
  %2753 = vmatpush1.xpose.msra.mxu0 0.0
  %2754 = vmatprep.subr.mxu0 0.0
  %2755 = vmatpush1.xpose.msra.mxu0 0.0
  %2756 = vmatprep.subr.mxu0 0.0
  %2757 = vmatpush1.xpose.msra.mxu0 0.0
  %2758 = vmatprep.subr.mxu0 0.0
  %2759 = vmatpush1.xpose.msra.mxu0 0.0
  %2760 = vmatprep.subr.mxu0 0.0
  %2761 = vmatpush1.xpose.msra.mxu0 0.0
  %2762 = vmatprep.subr.mxu0 0.0
  %2763 = vmatpush1.xpose.msra.mxu0 0.0
  %2764 = vmatprep.subr.mxu0 0.0
  %2765 = vmatpush1.xpose.msra.mxu0 0.0
  %2766 = vmatprep.subr.mxu0 0.0
  %2767 = vmatpush1.xpose.msra.mxu0 0.0
  %2768 = vmatprep.subr.mxu0 0.0
  %2769 = vmatpush1.xpose.msra.mxu0 0.0
  %2770 = vmatprep.subr.mxu0 0.0
  %2771 = vmatpush1.xpose.msra.mxu0 0.0
  %2772 = vmatprep.subr.mxu0 0.0
  %2773 = vmatpush1.xpose.msra.mxu0 0.0
  %2774 = vmatprep.subr.mxu0 0.0
  %2775 = vmatpush1.xpose.msra.mxu0 0.0
  %2776 = vmatprep.subr.mxu0 0.0
  %2777 = vmatpush1.xpose.msra.mxu0 0.0
  %2778 = vmatprep.subr.mxu0 0.0
  %2779 = vmatpush1.xpose.msra.mxu0 0.0
  %2780 = vmatprep.subr.mxu0 0.0
  %2781 = vmatpush1.xpose.msra.mxu0 0.0
  %2782 = vmatprep.subr.mxu0 0.0
  %2783 = vmatpush1.xpose.msra.mxu0 0.0
  %2784 = vmatprep.subr.mxu0 0.0
  %2785 = vmatpush1.xpose.msra.mxu0 0.0
  %2786 = vmatprep.subr.mxu0 0.0
  %2787 = vmatpush1.xpose.msra.mxu0 0.0
  %2788 = vmatprep.subr.mxu0 0.0
  %2789 = vmatpush1.xpose.msra.mxu0 0.0
  %2790 = vmatprep.mubr.f32.mxu0 0.0
  %2791 = vmatmul.mubr.f32.gmra.mrb[0].mxu0 %v2654
  %v2792 = vpop.f32.mrb[0].mxu0
  %v2793 = vadd.f32 0.0, %v2792
  %v2794 = vpop.f32.mrb[0].mxu0
  %2795 = vdwg.mxu0
  %2797 = vset.pattern.permute.xlu0 6
  %2798 = vperm.xlu0 %2797, %v2645
  %v2799 = vpop.permute.xlu0 %2798
  %2802 = vset.pattern.permute.xlu0 6
  %2803 = vperm.xlu0 %2802, %v2650
  %v2804 = vpop.permute.xlu0 %2803
  %v2806 = vlaneseq
  %v2807 = vshrl.u32 %v2806, 7
  %v2808 = vsub.s32 0, %v2807
  %v2809 = vrot.slane %v2723, %v2808
  %v2810 = vlaneseq
  %v2811 = vshrl.u32 %v2810, 7
  %v2812 = vsub.s32 0, %v2811
  %v2813 = vrot.slane %v2793, %v2812
  %v2814 = vadd.f32 %v2799, %v2809
  %v2815 = vadd.f32 %v2804, %v2813
  %v2816 = vsel %vm63, %v2559, 0.0
  %v2817 = vrot.slane %v2816, 4
  %v2818 = vadd.f32 %v2816, %v2817
  %v2819 = vrot.slane %v2818, 2
  %v2820 = vadd.f32 %v2818, %v2819
  %v2821 = vrot.slane %v2820, 1
  %v2822 = vadd.f32 %v2820, %v2821
  %v2823 = vsel %vm63, %v2560, 0.0
  %v2824 = vrot.slane %v2823, 4
  %v2825 = vadd.f32 %v2823, %v2824
  %v2826 = vrot.slane %v2825, 2
  %v2827 = vadd.f32 %v2825, %v2826
  %v2828 = vrot.slane %v2827, 1
  %v2829 = vadd.f32 %v2827, %v2828
  %v2830 = vrcp.pop 8.0
  %v2831 = vmul.f32 %v2822, %v2830
  %v2832 = vmul.f32 %v2829, %v2830
  %v2833 = vld [vmem:[%s11] sm:$0xff]
  %v2834 = vld [vmem:[%s11 + $0x8] sm:$0xff]
  %v2835 = vld [vmem:[%s11 + $0x10] sm:$0xff]
  %v2836 = vld [vmem:[%s11 + $0x18] sm:$0xff]
  %v2837 = vld [vmem:[%s12] sm:$0x1]
  %v2839 = vlaneseq
  %v2840 = vshrl.u32 %v2839, 7
  %v2841 = vsub.s32 0, %v2840
  %v2842 = vrot.slane %v2837, %v2841
  %vm2846 = vcmask 1041409
  %v2847 = vsel %vm2846, %v2832, %v2831
  %v2848 = vsel %vm63, %v2847, 0
  %v2851 = vsel %vm63, %v2833, 0
  %v2854 = vsel %vm63, %v2834, 0
  %v2857 = vsel %vm63, %v2835, 0
  %v2860 = vsel %vm63, %v2836, 0
  %2862 = vmatprep.subr.mxu0 0.0
  %2863 = vmatpush1.xpose.msra.mxu0 %v2851
  %2864 = vmatprep.subr.mxu0 0.0
  %2865 = vmatpush1.xpose.msra.mxu0 %v2854
  %2866 = vmatprep.subr.mxu0 0.0
  %2867 = vmatpush1.xpose.msra.mxu0 %v2857
  %2868 = vmatprep.subr.mxu0 0.0
  %2869 = vmatpush1.xpose.msra.mxu0 %v2860
  %2870 = vmatprep.subr.mxu0 0.0
  %2871 = vmatpush1.xpose.msra.mxu0 0.0
  %2872 = vmatprep.subr.mxu0 0.0
  %2873 = vmatpush1.xpose.msra.mxu0 0.0
  %2874 = vmatprep.subr.mxu0 0.0
  %2875 = vmatpush1.xpose.msra.mxu0 0.0
  %2876 = vmatprep.subr.mxu0 0.0
  %2877 = vmatpush1.xpose.msra.mxu0 0.0
  %2878 = vmatprep.subr.mxu0 0.0
  %2879 = vmatpush1.xpose.msra.mxu0 0.0
  %2880 = vmatprep.subr.mxu0 0.0
  %2881 = vmatpush1.xpose.msra.mxu0 0.0
  %2882 = vmatprep.subr.mxu0 0.0
  %2883 = vmatpush1.xpose.msra.mxu0 0.0
  %2884 = vmatprep.subr.mxu0 0.0
  %2885 = vmatpush1.xpose.msra.mxu0 0.0
  %2886 = vmatprep.subr.mxu0 0.0
  %2887 = vmatpush1.xpose.msra.mxu0 0.0
  %2888 = vmatprep.subr.mxu0 0.0
  %2889 = vmatpush1.xpose.msra.mxu0 0.0
  %2890 = vmatprep.subr.mxu0 0.0
  %2891 = vmatpush1.xpose.msra.mxu0 0.0
  %2892 = vmatprep.subr.mxu0 0.0
  %2893 = vmatpush1.xpose.msra.mxu0 0.0
  %2894 = vmatprep.subr.mxu0 0.0
  %2895 = vmatpush1.xpose.msra.mxu0 0.0
  %2896 = vmatprep.subr.mxu0 0.0
  %2897 = vmatpush1.xpose.msra.mxu0 0.0
  %2898 = vmatprep.subr.mxu0 0.0
  %2899 = vmatpush1.xpose.msra.mxu0 0.0
  %2900 = vmatprep.subr.mxu0 0.0
  %2901 = vmatpush1.xpose.msra.mxu0 0.0
  %2902 = vmatprep.subr.mxu0 0.0
  %2903 = vmatpush1.xpose.msra.mxu0 0.0
  %2904 = vmatprep.subr.mxu0 0.0
  %2905 = vmatpush1.xpose.msra.mxu0 0.0
  %2906 = vmatprep.subr.mxu0 0.0
  %2907 = vmatpush1.xpose.msra.mxu0 0.0
  %2908 = vmatprep.subr.mxu0 0.0
  %2909 = vmatpush1.xpose.msra.mxu0 0.0
  %2910 = vmatprep.subr.mxu0 0.0
  %2911 = vmatpush1.xpose.msra.mxu0 0.0
  %2912 = vmatprep.subr.mxu0 0.0
  %2913 = vmatpush1.xpose.msra.mxu0 0.0
  %2914 = vmatprep.subr.mxu0 0.0
  %2915 = vmatpush1.xpose.msra.mxu0 0.0
  %2916 = vmatprep.subr.mxu0 0.0
  %2917 = vmatpush1.xpose.msra.mxu0 0.0
  %2918 = vmatprep.subr.mxu0 0.0
  %2919 = vmatpush1.xpose.msra.mxu0 0.0
  %2920 = vmatprep.subr.mxu0 0.0
  %2921 = vmatpush1.xpose.msra.mxu0 0.0
  %2922 = vmatprep.subr.mxu0 0.0
  %2923 = vmatpush1.xpose.msra.mxu0 0.0
  %2924 = vmatprep.subr.mxu0 0.0
  %2925 = vmatpush1.xpose.msra.mxu0 0.0
  %2926 = vmatprep.mubr.f32.mxu0 0.0
  %2927 = vmatmul.mubr.f32.gmra.mrb[0].mxu0 %v2848
  %v2928 = vpop.f32.mrb[0].mxu0
  %v2929 = vadd.f32 %v2842, %v2928
  %v2930 = vpop.f32.mrb[0].mxu0
  %2931 = vdwg.mxu0
  %v2934 = vunpack.c.l.s4 1966171168
  %v2935 = vunpack.c.0.s8 %v2934
  %v2936 = vlaneseq
  %v2937 = vshrl.u32 %v2936, 7
  %v2938 = vsub.s32 %v2935, %v2937
  %v2939 = vrot.slane %v2929, %v2938
  %v2940 = vcombine.high %v2939, %v2939
  %v2942 = vunpack.c.l.s4 1966171168
  %v2943 = vunpack.c.0.s8 %v2942
  %v2944 = vlaneseq
  %v2945 = vshrl.u32 %v2944, 7
  %v2946 = vsub.s32 %v2943, %v2945
  %v2947 = vrot.slane %v2939, %v2946
  %v2949 = vunpack.c.l.s4 1966171168
  %v2950 = vunpack.c.0.s8 %v2949
  %v2951 = vlaneseq
  %v2952 = vshrl.u32 %v2951, 7
  %v2953 = vsub.s32 %v2950, %v2952
  %v2954 = vrot.slane %v2940, %v2953
  %v2955 = vlaneseq
  %v2956 = vshrl.u32 %v2955, 7
  %v2957 = vsub.s32 0, %v2956
  %v2958 = vrot.slane %v2947, %v2957
  %v2959 = vlaneseq
  %v2960 = vshrl.u32 %v2959, 7
  %v2961 = vsub.s32 0, %v2960
  %v2962 = vrot.slane %v2954, %v2961
  %2963 = vrot.lane.b32.xlu0 %v2645, 32
  %v2964 = vpop.permute.xlu0 %2963
  %2965 = vrot.lane.b32.xlu0 %v2650, 32
  %v2966 = vpop.permute.xlu0 %2965
  %2971 = vrot.lane.b32.xlu0 %v2814, 38
  %v2972 = vpop.permute.xlu0 %2971
  %2973 = vrot.lane.b32.xlu0 %v2815, 38
  %v2974 = vpop.permute.xlu0 %2973
  %2977 = vrot.lane.b32.xlu0 %v2958, 46
  %v2978 = vpop.permute.xlu0 %2977
  %2979 = vrot.lane.b32.xlu0 %v2962, 46
  %v2980 = vpop.permute.xlu0 %2979
  %v2983 = vsel %vm63, %v2559, %v2964
  %v2984 = vsel %vm63, %v2560, %v2966
  %vm2985 = vcmask 310272
  %v2986 = vsel %vm2985, %v2983, %v2972
  %v2987 = vsel %vm2985, %v2984, %v2974
  %vm2988 = vcmask 375808
  %v2989 = vsel %vm2988, %v2986, %v2978
  %v2990 = vsel %vm2988, %v2987, %v2980
  %vm2991 = vcmask 637952
  %v2992 = vsel %vm2991, %v2989, 0.0
  %v2993 = vsel %vm2991, %v2990, 0.0
  %2994 = vst [vmem:[%s13] sm:$0xff] %v2992
  %2995 = vst [vmem:[%s13 + $0x8] sm:$0xff] %v2993
  // Predicated region
  $region54: #{knowledge_graph_gnn.1} parent=0 // pred_check
    _
  $region55: #{knowledge_graph_gnn.1} parent=0 // pred_check_branch
    %2997 = sbr.rel (0) target = $region57
  $region56: #{knowledge_graph_gnn.1} parent=0 // pred_region
    _
  $region57: #{knowledge_graph_gnn.1} parent=0 // pred_fallthru
    _
  // Predicated region
  $region58: #{knowledge_graph_gnn.1} parent=0 // pred_check
    _
  $region59: #{knowledge_graph_gnn.1} parent=0 // pred_check_branch
    %2999 = sbr.rel (0) target = $region61
  $region60: #{knowledge_graph_gnn.1} parent=0 // pred_region
    _
  $region61: #{knowledge_graph_gnn.1} parent=0 // pred_fallthru
    _

</llo_original>
